<compile_context>
chip_gen: v5e
topology: v5e:2x2
jax: 0.10.0
libtpu: 0.0.40
codegen_flags: <defaults>
</compile_context>

<pallas_src>
import functools

import jax
import jax.numpy as jnp
from jax import lax
from jax.experimental import pallas as pl
from jax.experimental.pallas import tpu as pltpu


# ----------------------------------------------------------------------------
# Kernel
# ----------------------------------------------------------------------------
def _flash_attend_kernel(q_ref, k_ref, v_ref, o_ref,
                         qs_ref, m_ref, l_ref, acc_ref, *,
                         scale, mxu_dtype, exp_dtype, tk, k_valid):
    kv_idx = pl.program_id(3)

    @pl.when(kv_idx == 0)
    def _():
        # Hoisted: scale + MXU-dtype cast of q once per q tile (not per kv step).
        qs_ref[...] = (q_ref[0] * scale).astype(mxu_dtype)
        m_ref[...] = jnp.full_like(m_ref, -jnp.inf)
        l_ref[...] = jnp.zeros_like(l_ref)
        acc_ref[...] = jnp.zeros_like(acc_ref)

    q = qs_ref[...]                          # (hb, tq, d) pre-scaled, MXU dtype
    k = k_ref[0].astype(mxu_dtype)           # (hb, tk, d)
    v = v_ref[0].astype(mxu_dtype)           # (hb, tk, d)

    # sim = q @ k^T per packed head (batched over hb), f32 accumulation.
    s = lax.dot_general(q, k, (((2,), (2,)), ((0,), (0,))),
                        preferred_element_type=jnp.float32)   # (hb, tq, tk)

    if k_valid is not None:
        # kv length was padded up to a tile multiple: mask the padded keys.
        col = kv_idx * tk + lax.broadcasted_iota(jnp.int32, (1, 1, tk), 2)
        s = jnp.where(col < k_valid, s, -jnp.inf)

    # Online (flash) softmax; statistics in f32.
    m_prev = m_ref[...]
    m_new = jnp.maximum(m_prev, jnp.max(s, axis=-1, keepdims=True))
    alpha = jnp.exp(m_prev - m_new)
    p = jnp.exp((s - m_new).astype(exp_dtype))     # bf16 exp on v6e/v7x
    l_ref[...] = alpha * l_ref[...] + jnp.sum(
        p.astype(jnp.float32), axis=-1, keepdims=True)
    pv = lax.dot_general(p.astype(mxu_dtype), v, (((2,), (1,)), ((0,), (0,))),
                         preferred_element_type=jnp.float32)  # (hb, tq, d)
    acc_ref[...] = alpha * acc_ref[...] + pv
    m_ref[...] = m_new

    @pl.when(kv_idx == pl.num_programs(3) - 1)
    def _():
        inv_l = pl.reciprocal(l_ref[...], approx=True)   # EUP slot, ~free
        o_ref[0] = (acc_ref[...] * inv_l).astype(o_ref.dtype)


# ----------------------------------------------------------------------------
# Wrapper helpers
# ----------------------------------------------------------------------------
def _round_up(x, m):
    return ((x + m - 1) // m) * m


def _pick_tile(n, candidates):
    """Largest candidate that divides n (n is always a multiple of 128)."""
    for c in candidates:
        if c <= n and n % c == 0:
            return c
    return candidates[-1]


def _pick_head_block(h, d):
    """Pack heads so each block carries >=128 lanes of payload (hb*d <= 256)."""
    for cand in (8, 4, 2):
        if h % cand == 0 and cand * d <= 256:
            return cand
    return 1


def _tpu_generation():
    try:
        kind = jax.devices()[0].device_kind.lower()
    except Exception:
        return 0
    if "v7" in kind or "7x" in kind:
        return 7
    for g in (6, 5, 4, 3, 2):
        if ("v%d" % g) in kind:
            return g
    return 0


def _vmem_bytes(tq, tk, hb, d, in_isz, out_isz, mxu_isz):
    """Conservative per-step VMEM footprint estimate."""
    # Double-buffered q / k / v / o blocks.
    blocks = 2 * hb * d * (tq * in_isz + 2 * tk * in_isz + tq * out_isz)
    # Persistent scratch: pre-scaled q, f32 acc, m/l (lane-padded to 128).
    scratch = hb * tq * (d * mxu_isz + d * 4 + 2 * 128 * 4)
    # f32/bf16 score & probability intermediates (s, shifted s, p, casts).
    inter = hb * tq * tk * 16
    return blocks + scratch + inter


# ----------------------------------------------------------------------------
# Public entry point
# ----------------------------------------------------------------------------
def attend(q, k, v, *, scale=None, dropout=0.0, flash=False,
           precision="default"):
    """JAX/Pallas equivalent of Attend()(q, k, v) in eval mode.

    q: (b, h, q_len, d), k/v: (b, h, k_len, d). Returns (b, h, q_len, d).
    `flash` only changes the backend in PyTorch, not the math, so it is
    ignored here. precision="default" uses bf16 MXU operands / bf16 exp on
    v6e+ (f32 accumulation); precision="highest" keeps operands in the input
    dtype.
    """
    del flash
    # TODO(synk): training-mode attention dropout not implemented (eval only).
    assert dropout == 0.0, "attention dropout (training mode) not implemented"

    b, h, q_len, d = q.shape
    k_len = k.shape[-2]
    if scale is None:
        scale = d ** -0.5

    gen = _tpu_generation()
    mxu_dtype = jnp.bfloat16 if precision == "default" else q.dtype
    # bf16 elementwise/EUP is only fast on v6e and newer; keep f32 on v5e-.
    exp_dtype = (jnp.bfloat16 if (precision == "default" and gen >= 6)
                 else jnp.float32)

    hb = _pick_head_block(h, d)

    # Pad sequence lengths to multiples of 128 so tiles stay (8,128)-aligned
    # (no more "one giant kv tile" fallback for ragged lengths).
    q_pad = _round_up(q_len, 128)
    k_pad = _round_up(k_len, 128)
    if q_pad != q_len:
        q = jnp.pad(q, ((0, 0), (0, 0), (0, q_pad - q_len), (0, 0)))
    if k_pad != k_len:
        k = jnp.pad(k, ((0, 0), (0, 0), (0, k_pad - k_len), (0, 0)))
        v = jnp.pad(v, ((0, 0), (0, 0), (0, k_pad - k_len), (0, 0)))
    k_valid = k_len if k_pad != k_len else None

    # Generation-aware VMEM budget: v7x has 64 MiB physical (vs 128 on v5e/v6e).
    if gen >= 7 or gen == 0:
        vmem_limit = 48 * 1024 * 1024
    elif gen >= 4:
        vmem_limit = 100 * 1024 * 1024
    else:
        vmem_limit = 12 * 1024 * 1024
    budget = int(vmem_limit * 0.8)

    in_isz = jnp.dtype(q.dtype).itemsize
    out_isz = in_isz
    mxu_isz = jnp.dtype(mxu_dtype).itemsize

    tq = _pick_tile(q_pad, (1024, 512, 256, 128))
    tk = _pick_tile(k_pad, (2048, 1024, 512, 256, 128))
    while _vmem_bytes(tq, tk, hb, d, in_isz, out_isz, mxu_isz) > budget:
        if tk >= tq and tk > 128:
            tk //= 2
        elif tq > 128:
            tq //= 2
        elif tk > 128:
            tk //= 2
        else:
            break

    grid = (b, h // hb, q_pad // tq, k_pad // tk)

    kernel = functools.partial(_flash_attend_kernel, scale=float(scale),
                               mxu_dtype=mxu_dtype, exp_dtype=exp_dtype,
                               tk=tk, k_valid=k_valid)

    q_spec = pl.BlockSpec((1, hb, tq, d), lambda bi, hi, qi, ki: (bi, hi, qi, 0))
    k_spec = pl.BlockSpec((1, hb, tk, d), lambda bi, hi, qi, ki: (bi, hi, ki, 0))
    v_spec = pl.BlockSpec((1, hb, tk, d), lambda bi, hi, qi, ki: (bi, hi, ki, 0))
    o_spec = pl.BlockSpec((1, hb, tq, d), lambda bi, hi, qi, ki: (bi, hi, qi, 0))
    # TODO(synk): a fully lane-dense (b, q, h*d) output slab (unmasked vst)
    # needs an in-kernel head/lane re-pack; at these tile sizes the final store
    # is a small fraction of step time, so it is left out for robustness.

    n_q_tiles = q_pad // tq
    cost = pl.CostEstimate(
        flops=4 * b * h * q_len * k_len * d,              # QK^T + PV
        transcendentals=b * h * q_len * k_len,            # one exp per element
        bytes_accessed=(q.size + b * h * q_pad * d) * in_isz
                       + (k.size + v.size) * in_isz * n_q_tiles,  # K/V re-reads
    )

    out = pl.pallas_call(
        kernel,
        out_shape=jax.ShapeDtypeStruct((b, h, q_pad, d), q.dtype),
        grid_spec=pltpu.PrefetchScalarGridSpec(
            num_scalar_prefetch=0,
            grid=grid,
            in_specs=[q_spec, k_spec, v_spec],
            out_specs=o_spec,
            scratch_shapes=[
                pltpu.VMEM((hb, tq, d), mxu_dtype),    # pre-scaled q
                pltpu.VMEM((hb, tq, 1), jnp.float32),  # running max  m
                pltpu.VMEM((hb, tq, 1), jnp.float32),  # running denom l
                pltpu.VMEM((hb, tq, d), jnp.float32),  # output accumulator
            ],
        ),
        compiler_params=pltpu.CompilerParams(
            dimension_semantics=("parallel", "parallel", "parallel",
                                 "arbitrary"),
            vmem_limit_bytes=vmem_limit),
        cost_estimate=cost,
    )(q, k, v)

    if q_pad != q_len:
        out = out[:, :, :q_len, :]
    return out


# ----------------------------------------------------------------------------
# Pure-JAX reference + tests
# ----------------------------------------------------------------------------
def attend_reference(q, k, v, *, scale=None):
    d = q.shape[-1]
    if scale is None:
        scale = d ** -0.5
    sim = jnp.einsum('bhid,bhjd->bhij', q.astype(jnp.float32),
                     k.astype(jnp.float32)) * scale
    attn = jax.nn.softmax(sim, axis=-1)
    out = jnp.einsum('bhij,bhjd->bhid', attn, v.astype(jnp.float32))
    return out.astype(q.dtype)


if __name__ == "__main__":
    key = jax.random.PRNGKey(0)
    kq, kk, kv = jax.random.split(key, 3)

    # Small shape matching the module's expected layout (b, h, n, d).
    b, h, n, d = 2, 4, 8, 32
    q = jax.random.normal(kq, (b, h, n, d), dtype=jnp.float32)
    k = jax.random.normal(kk, (b, h, n, d), dtype=jnp.float32)
    v = jax.random.normal(kv, (b, h, n, d), dtype=jnp.float32)
    ref = attend_reference(q, k, v)

    # 1) default path (bf16 MXU operands, f32 accumulation).
    out = jax.block_until_ready(attend(q, k, v))
    assert out.shape == (b, h, n, d)
    assert jnp.allclose(out, ref, atol=3e-2, rtol=3e-2), "default-path mismatch"

    # 1b) highest-precision path (f32 operands) -> tight tolerance.
    out_hp = jax.block_until_ready(attend(q, k, v, precision="highest"))
    assert jnp.allclose(out_hp, ref, atol=5e-3, rtol=5e-3), "f32-path mismatch"

    # 2) explicit-scale path (mirrors Attend(scale=...)).
    out2 = jax.block_until_ready(attend(q, k, v, scale=0.25))
    ref2 = attend_reference(q, k, v, scale=0.25)
    assert jnp.allclose(out2, ref2, atol=3e-2, rtol=3e-2), "scale-path mismatch"

    # 3) Larger sequence to exercise the multi-tile online-softmax path.
    b2, h2, n2, d2 = 1, 2, 1024, 64
    kq2, kk2, kv2 = jax.random.split(jax.random.PRNGKey(1), 3)
    q2 = jax.random.normal(kq2, (b2, h2, n2, d2), dtype=jnp.float32)
    k2 = jax.random.normal(kk2, (b2, h2, n2, d2), dtype=jnp.float32)
    v2 = jax.random.normal(kv2, (b2, h2, n2, d2), dtype=jnp.float32)
    out3 = jax.block_until_ready(attend(q2, k2, v2))
    ref3 = attend_reference(q2, k2, v2)
    assert jnp.allclose(out3, ref3, atol=3e-2, rtol=3e-2), "tiled path mismatch"

    # 4) Ragged lengths (exercise padding + in-kernel kv masking).
    kq3, kk3, kv3 = jax.random.split(jax.random.PRNGKey(2), 3)
    q3 = jax.random.normal(kq3, (1, 2, 200, 64), dtype=jnp.float32)
    k3 = jax.random.normal(kk3, (1, 2, 136, 64), dtype=jnp.float32)
    v3 = jax.random.normal(kv3, (1, 2, 136, 64), dtype=jnp.float32)
    out4 = jax.block_until_ready(attend(q3, k3, v3))
    ref4 = attend_reference(q3, k3, v3)
    assert out4.shape == (1, 2, 200, 64)
    assert jnp.allclose(out4, ref4, atol=3e-2, rtol=3e-2), "ragged path mismatch"

    # 5) bf16 operands (MXU fast path), generous tolerance for bf16 rounding.
    out5 = jax.block_until_ready(
        attend(q.astype(jnp.bfloat16), k.astype(jnp.bfloat16),
               v.astype(jnp.bfloat16)))
    assert jnp.allclose(out5.astype(jnp.float32), ref, atol=1e-1, rtol=1e-1)

    print("KERNEL_OK")
</pallas_src>

<mosaic_0001>
module attributes {stable_mosaic.version = 11 : i64} {
  func.func @_flash_attend_kernel(%arg0: i32, %arg1: i32, %arg2: i32, %arg3: i32, %arg4: memref<1x4x128x32xf32, #tpu.memory_space<vmem>>, %arg5: memref<1x4x128x32xf32, #tpu.memory_space<vmem>>, %arg6: memref<1x4x128x32xf32, #tpu.memory_space<vmem>>, %arg7: memref<1x4x128x32xf32, #tpu.memory_space<vmem>>, %arg8: memref<4x128x32xbf16, #tpu.memory_space<vmem>>, %arg9: memref<4x128x1xf32, #tpu.memory_space<vmem>>, %arg10: memref<4x128x1xf32, #tpu.memory_space<vmem>>, %arg11: memref<4x128x32xf32, #tpu.memory_space<vmem>>) attributes {dimension_semantics = [#tpu.dimension_semantics<parallel>, #tpu.dimension_semantics<parallel>, #tpu.dimension_semantics<parallel>, #tpu.dimension_semantics<arbitrary>], iteration_bounds = array<i64: 2, 1, 1, 1>, scalar_prefetch = 0 : i64, scratch_operands = 4 : i64, tpu.core_type = #tpu.core_type<tc>, window_params = [{transform_indices = @transform_0, window_bounds = array<i64: 1, 4, 128, 32>}, {transform_indices = @transform_1, window_bounds = array<i64: 1, 4, 128, 32>}, {transform_indices = @transform_2, window_bounds = array<i64: 1, 4, 128, 32>}, {transform_indices = @transform_3, window_bounds = array<i64: 1, 4, 128, 32>}]} {
    %c0_i32 = arith.constant 0 : i32
    %0 = arith.cmpi eq, %arg3, %c0_i32 : i32
    %1 = arith.extui %0 : i1 to i32
    %c0_i32_0 = arith.constant 0 : i32
    %2 = arith.cmpi ne, %1, %c0_i32_0 : i32
    scf.if %2 {
      %c0_35 = arith.constant 0 : index
      %c0_36 = arith.constant 0 : index
      %c0_37 = arith.constant 0 : index
      %c0_38 = arith.constant 0 : index
      %47 = vector.load %arg4[%c0_35, %c0_36, %c0_37, %c0_38] : memref<1x4x128x32xf32, #tpu.memory_space<vmem>>, vector<1x4x128x32xf32>
      %48 = vector.shape_cast %47 : vector<1x4x128x32xf32> to vector<4x128x32xf32>
      %cst_39 = arith.constant 0.176776692 : f32
      %49 = vector.broadcast %cst_39 : f32 to vector<4x128x32xf32>
      %50 = arith.mulf %48, %49 : vector<4x128x32xf32>
      %51 = arith.truncf %50 : vector<4x128x32xf32> to vector<4x128x32xbf16>
      %c0_40 = arith.constant 0 : index
      %c0_41 = arith.constant 0 : index
      %c0_42 = arith.constant 0 : index
      %52 = vector.load %arg8[%c0_40, %c0_41, %c0_42] : memref<4x128x32xbf16, #tpu.memory_space<vmem>>, vector<4x128x32xbf16>
      tpu.vector_store %arg8[%c0_40, %c0_41, %c0_42], %51 {strides = array<i32>} : memref<4x128x32xbf16, #tpu.memory_space<vmem>>, vector<4x128x32xbf16>,
      %cst_43 = arith.constant 0xFF800000 : f32
      %53 = vector.broadcast %cst_43 : f32 to vector<4x128x1xf32>
      %c0_44 = arith.constant 0 : index
      %c0_45 = arith.constant 0 : index
      %c0_46 = arith.constant 0 : index
      %54 = vector.load %arg9[%c0_44, %c0_45, %c0_46] : memref<4x128x1xf32, #tpu.memory_space<vmem>>, vector<4x128x1xf32>
      tpu.vector_store %arg9[%c0_44, %c0_45, %c0_46], %53 {strides = array<i32>} : memref<4x128x1xf32, #tpu.memory_space<vmem>>, vector<4x128x1xf32>,
      %cst_47 = arith.constant 0.000000e+00 : f32
      %55 = vector.broadcast %cst_47 : f32 to vector<4x128x1xf32>
      %c0_48 = arith.constant 0 : index
      %c0_49 = arith.constant 0 : index
      %c0_50 = arith.constant 0 : index
      %56 = vector.load %arg10[%c0_48, %c0_49, %c0_50] : memref<4x128x1xf32, #tpu.memory_space<vmem>>, vector<4x128x1xf32>
      tpu.vector_store %arg10[%c0_48, %c0_49, %c0_50], %55 {strides = array<i32>} : memref<4x128x1xf32, #tpu.memory_space<vmem>>, vector<4x128x1xf32>,
      %cst_51 = arith.constant 0.000000e+00 : f32
      %57 = vector.broadcast %cst_51 : f32 to vector<4x128x32xf32>
      %c0_52 = arith.constant 0 : index
      %c0_53 = arith.constant 0 : index
      %c0_54 = arith.constant 0 : index
      %58 = vector.load %arg11[%c0_52, %c0_53, %c0_54] : memref<4x128x32xf32, #tpu.memory_space<vmem>>, vector<4x128x32xf32>
      tpu.vector_store %arg11[%c0_52, %c0_53, %c0_54], %57 {strides = array<i32>} : memref<4x128x32xf32, #tpu.memory_space<vmem>>, vector<4x128x32xf32>,
    } else {
    }
    %c0 = arith.constant 0 : index
    %c0_1 = arith.constant 0 : index
    %c0_2 = arith.constant 0 : index
    %3 = vector.load %arg8[%c0, %c0_1, %c0_2] : memref<4x128x32xbf16, #tpu.memory_space<vmem>>, vector<4x128x32xbf16>
    %c0_3 = arith.constant 0 : index
    %c0_4 = arith.constant 0 : index
    %c0_5 = arith.constant 0 : index
    %c0_6 = arith.constant 0 : index
    %4 = vector.load %arg5[%c0_3, %c0_4, %c0_5, %c0_6] : memref<1x4x128x32xf32, #tpu.memory_space<vmem>>, vector<1x4x128x32xf32>
    %5 = vector.shape_cast %4 : vector<1x4x128x32xf32> to vector<4x128x32xf32>
    %6 = arith.truncf %5 : vector<4x128x32xf32> to vector<4x128x32xbf16>
    %c0_7 = arith.constant 0 : index
    %c0_8 = arith.constant 0 : index
    %c0_9 = arith.constant 0 : index
    %c0_10 = arith.constant 0 : index
    %7 = vector.load %arg6[%c0_7, %c0_8, %c0_9, %c0_10] : memref<1x4x128x32xf32, #tpu.memory_space<vmem>>, vector<1x4x128x32xf32>
    %8 = vector.shape_cast %7 : vector<1x4x128x32xf32> to vector<4x128x32xf32>
    %9 = arith.truncf %8 : vector<4x128x32xf32> to vector<4x128x32xbf16>
    %cst = arith.constant dense<0.000000e+00> : vector<4x128x128xf32>
    %10 = tpu.matmul %3, %6, %cst {dimension_numbers = #tpu.dot_dimension_numbers<[2], [2], [1], [1], [0, 0, 0, 1, 1, 1], [0], [0]>} : vector<4x128x32xbf16>, vector<4x128x32xbf16>, vector<4x128x128xf32> -> vector<4x128x128xf32>
    %c128_i32 = arith.constant 128 : i32
    %11 = arith.muli %arg3, %c128_i32 : i32
    %12 = tpu.iota {dimensions = array<i32: 2>} : vector<1x1x128xi32>
    %13 = vector.broadcast %11 : i32 to vector<1x1x128xi32>
    %14 = arith.addi %13, %12 : vector<1x1x128xi32>
    %c8_i32 = arith.constant 8 : i32
    %15 = vector.broadcast %c8_i32 : i32 to vector<1x1x128xi32>
    %16 = arith.cmpi slt, %14, %15 : vector<1x1x128xi32>
    %cst_11 = arith.constant 0xFF800000 : f32
    %17 = vector.shape_cast %16 : vector<1x1x128xi1> to vector<1x1x128xi1>
    %18 = vector.broadcast %17 : vector<1x1x128xi1> to vector<4x128x128xi1>
    %19 = vector.broadcast %cst_11 : f32 to vector<4x128x128xf32>
    %20 = arith.select %18, %10, %19 : vector<4x128x128xi1>, vector<4x128x128xf32>
    %c0_12 = arith.constant 0 : index
    %c0_13 = arith.constant 0 : index
    %c0_14 = arith.constant 0 : index
    %21 = vector.load %arg9[%c0_12, %c0_13, %c0_14] : memref<4x128x1xf32, #tpu.memory_space<vmem>>, vector<4x128x1xf32>
    %cst_15 = arith.constant dense<0xFF800000> : vector<4x128xf32>
    %22 = vector.multi_reduction <maximumf>, %20, %cst_15 [2] : vector<4x128x128xf32> to vector<4x128xf32>
    %23 = vector.shape_cast %22 : vector<4x128xf32> to vector<4x128x1xf32>
    %24 = arith.maximumf %21, %23 : vector<4x128x1xf32>
    %25 = arith.subf %21, %24 : vector<4x128x1xf32>
    %26 = math.exp %25 : vector<4x128x1xf32>
    %27 = vector.broadcast %24 : vector<4x128x1xf32> to vector<4x128x128xf32>
    %28 = arith.subf %20, %27 : vector<4x128x128xf32>
    %29 = math.exp %28 : vector<4x128x128xf32>
    %c0_16 = arith.constant 0 : index
    %c0_17 = arith.constant 0 : index
    %c0_18 = arith.constant 0 : index
    %30 = vector.load %arg10[%c0_16, %c0_17, %c0_18] : memref<4x128x1xf32, #tpu.memory_space<vmem>>, vector<4x128x1xf32>
    %31 = arith.mulf %26, %30 : vector<4x128x1xf32>
    %cst_19 = arith.constant dense<0.000000e+00> : vector<4x128xf32>
    %32 = vector.multi_reduction <add>, %29, %cst_19 [2] : vector<4x128x128xf32> to vector<4x128xf32>
    %33 = vector.shape_cast %32 : vector<4x128xf32> to vector<4x128x1xf32>
    %34 = arith.addf %31, %33 : vector<4x128x1xf32>
    %c0_20 = arith.constant 0 : index
    %c0_21 = arith.constant 0 : index
    %c0_22 = arith.constant 0 : index
    %35 = vector.load %arg10[%c0_20, %c0_21, %c0_22] : memref<4x128x1xf32, #tpu.memory_space<vmem>>, vector<4x128x1xf32>
    tpu.vector_store %arg10[%c0_20, %c0_21, %c0_22], %34 {strides = array<i32>} : memref<4x128x1xf32, #tpu.memory_space<vmem>>, vector<4x128x1xf32>,
    %36 = arith.truncf %29 : vector<4x128x128xf32> to vector<4x128x128xbf16>
    %cst_23 = arith.constant dense<0.000000e+00> : vector<4x128x32xf32>
    %37 = tpu.matmul %36, %9, %cst_23 {dimension_numbers = #tpu.dot_dimension_numbers<[2], [1], [1], [2], [0, 0, 0, 1, 1, 2], [0], [0]>} : vector<4x128x128xbf16>, vector<4x128x32xbf16>, vector<4x128x32xf32> -> vector<4x128x32xf32>
    %c0_24 = arith.constant 0 : index
    %c0_25 = arith.constant 0 : index
    %c0_26 = arith.constant 0 : index
    %38 = vector.load %arg11[%c0_24, %c0_25, %c0_26] : memref<4x128x32xf32, #tpu.memory_space<vmem>>, vector<4x128x32xf32>
    %39 = vector.broadcast %26 : vector<4x128x1xf32> to vector<4x128x32xf32>
    %40 = arith.mulf %39, %38 : vector<4x128x32xf32>
    %41 = arith.addf %40, %37 : vector<4x128x32xf32>
    %c0_27 = arith.constant 0 : index
    %c0_28 = arith.constant 0 : index
    %c0_29 = arith.constant 0 : index
    %42 = vector.load %arg11[%c0_27, %c0_28, %c0_29] : memref<4x128x32xf32, #tpu.memory_space<vmem>>, vector<4x128x32xf32>
    tpu.vector_store %arg11[%c0_27, %c0_28, %c0_29], %41 {strides = array<i32>} : memref<4x128x32xf32, #tpu.memory_space<vmem>>, vector<4x128x32xf32>,
    %c0_30 = arith.constant 0 : index
    %c0_31 = arith.constant 0 : index
    %c0_32 = arith.constant 0 : index
    %43 = vector.load %arg9[%c0_30, %c0_31, %c0_32] : memref<4x128x1xf32, #tpu.memory_space<vmem>>, vector<4x128x1xf32>
    tpu.vector_store %arg9[%c0_30, %c0_31, %c0_32], %24 {strides = array<i32>} : memref<4x128x1xf32, #tpu.memory_space<vmem>>, vector<4x128x1xf32>,
    %c0_i32_33 = arith.constant 0 : i32
    %44 = arith.cmpi eq, %arg3, %c0_i32_33 : i32
    %45 = arith.extui %44 : i1 to i32
    %c0_i32_34 = arith.constant 0 : i32
    %46 = arith.cmpi ne, %45, %c0_i32_34 : i32
    scf.if %46 {
      %c0_35 = arith.constant 0 : index
      %c0_36 = arith.constant 0 : index
      %c0_37 = arith.constant 0 : index
      %47 = vector.load %arg10[%c0_35, %c0_36, %c0_37] : memref<4x128x1xf32, #tpu.memory_space<vmem>>, vector<4x128x1xf32>
      %48 = tpu.reciprocal %47 {approx = true} : vector<4x128x1xf32> -> vector<4x128x1xf32>
      %c0_38 = arith.constant 0 : index
      %c0_39 = arith.constant 0 : index
      %c0_40 = arith.constant 0 : index
      %49 = vector.load %arg11[%c0_38, %c0_39, %c0_40] : memref<4x128x32xf32, #tpu.memory_space<vmem>>, vector<4x128x32xf32>
      %50 = vector.broadcast %48 : vector<4x128x1xf32> to vector<4x128x32xf32>
      %51 = arith.mulf %49, %50 : vector<4x128x32xf32>
      %c0_41 = arith.constant 0 : index
      %c0_42 = arith.constant 0 : index
      %c0_43 = arith.constant 0 : index
      %c0_44 = arith.constant 0 : index
      %52 = vector.load %arg7[%c0_41, %c0_42, %c0_43, %c0_44] : memref<1x4x128x32xf32, #tpu.memory_space<vmem>>, vector<1x4x128x32xf32>
      %53 = vector.shape_cast %52 : vector<1x4x128x32xf32> to vector<4x128x32xf32>
      %54 = vector.shape_cast %51 : vector<4x128x32xf32> to vector<1x4x128x32xf32>
      tpu.vector_store %arg7[%c0_41, %c0_42, %c0_43, %c0_44], %54 {strides = array<i32>} : memref<1x4x128x32xf32, #tpu.memory_space<vmem>>, vector<1x4x128x32xf32>,
    } else {
    }
    return
  }
  func.func @transform_0(%arg0: i32, %arg1: i32, %arg2: i32, %arg3: i32) -> (i32, i32, i32, i32) {
    %c0_i32 = arith.constant 0 : i32
    %c0_i32_0 = arith.constant 0 : i32
    return %arg0, %arg1, %arg2, %c0_i32 : i32, i32, i32, i32
  }
  func.func @transform_1(%arg0: i32, %arg1: i32, %arg2: i32, %arg3: i32) -> (i32, i32, i32, i32) {
    %c0_i32 = arith.constant 0 : i32
    %c0_i32_0 = arith.constant 0 : i32
    return %arg0, %arg1, %arg3, %c0_i32 : i32, i32, i32, i32
  }
  func.func @transform_2(%arg0: i32, %arg1: i32, %arg2: i32, %arg3: i32) -> (i32, i32, i32, i32) {
    %c0_i32 = arith.constant 0 : i32
    %c0_i32_0 = arith.constant 0 : i32
    return %arg0, %arg1, %arg3, %c0_i32 : i32, i32, i32, i32
  }
  func.func @transform_3(%arg0: i32, %arg1: i32, %arg2: i32, %arg3: i32) -> (i32, i32, i32, i32) {
    %c0_i32 = arith.constant 0 : i32
    %c0_i32_0 = arith.constant 0 : i32
    return %arg0, %arg1, %arg2, %c0_i32 : i32, i32, i32, i32
  }
}

</mosaic_0001>

<llo_original>
// kernel: tpu_custom_call.1
$region0: #{tpu_custom_call.1}
  #allocation0 [shape = 'u32[]', space=smem, size = 0x4, offset = 0x4, fixed_abs, tag = 'smem constant byte address 0x4 - core index']
  #allocation1 [shape = 'u32[72,128]{1,0:T(1,128)}', space=vmem, size = 0x9000, scoped, tag = 'internal scratch']
  #allocation2 [shape = 'bf16[4,128,32]{2,1,0:T(8,128)(2,1)}', space=vmem, size = 0x20000, scoped, tag = 'scratch operand']
  #allocation3 [shape = 'f32[4,128,1]{2,1,0:T(8,128)}', space=vmem, size = 0x40000, scoped, tag = 'scratch operand']
  #allocation4 [shape = 'f32[4,128,1]{2,1,0:T(8,128)}', space=vmem, size = 0x40000, scoped, tag = 'scratch operand']
  #allocation5 [shape = 'f32[4,128,32]{2,1,0:T(8,128)}', space=vmem, size = 0x40000, scoped, tag = 'scratch operand']
  %s0 = inlined_call_operand.vmem [shape: f32[2,4,128,32], index: 0, kind: input, shape index: {}]
  %s1 = inlined_call_operand.vmem [shape: f32[2,4,128,32], index: 1, kind: input, shape index: {}]
  %s2 = inlined_call_operand.vmem [shape: f32[2,4,128,32], index: 2, kind: input, shape index: {}]
  %s3 = inlined_call_operand.vmem [shape: f32[2,4,128,32], index: 3, kind: output, shape index: {}]
  %s4 = sld [smem:[#allocation0]]
  $region53: #{tpu_custom_call.1} parent=0
    _
  %s6 = ssub.s32 1, %s4
  %s7 = scalar_select 0, %s6, %s4
  loop: start=0, step=1, limit=4
  $region2: #{tpu_custom_call.1} parent=0 // loop_pre_header
    _
  $region3: #{tpu_custom_call.1} parent=0 // loop_header
    %s9 = sphi 0, %s13
    %p10 = scmp.ge.s32.totalorder %s9, 4
    %s16 = sphi 0, %s42
    %s17 = sphi 0, %s38
    %s18 = sphi 0, %s34
    %s19 = sphi 0, %s30
    %s20 = sphi 0, %s16
    %s21 = sphi 0, %s17
    %s22 = sphi 0, %s18
    %s23 = sphi 0, %s19
    %s24 = sphi 0, %s20
    %s25 = sphi 0, %s21
    %s26 = sphi 0, %s22
    %s27 = sphi 0, %s23
    %s49 = sphi 0, %s51
    %s52 = sphi 0, %s49
    %s53 = sphi 0, %s52
    %s69 = sphi 0, %s53
    %s79 = sphi 0, %s81
    %s82 = sphi 0, %s79
    %s83 = sphi 0, %s82
    %s99 = sphi 0, %s83
    %s109 = sphi 0, %s111
    %s112 = sphi 0, %s109
    %s113 = sphi 0, %s112
    %s129 = sphi 0, %s113
    %s139 = sphi 0, %s141
    %s142 = sphi 0, %s139
    %s143 = sphi 0, %s142
    %s159 = sphi 0, %s143
  $region4: #{tpu_custom_call.1} parent=0 // loop_header_branch
    %12 = sbr.rel (%p10) target = $region8
  $region5: #{tpu_custom_call.1} parent=0 // loop_body
    %s14 = ssub.s32 %s9, 1
    %s15 = ssub.s32 %s9, 2
    %s28 = sadd.s32 1, %s19
    %p29 = scmp.ge.s32.totalorder %s28, 1
    %s30 = scalar_select %p29, 0, %s28
    %s31 = sadd.s32 1, %s18
    %s32 = scalar_select %p29, %s31, %s18
    %p33 = scmp.ge.s32.totalorder %s32, 1
    %s34 = scalar_select %p33, 0, %s32
    %s35 = sadd.s32 1, %s17
    %s36 = scalar_select %p33, %s35, %s17
    %p37 = scmp.ge.s32.totalorder %s36, 1
    %s38 = scalar_select %p37, 0, %s36
    %s39 = sadd.s32 1, %s16
    %s40 = scalar_select %p37, %s39, %s16
    %p41 = scmp.ge.s32.totalorder %s40, 2
    %s42 = scalar_select %p41, 0, %s40
    %s43 = ssub.s32 %s16, %s42
    %s44 = ssub.s32 %s17, %s38
    %s45 = sor.u32 %s43, %s44
    %s46 = ssub.s32 %s18, %s34
    %s47 = sor.u32 %s45, %s46
    %p48 = scmp.eq.s32.totalorder %s47, 0
    %s50 = sadd.s32 %s49, 1
    %s51 = scalar_select %p48, %s49, %s50
    %p54 = pneg %p48
    %p55 = scmp.eq.s32.totalorder %s9, 1
    %p56 = por %p54, %p55
    %p57 = scmp.ne.s32.totalorder %s49, %s52
    %p58 = scmp.eq.s32.totalorder %s9, 0
    %p59 = por %p57, %p58
    %p60 = scmp.ne.s32.totalorder %s49, %s52
    %p61 = scmp.eq.s32.totalorder %s14, 1
    %p62 = por %p60, %p61
    %p63 = scmp.ne.s32.totalorder %s52, %s53
    %p64 = scmp.eq.s32.totalorder %s14, 0
    %p65 = por %p63, %p64
    %p66 = scmp.ne.s32.totalorder %s52, %s53
    %p67 = scmp.eq.s32.totalorder %s15, 1
    %p68 = por %p66, %p67
    %p70 = scmp.ne.s32.totalorder %s53, %s69
    %p71 = scmp.eq.s32.totalorder %s15, 0
    %p72 = por %p70, %p71
    %s73 = ssub.s32 %s16, %s42
    %s74 = ssub.s32 %s17, %s38
    %s75 = sor.u32 %s73, %s74
    %s76 = ssub.s32 %s19, %s30
    %s77 = sor.u32 %s75, %s76
    %p78 = scmp.eq.s32.totalorder %s77, 0
    %s80 = sadd.s32 %s79, 1
    %s81 = scalar_select %p78, %s79, %s80
    %p84 = pneg %p78
    %p85 = scmp.eq.s32.totalorder %s9, 1
    %p86 = por %p84, %p85
    %p87 = scmp.ne.s32.totalorder %s79, %s82
    %p88 = scmp.eq.s32.totalorder %s9, 0
    %p89 = por %p87, %p88
    %p90 = scmp.ne.s32.totalorder %s79, %s82
    %p91 = scmp.eq.s32.totalorder %s14, 1
    %p92 = por %p90, %p91
    %p93 = scmp.ne.s32.totalorder %s82, %s83
    %p94 = scmp.eq.s32.totalorder %s14, 0
    %p95 = por %p93, %p94
    %p96 = scmp.ne.s32.totalorder %s82, %s83
    %p97 = scmp.eq.s32.totalorder %s15, 1
    %p98 = por %p96, %p97
    %p100 = scmp.ne.s32.totalorder %s83, %s99
    %p101 = scmp.eq.s32.totalorder %s15, 0
    %p102 = por %p100, %p101
    %s103 = ssub.s32 %s16, %s42
    %s104 = ssub.s32 %s17, %s38
    %s105 = sor.u32 %s103, %s104
    %s106 = ssub.s32 %s19, %s30
    %s107 = sor.u32 %s105, %s106
    %p108 = scmp.eq.s32.totalorder %s107, 0
    %s110 = sadd.s32 %s109, 1
    %s111 = scalar_select %p108, %s109, %s110
    %p114 = pneg %p108
    %p115 = scmp.eq.s32.totalorder %s9, 1
    %p116 = por %p114, %p115
    %p117 = scmp.ne.s32.totalorder %s109, %s112
    %p118 = scmp.eq.s32.totalorder %s9, 0
    %p119 = por %p117, %p118
    %p120 = scmp.ne.s32.totalorder %s109, %s112
    %p121 = scmp.eq.s32.totalorder %s14, 1
    %p122 = por %p120, %p121
    %p123 = scmp.ne.s32.totalorder %s112, %s113
    %p124 = scmp.eq.s32.totalorder %s14, 0
    %p125 = por %p123, %p124
    %p126 = scmp.ne.s32.totalorder %s112, %s113
    %p127 = scmp.eq.s32.totalorder %s15, 1
    %p128 = por %p126, %p127
    %p130 = scmp.ne.s32.totalorder %s113, %s129
    %p131 = scmp.eq.s32.totalorder %s15, 0
    %p132 = por %p130, %p131
    %s133 = ssub.s32 %s16, %s42
    %s134 = ssub.s32 %s17, %s38
    %s135 = sor.u32 %s133, %s134
    %s136 = ssub.s32 %s18, %s34
    %s137 = sor.u32 %s135, %s136
    %p138 = scmp.eq.s32.totalorder %s137, 0
    %s140 = sadd.s32 %s139, 1
    %s141 = scalar_select %p138, %s139, %s140
    %p144 = pneg %p138
    %p145 = scmp.eq.s32.totalorder %s9, 1
    %p146 = por %p144, %p145
    %p147 = scmp.ne.s32.totalorder %s139, %s142
    %p148 = scmp.eq.s32.totalorder %s9, 0
    %p149 = por %p147, %p148
    %p150 = scmp.ne.s32.totalorder %s139, %s142
    %p151 = scmp.eq.s32.totalorder %s14, 1
    %p152 = por %p150, %p151
    %p153 = scmp.ne.s32.totalorder %s142, %s143
    %p154 = scmp.eq.s32.totalorder %s14, 0
    %p155 = por %p153, %p154
    %p156 = scmp.ne.s32.totalorder %s142, %s143
    %p157 = scmp.eq.s32.totalorder %s15, 1
    %p158 = por %p156, %p157
    %p160 = scmp.ne.s32.totalorder %s143, %s159
    %p161 = scmp.eq.s32.totalorder %s15, 0
    %p162 = por %p160, %p161
    %p163 = scmp.le.s32.totalorder 1, %s9
    %p164 = scmp.lt.s32.totalorder %s9, 3
    %p165 = pnand %p163, %p164
    %p166 = pneg %p165
    // Predicated region
    $region9: #{tpu_custom_call.1} parent=5 // pred_check
      _
    $region10: #{tpu_custom_call.1} parent=5 // pred_check_branch
      %168 = sbr.rel (%p165) target = $region12
    $region11: #{tpu_custom_call.1} parent=5 // pred_region
      %s169 = ssub.s32 %s9, 1
    $region12: #{tpu_custom_call.1} parent=5 // pred_fallthru
      _
    %p170 = scmp.lt.s32.totalorder %s9, 2
    // Predicated region
    $region13: #{tpu_custom_call.1} parent=5 // pred_check
      %p171 = pneg %p170
    $region14: #{tpu_custom_call.1} parent=5 // pred_check_branch
      %173 = sbr.rel (%p171) target = $region16
    $region15: #{tpu_custom_call.1} parent=5 // pred_region
      // Predicated region
      $region17: #{tpu_custom_call.1} parent=15 // pred_check
        %p174 = pneg %p59
      $region18: #{tpu_custom_call.1} parent=15 // pred_check_branch
        %176 = sbr.rel (%p174) target = $region20
      $region19: #{tpu_custom_call.1} parent=15 // pred_region
        %s177 = smul.u32 4, %s17
        %s178 = smul.u32 16, %s18
        %p179 = scmp.lt.s32.totalorder %s16, 1
        %s180 = scalar_select %p179, %s16, 1
        %p181 = scmp.lt.s32.totalorder %s177, 3
        %s182 = scalar_select %p181, %s177, 3
        %p183 = scmp.lt.s32.totalorder %s178, 15
        %s184 = scalar_select %p183, %s178, 15
        %s185 = smul.addr %s182, 16
        %s186 = sadd.s32 %s184, %s185
        %s187 = smul.addr %s180, 64
        %s188 = sadd.s32 %s186, %s187
        %s189 = smul.addr %s188, 8
        %s190 = scalar_lea.vmem %s0, %s189
        %s191 = smul.u32 4, %s17
        %s192 = smul.u32 16, %s18
      $region20: #{tpu_custom_call.1} parent=15 // pred_fallthru
        _
      // Predicated region
      $region21: #{tpu_custom_call.1} parent=15 // pred_check
        %p193 = pneg %p89
      $region22: #{tpu_custom_call.1} parent=15 // pred_check_branch
        %195 = sbr.rel (%p193) target = $region24
      $region23: #{tpu_custom_call.1} parent=15 // pred_region
        %s196 = smul.u32 4, %s17
        %s197 = smul.u32 16, %s19
        %p198 = scmp.lt.s32.totalorder %s16, 1
        %s199 = scalar_select %p198, %s16, 1
        %p200 = scmp.lt.s32.totalorder %s196, 3
        %s201 = scalar_select %p200, %s196, 3
        %p202 = scmp.lt.s32.totalorder %s197, 15
        %s203 = scalar_select %p202, %s197, 15
        %s204 = smul.addr %s201, 16
        %s205 = sadd.s32 %s203, %s204
        %s206 = smul.addr %s199, 64
        %s207 = sadd.s32 %s205, %s206
        %s208 = smul.addr %s207, 8
        %s209 = scalar_lea.vmem %s1, %s208
        %s210 = smul.u32 4, %s17
        %s211 = smul.u32 16, %s19
      $region24: #{tpu_custom_call.1} parent=15 // pred_fallthru
        _
      // Predicated region
      $region25: #{tpu_custom_call.1} parent=15 // pred_check
        %p212 = pneg %p119
      $region26: #{tpu_custom_call.1} parent=15 // pred_check_branch
        %214 = sbr.rel (%p212) target = $region28
      $region27: #{tpu_custom_call.1} parent=15 // pred_region
        %s215 = smul.u32 4, %s17
        %s216 = smul.u32 16, %s19
        %p217 = scmp.lt.s32.totalorder %s16, 1
        %s218 = scalar_select %p217, %s16, 1
        %p219 = scmp.lt.s32.totalorder %s215, 3
        %s220 = scalar_select %p219, %s215, 3
        %p221 = scmp.lt.s32.totalorder %s216, 15
        %s222 = scalar_select %p221, %s216, 15
        %s223 = smul.addr %s220, 16
        %s224 = sadd.s32 %s222, %s223
        %s225 = smul.addr %s218, 64
        %s226 = sadd.s32 %s224, %s225
        %s227 = smul.addr %s226, 8
        %s228 = scalar_lea.vmem %s2, %s227
        %s229 = smul.u32 4, %s17
        %s230 = smul.u32 16, %s19
      $region28: #{tpu_custom_call.1} parent=15 // pred_fallthru
        _
    $region16: #{tpu_custom_call.1} parent=5 // pred_fallthru
      _
    %p231 = scmp.le.s32.totalorder 1, %s9
    %p232 = scmp.lt.s32.totalorder %s9, 3
    %p233 = pnand %p231, %p232
    %p234 = pneg %p233
    // Predicated region
    $region29: #{tpu_custom_call.1} parent=5 // pred_check
      _
    $region30: #{tpu_custom_call.1} parent=5 // pred_check_branch
      %236 = sbr.rel (%p233) target = $region32
    $region31: #{tpu_custom_call.1} parent=5 // pred_region
      %s237 = ssub.s32 %s9, 1
      %s238 = smul.u32 4, %s21
      %s239 = smul.u32 16, %s22
      %p240 = scmp.lt.s32.totalorder %s20, 1
      %s241 = scalar_select %p240, %s20, 1
      %p242 = scmp.lt.s32.totalorder %s238, 3
      %s243 = scalar_select %p242, %s238, 3
      %p244 = scmp.lt.s32.totalorder %s239, 15
      %s245 = scalar_select %p244, %s239, 15
      %s246 = smul.addr %s243, 16
      %s247 = sadd.s32 %s245, %s246
      %s248 = smul.addr %s241, 64
      %s249 = sadd.s32 %s247, %s248
      %s250 = smul.addr %s249, 8
      %s251 = scalar_lea.vmem %s0, %s250
      %p252 = pneg %p65
      %p253 = pneg %p62
      %s254 = smul.u32 4, %s21
      %s255 = smul.u32 16, %s23
      %p256 = scmp.lt.s32.totalorder %s20, 1
      %s257 = scalar_select %p256, %s20, 1
      %p258 = scmp.lt.s32.totalorder %s254, 3
      %s259 = scalar_select %p258, %s254, 3
      %p260 = scmp.lt.s32.totalorder %s255, 15
      %s261 = scalar_select %p260, %s255, 15
      %s262 = smul.addr %s259, 16
      %s263 = sadd.s32 %s261, %s262
      %s264 = smul.addr %s257, 64
      %s265 = sadd.s32 %s263, %s264
      %s266 = smul.addr %s265, 8
      %s267 = scalar_lea.vmem %s1, %s266
      %p268 = pneg %p95
      %p269 = pneg %p92
      %s270 = smul.u32 4, %s21
      %s271 = smul.u32 16, %s23
      %p272 = scmp.lt.s32.totalorder %s20, 1
      %s273 = scalar_select %p272, %s20, 1
      %p274 = scmp.lt.s32.totalorder %s270, 3
      %s275 = scalar_select %p274, %s270, 3
      %p276 = scmp.lt.s32.totalorder %s271, 15
      %s277 = scalar_select %p276, %s271, 15
      %s278 = smul.addr %s275, 16
      %s279 = sadd.s32 %s277, %s278
      %s280 = smul.addr %s273, 64
      %s281 = sadd.s32 %s279, %s280
      %s282 = smul.addr %s281, 8
      %s283 = scalar_lea.vmem %s2, %s282
      %p284 = pneg %p125
      %p285 = pneg %p122
      %p286 = pneg %p155
      %p287 = pneg %p152
      %s288 = smul.u32 4, %s21
      %s289 = smul.u32 16, %s22
      %p290 = scmp.lt.s32.totalorder %s20, 1
      %s291 = scalar_select %p290, %s20, 1
      %p292 = scmp.lt.s32.totalorder %s288, 3
      %s293 = scalar_select %p292, %s288, 3
      %p294 = scmp.lt.s32.totalorder %s289, 15
      %s295 = scalar_select %p294, %s289, 15
      %s296 = smul.addr %s293, 16
      %s297 = sadd.s32 %s295, %s296
      %s298 = smul.addr %s291, 64
      %s299 = sadd.s32 %s297, %s298
      %s300 = smul.addr %s299, 8
      %s301 = scalar_lea.vmem %s3, %s300
      %s302 = smul.u32 4, %s21
      %s303 = smul.u32 16, %s22
      %p304 = scmp.lt.s32.totalorder %s20, 1
      %s305 = scalar_select %p304, %s20, 1
      %p306 = scmp.lt.s32.totalorder %s302, 3
      %s307 = scalar_select %p306, %s302, 3
      %p308 = scmp.lt.s32.totalorder %s303, 15
      %s309 = scalar_select %p308, %s303, 15
      %s310 = smul.addr %s307, 16
      %s311 = sadd.s32 %s309, %s310
      %s312 = smul.addr %s305, 64
      %s313 = sadd.s32 %s311, %s312
      %s314 = smul.addr %s313, 8
      %s315 = scalar_lea.vmem %s0, %s314
      %s316 = smul.u32 4, %s21
      %s317 = smul.u32 16, %s22
      %s318 = smul.u32 4, %s21
      %s319 = smul.u32 16, %s23
      %p320 = scmp.lt.s32.totalorder %s20, 1
      %s321 = scalar_select %p320, %s20, 1
      %p322 = scmp.lt.s32.totalorder %s318, 3
      %s323 = scalar_select %p322, %s318, 3
      %p324 = scmp.lt.s32.totalorder %s319, 15
      %s325 = scalar_select %p324, %s319, 15
      %s326 = smul.addr %s323, 16
      %s327 = sadd.s32 %s325, %s326
      %s328 = smul.addr %s321, 64
      %s329 = sadd.s32 %s327, %s328
      %s330 = smul.addr %s329, 8
      %s331 = scalar_lea.vmem %s1, %s330
      %s332 = smul.u32 4, %s21
      %s333 = smul.u32 16, %s23
      %s334 = smul.u32 4, %s21
      %s335 = smul.u32 16, %s23
      %p336 = scmp.lt.s32.totalorder %s20, 1
      %s337 = scalar_select %p336, %s20, 1
      %p338 = scmp.lt.s32.totalorder %s334, 3
      %s339 = scalar_select %p338, %s334, 3
      %p340 = scmp.lt.s32.totalorder %s335, 15
      %s341 = scalar_select %p340, %s335, 15
      %s342 = smul.addr %s339, 16
      %s343 = sadd.s32 %s341, %s342
      %s344 = smul.addr %s337, 64
      %s345 = sadd.s32 %s343, %s344
      %s346 = smul.addr %s345, 8
      %s347 = scalar_lea.vmem %s2, %s346
      %s348 = smul.u32 4, %s21
      %s349 = smul.u32 16, %s23
      %s350 = smul.u32 4, %s21
      %s351 = smul.u32 16, %s22
      %p352 = scmp.lt.s32.totalorder %s20, 1
      %s353 = scalar_select %p352, %s20, 1
      %p354 = scmp.lt.s32.totalorder %s350, 3
      %s355 = scalar_select %p354, %s350, 3
      %p356 = scmp.lt.s32.totalorder %s351, 15
      %s357 = scalar_select %p356, %s351, 15
      %s358 = smul.addr %s355, 16
      %s359 = sadd.s32 %s357, %s358
      %s360 = smul.addr %s353, 64
      %s361 = sadd.s32 %s359, %s360
      %s362 = smul.addr %s361, 8
      %s363 = scalar_lea.vmem %s3, %s362
      %s364 = smul.u32 4, %s21
      %s365 = smul.u32 16, %s22
      %p366 = scmp.eq.s32.totalorder %s23, 0
      // Predicated region
      $region33: #{tpu_custom_call.1} parent=31 // pred_check
        %p367 = pneg %p366
      $region34: #{tpu_custom_call.1} parent=31 // pred_check_branch
        %369 = sbr.rel (%p367) target = $region36
      $region35: #{tpu_custom_call.1} parent=31 // pred_region
        %v370 = vld [vmem:[%s315] sm:$0xff]
        %v371 = vld [vmem:[%s315 + $0x8] sm:$0xff]
        %v372 = vld [vmem:[%s315 + $0x10] sm:$0xff]
        %v373 = vld [vmem:[%s315 + $0x18] sm:$0xff]
        %v374 = vld [vmem:[%s315 + $0x20] sm:$0xff]
        %v375 = vld [vmem:[%s315 + $0x28] sm:$0xff]
        %v376 = vld [vmem:[%s315 + $0x30] sm:$0xff]
        %v377 = vld [vmem:[%s315 + $0x38] sm:$0xff]
        %v378 = vld [vmem:[%s315 + $0x40] sm:$0xff]
        %v379 = vld [vmem:[%s315 + $0x48] sm:$0xff]
        %v380 = vld [vmem:[%s315 + $0x50] sm:$0xff]
        %v381 = vld [vmem:[%s315 + $0x58] sm:$0xff]
        %v382 = vld [vmem:[%s315 + $0x60] sm:$0xff]
        %v383 = vld [vmem:[%s315 + $0x68] sm:$0xff]
        %v384 = vld [vmem:[%s315 + $0x70] sm:$0xff]
        %v385 = vld [vmem:[%s315 + $0x78] sm:$0xff]
        %v386 = vld [vmem:[%s315 + $0x80] sm:$0xff]
        %v387 = vld [vmem:[%s315 + $0x88] sm:$0xff]
        %v388 = vld [vmem:[%s315 + $0x90] sm:$0xff]
        %v389 = vld [vmem:[%s315 + $0x98] sm:$0xff]
        %v390 = vld [vmem:[%s315 + $0xa0] sm:$0xff]
        %v391 = vld [vmem:[%s315 + $0xa8] sm:$0xff]
        %v392 = vld [vmem:[%s315 + $0xb0] sm:$0xff]
        %v393 = vld [vmem:[%s315 + $0xb8] sm:$0xff]
        %v394 = vld [vmem:[%s315 + $0xc0] sm:$0xff]
        %v395 = vld [vmem:[%s315 + $0xc8] sm:$0xff]
        %v396 = vld [vmem:[%s315 + $0xd0] sm:$0xff]
        %v397 = vld [vmem:[%s315 + $0xd8] sm:$0xff]
        %v398 = vld [vmem:[%s315 + $0xe0] sm:$0xff]
        %v399 = vld [vmem:[%s315 + $0xe8] sm:$0xff]
        %v400 = vld [vmem:[%s315 + $0xf0] sm:$0xff]
        %v401 = vld [vmem:[%s315 + $0xf8] sm:$0xff]
        %v402 = vld [vmem:[%s315 + $0x100] sm:$0xff]
        %v403 = vld [vmem:[%s315 + $0x108] sm:$0xff]
        %v404 = vld [vmem:[%s315 + $0x110] sm:$0xff]
        %v405 = vld [vmem:[%s315 + $0x118] sm:$0xff]
        %v406 = vld [vmem:[%s315 + $0x120] sm:$0xff]
        %v407 = vld [vmem:[%s315 + $0x128] sm:$0xff]
        %v408 = vld [vmem:[%s315 + $0x130] sm:$0xff]
        %v409 = vld [vmem:[%s315 + $0x138] sm:$0xff]
        %v410 = vld [vmem:[%s315 + $0x140] sm:$0xff]
        %v411 = vld [vmem:[%s315 + $0x148] sm:$0xff]
        %v412 = vld [vmem:[%s315 + $0x150] sm:$0xff]
        %v413 = vld [vmem:[%s315 + $0x158] sm:$0xff]
        %v414 = vld [vmem:[%s315 + $0x160] sm:$0xff]
        %v415 = vld [vmem:[%s315 + $0x168] sm:$0xff]
        %v416 = vld [vmem:[%s315 + $0x170] sm:$0xff]
        %v417 = vld [vmem:[%s315 + $0x178] sm:$0xff]
        %v418 = vld [vmem:[%s315 + $0x180] sm:$0xff]
        %v419 = vld [vmem:[%s315 + $0x188] sm:$0xff]
        %v420 = vld [vmem:[%s315 + $0x190] sm:$0xff]
        %v421 = vld [vmem:[%s315 + $0x198] sm:$0xff]
        %v422 = vld [vmem:[%s315 + $0x1a0] sm:$0xff]
        %v423 = vld [vmem:[%s315 + $0x1a8] sm:$0xff]
        %v424 = vld [vmem:[%s315 + $0x1b0] sm:$0xff]
        %v425 = vld [vmem:[%s315 + $0x1b8] sm:$0xff]
        %v426 = vld [vmem:[%s315 + $0x1c0] sm:$0xff]
        %v427 = vld [vmem:[%s315 + $0x1c8] sm:$0xff]
        %v428 = vld [vmem:[%s315 + $0x1d0] sm:$0xff]
        %v429 = vld [vmem:[%s315 + $0x1d8] sm:$0xff]
        %v430 = vld [vmem:[%s315 + $0x1e0] sm:$0xff]
        %v431 = vld [vmem:[%s315 + $0x1e8] sm:$0xff]
        %v432 = vld [vmem:[%s315 + $0x1f0] sm:$0xff]
        %v433 = vld [vmem:[%s315 + $0x1f8] sm:$0xff]
        %v434 = vmul.f32 %v370, 0.17677669
        %v435 = vmul.f32 %v371, 0.17677669
        %v436 = vmul.f32 %v372, 0.17677669
        %v437 = vmul.f32 %v373, 0.17677669
        %v438 = vmul.f32 %v374, 0.17677669
        %v439 = vmul.f32 %v375, 0.17677669
        %v440 = vmul.f32 %v376, 0.17677669
        %v441 = vmul.f32 %v377, 0.17677669
        %v442 = vmul.f32 %v378, 0.17677669
        %v443 = vmul.f32 %v379, 0.17677669
        %v444 = vmul.f32 %v380, 0.17677669
        %v445 = vmul.f32 %v381, 0.17677669
        %v446 = vmul.f32 %v382, 0.17677669
        %v447 = vmul.f32 %v383, 0.17677669
        %v448 = vmul.f32 %v384, 0.17677669
        %v449 = vmul.f32 %v385, 0.17677669
        %v450 = vmul.f32 %v386, 0.17677669
        %v451 = vmul.f32 %v387, 0.17677669
        %v452 = vmul.f32 %v388, 0.17677669
        %v453 = vmul.f32 %v389, 0.17677669
        %v454 = vmul.f32 %v390, 0.17677669
        %v455 = vmul.f32 %v391, 0.17677669
        %v456 = vmul.f32 %v392, 0.17677669
        %v457 = vmul.f32 %v393, 0.17677669
        %v458 = vmul.f32 %v394, 0.17677669
        %v459 = vmul.f32 %v395, 0.17677669
        %v460 = vmul.f32 %v396, 0.17677669
        %v461 = vmul.f32 %v397, 0.17677669
        %v462 = vmul.f32 %v398, 0.17677669
        %v463 = vmul.f32 %v399, 0.17677669
        %v464 = vmul.f32 %v400, 0.17677669
        %v465 = vmul.f32 %v401, 0.17677669
        %v466 = vmul.f32 %v402, 0.17677669
        %v467 = vmul.f32 %v403, 0.17677669
        %v468 = vmul.f32 %v404, 0.17677669
        %v469 = vmul.f32 %v405, 0.17677669
        %v470 = vmul.f32 %v406, 0.17677669
        %v471 = vmul.f32 %v407, 0.17677669
        %v472 = vmul.f32 %v408, 0.17677669
        %v473 = vmul.f32 %v409, 0.17677669
        %v474 = vmul.f32 %v410, 0.17677669
        %v475 = vmul.f32 %v411, 0.17677669
        %v476 = vmul.f32 %v412, 0.17677669
        %v477 = vmul.f32 %v413, 0.17677669
        %v478 = vmul.f32 %v414, 0.17677669
        %v479 = vmul.f32 %v415, 0.17677669
        %v480 = vmul.f32 %v416, 0.17677669
        %v481 = vmul.f32 %v417, 0.17677669
        %v482 = vmul.f32 %v418, 0.17677669
        %v483 = vmul.f32 %v419, 0.17677669
        %v484 = vmul.f32 %v420, 0.17677669
        %v485 = vmul.f32 %v421, 0.17677669
        %v486 = vmul.f32 %v422, 0.17677669
        %v487 = vmul.f32 %v423, 0.17677669
        %v488 = vmul.f32 %v424, 0.17677669
        %v489 = vmul.f32 %v425, 0.17677669
        %v490 = vmul.f32 %v426, 0.17677669
        %v491 = vmul.f32 %v427, 0.17677669
        %v492 = vmul.f32 %v428, 0.17677669
        %v493 = vmul.f32 %v429, 0.17677669
        %v494 = vmul.f32 %v430, 0.17677669
        %v495 = vmul.f32 %v431, 0.17677669
        %v496 = vmul.f32 %v432, 0.17677669
        %v497 = vmul.f32 %v433, 0.17677669
        %v498 = vpack.c.bf16 %v434, %v434
        %v499 = vpack.c.bf16 %v435, %v435
        %v500 = vpack.c.bf16 %v436, %v436
        %v501 = vpack.c.bf16 %v437, %v437
        %v502 = vpack.c.bf16 %v438, %v438
        %v503 = vpack.c.bf16 %v439, %v439
        %v504 = vpack.c.bf16 %v440, %v440
        %v505 = vpack.c.bf16 %v441, %v441
        %v506 = vpack.c.bf16 %v442, %v442
        %v507 = vpack.c.bf16 %v443, %v443
        %v508 = vpack.c.bf16 %v444, %v444
        %v509 = vpack.c.bf16 %v445, %v445
        %v510 = vpack.c.bf16 %v446, %v446
        %v511 = vpack.c.bf16 %v447, %v447
        %v512 = vpack.c.bf16 %v448, %v448
        %v513 = vpack.c.bf16 %v449, %v449
        %v514 = vpack.c.bf16 %v450, %v450
        %v515 = vpack.c.bf16 %v451, %v451
        %v516 = vpack.c.bf16 %v452, %v452
        %v517 = vpack.c.bf16 %v453, %v453
        %v518 = vpack.c.bf16 %v454, %v454
        %v519 = vpack.c.bf16 %v455, %v455
        %v520 = vpack.c.bf16 %v456, %v456
        %v521 = vpack.c.bf16 %v457, %v457
        %v522 = vpack.c.bf16 %v458, %v458
        %v523 = vpack.c.bf16 %v459, %v459
        %v524 = vpack.c.bf16 %v460, %v460
        %v525 = vpack.c.bf16 %v461, %v461
        %v526 = vpack.c.bf16 %v462, %v462
        %v527 = vpack.c.bf16 %v463, %v463
        %v528 = vpack.c.bf16 %v464, %v464
        %v529 = vpack.c.bf16 %v465, %v465
        %v530 = vpack.c.bf16 %v466, %v466
        %v531 = vpack.c.bf16 %v467, %v467
        %v532 = vpack.c.bf16 %v468, %v468
        %v533 = vpack.c.bf16 %v469, %v469
        %v534 = vpack.c.bf16 %v470, %v470
        %v535 = vpack.c.bf16 %v471, %v471
        %v536 = vpack.c.bf16 %v472, %v472
        %v537 = vpack.c.bf16 %v473, %v473
        %v538 = vpack.c.bf16 %v474, %v474
        %v539 = vpack.c.bf16 %v475, %v475
        %v540 = vpack.c.bf16 %v476, %v476
        %v541 = vpack.c.bf16 %v477, %v477
        %v542 = vpack.c.bf16 %v478, %v478
        %v543 = vpack.c.bf16 %v479, %v479
        %v544 = vpack.c.bf16 %v480, %v480
        %v545 = vpack.c.bf16 %v481, %v481
        %v546 = vpack.c.bf16 %v482, %v482
        %v547 = vpack.c.bf16 %v483, %v483
        %v548 = vpack.c.bf16 %v484, %v484
        %v549 = vpack.c.bf16 %v485, %v485
        %v550 = vpack.c.bf16 %v486, %v486
        %v551 = vpack.c.bf16 %v487, %v487
        %v552 = vpack.c.bf16 %v488, %v488
        %v553 = vpack.c.bf16 %v489, %v489
        %v554 = vpack.c.bf16 %v490, %v490
        %v555 = vpack.c.bf16 %v491, %v491
        %v556 = vpack.c.bf16 %v492, %v492
        %v557 = vpack.c.bf16 %v493, %v493
        %v558 = vpack.c.bf16 %v494, %v494
        %v559 = vpack.c.bf16 %v495, %v495
        %v560 = vpack.c.bf16 %v496, %v496
        %v561 = vpack.c.bf16 %v497, %v497
        %vm562 = vcmask 257024
        %563 = vst.msk [vmem:[#allocation2] sm:$0xf] %vm562, %v498
        %564 = vst.msk [vmem:[#allocation2 + $0x4] sm:$0xf] %vm562, %v499
        %565 = vst.msk [vmem:[#allocation2 + $0x8] sm:$0xf] %vm562, %v500
        %566 = vst.msk [vmem:[#allocation2 + $0xc] sm:$0xf] %vm562, %v501
        %567 = vst.msk [vmem:[#allocation2 + $0x10] sm:$0xf] %vm562, %v502
        %568 = vst.msk [vmem:[#allocation2 + $0x14] sm:$0xf] %vm562, %v503
        %569 = vst.msk [vmem:[#allocation2 + $0x18] sm:$0xf] %vm562, %v504
        %570 = vst.msk [vmem:[#allocation2 + $0x1c] sm:$0xf] %vm562, %v505
        %571 = vst.msk [vmem:[#allocation2 + $0x20] sm:$0xf] %vm562, %v506
        %572 = vst.msk [vmem:[#allocation2 + $0x24] sm:$0xf] %vm562, %v507
        %573 = vst.msk [vmem:[#allocation2 + $0x28] sm:$0xf] %vm562, %v508
        %574 = vst.msk [vmem:[#allocation2 + $0x2c] sm:$0xf] %vm562, %v509
        %575 = vst.msk [vmem:[#allocation2 + $0x30] sm:$0xf] %vm562, %v510
        %576 = vst.msk [vmem:[#allocation2 + $0x34] sm:$0xf] %vm562, %v511
        %577 = vst.msk [vmem:[#allocation2 + $0x38] sm:$0xf] %vm562, %v512
        %578 = vst.msk [vmem:[#allocation2 + $0x3c] sm:$0xf] %vm562, %v513
        %579 = vst.msk [vmem:[#allocation2 + $0x40] sm:$0xf] %vm562, %v514
        %580 = vst.msk [vmem:[#allocation2 + $0x44] sm:$0xf] %vm562, %v515
        %581 = vst.msk [vmem:[#allocation2 + $0x48] sm:$0xf] %vm562, %v516
        %582 = vst.msk [vmem:[#allocation2 + $0x4c] sm:$0xf] %vm562, %v517
        %583 = vst.msk [vmem:[#allocation2 + $0x50] sm:$0xf] %vm562, %v518
        %584 = vst.msk [vmem:[#allocation2 + $0x54] sm:$0xf] %vm562, %v519
        %585 = vst.msk [vmem:[#allocation2 + $0x58] sm:$0xf] %vm562, %v520
        %586 = vst.msk [vmem:[#allocation2 + $0x5c] sm:$0xf] %vm562, %v521
        %587 = vst.msk [vmem:[#allocation2 + $0x60] sm:$0xf] %vm562, %v522
        %588 = vst.msk [vmem:[#allocation2 + $0x64] sm:$0xf] %vm562, %v523
        %589 = vst.msk [vmem:[#allocation2 + $0x68] sm:$0xf] %vm562, %v524
        %590 = vst.msk [vmem:[#allocation2 + $0x6c] sm:$0xf] %vm562, %v525
        %591 = vst.msk [vmem:[#allocation2 + $0x70] sm:$0xf] %vm562, %v526
        %592 = vst.msk [vmem:[#allocation2 + $0x74] sm:$0xf] %vm562, %v527
        %593 = vst.msk [vmem:[#allocation2 + $0x78] sm:$0xf] %vm562, %v528
        %594 = vst.msk [vmem:[#allocation2 + $0x7c] sm:$0xf] %vm562, %v529
        %595 = vst.msk [vmem:[#allocation2 + $0x80] sm:$0xf] %vm562, %v530
        %596 = vst.msk [vmem:[#allocation2 + $0x84] sm:$0xf] %vm562, %v531
        %597 = vst.msk [vmem:[#allocation2 + $0x88] sm:$0xf] %vm562, %v532
        %598 = vst.msk [vmem:[#allocation2 + $0x8c] sm:$0xf] %vm562, %v533
        %599 = vst.msk [vmem:[#allocation2 + $0x90] sm:$0xf] %vm562, %v534
        %600 = vst.msk [vmem:[#allocation2 + $0x94] sm:$0xf] %vm562, %v535
        %601 = vst.msk [vmem:[#allocation2 + $0x98] sm:$0xf] %vm562, %v536
        %602 = vst.msk [vmem:[#allocation2 + $0x9c] sm:$0xf] %vm562, %v537
        %603 = vst.msk [vmem:[#allocation2 + $0xa0] sm:$0xf] %vm562, %v538
        %604 = vst.msk [vmem:[#allocation2 + $0xa4] sm:$0xf] %vm562, %v539
        %605 = vst.msk [vmem:[#allocation2 + $0xa8] sm:$0xf] %vm562, %v540
        %606 = vst.msk [vmem:[#allocation2 + $0xac] sm:$0xf] %vm562, %v541
        %607 = vst.msk [vmem:[#allocation2 + $0xb0] sm:$0xf] %vm562, %v542
        %608 = vst.msk [vmem:[#allocation2 + $0xb4] sm:$0xf] %vm562, %v543
        %609 = vst.msk [vmem:[#allocation2 + $0xb8] sm:$0xf] %vm562, %v544
        %610 = vst.msk [vmem:[#allocation2 + $0xbc] sm:$0xf] %vm562, %v545
        %611 = vst.msk [vmem:[#allocation2 + $0xc0] sm:$0xf] %vm562, %v546
        %612 = vst.msk [vmem:[#allocation2 + $0xc4] sm:$0xf] %vm562, %v547
        %613 = vst.msk [vmem:[#allocation2 + $0xc8] sm:$0xf] %vm562, %v548
        %614 = vst.msk [vmem:[#allocation2 + $0xcc] sm:$0xf] %vm562, %v549
        %615 = vst.msk [vmem:[#allocation2 + $0xd0] sm:$0xf] %vm562, %v550
        %616 = vst.msk [vmem:[#allocation2 + $0xd4] sm:$0xf] %vm562, %v551
        %617 = vst.msk [vmem:[#allocation2 + $0xd8] sm:$0xf] %vm562, %v552
        %618 = vst.msk [vmem:[#allocation2 + $0xdc] sm:$0xf] %vm562, %v553
        %619 = vst.msk [vmem:[#allocation2 + $0xe0] sm:$0xf] %vm562, %v554
        %620 = vst.msk [vmem:[#allocation2 + $0xe4] sm:$0xf] %vm562, %v555
        %621 = vst.msk [vmem:[#allocation2 + $0xe8] sm:$0xf] %vm562, %v556
        %622 = vst.msk [vmem:[#allocation2 + $0xec] sm:$0xf] %vm562, %v557
        %623 = vst.msk [vmem:[#allocation2 + $0xf0] sm:$0xf] %vm562, %v558
        %624 = vst.msk [vmem:[#allocation2 + $0xf4] sm:$0xf] %vm562, %v559
        %625 = vst.msk [vmem:[#allocation2 + $0xf8] sm:$0xf] %vm562, %v560
        %626 = vst.msk [vmem:[#allocation2 + $0xfc] sm:$0xf] %vm562, %v561
        %vm627 = vcmask 7168
        %628 = vst.msk [vmem:[#allocation3] sm:$0xff] %vm627, -inf
        %629 = vst.msk [vmem:[#allocation3 + $0x8] sm:$0xff] %vm627, -inf
        %630 = vst.msk [vmem:[#allocation3 + $0x10] sm:$0xff] %vm627, -inf
        %631 = vst.msk [vmem:[#allocation3 + $0x18] sm:$0xff] %vm627, -inf
        %632 = vst.msk [vmem:[#allocation3 + $0x20] sm:$0xff] %vm627, -inf
        %633 = vst.msk [vmem:[#allocation3 + $0x28] sm:$0xff] %vm627, -inf
        %634 = vst.msk [vmem:[#allocation3 + $0x30] sm:$0xff] %vm627, -inf
        %635 = vst.msk [vmem:[#allocation3 + $0x38] sm:$0xff] %vm627, -inf
        %636 = vst.msk [vmem:[#allocation3 + $0x40] sm:$0xff] %vm627, -inf
        %637 = vst.msk [vmem:[#allocation3 + $0x48] sm:$0xff] %vm627, -inf
        %638 = vst.msk [vmem:[#allocation3 + $0x50] sm:$0xff] %vm627, -inf
        %639 = vst.msk [vmem:[#allocation3 + $0x58] sm:$0xff] %vm627, -inf
        %640 = vst.msk [vmem:[#allocation3 + $0x60] sm:$0xff] %vm627, -inf
        %641 = vst.msk [vmem:[#allocation3 + $0x68] sm:$0xff] %vm627, -inf
        %642 = vst.msk [vmem:[#allocation3 + $0x70] sm:$0xff] %vm627, -inf
        %643 = vst.msk [vmem:[#allocation3 + $0x78] sm:$0xff] %vm627, -inf
        %644 = vst.msk [vmem:[#allocation3 + $0x80] sm:$0xff] %vm627, -inf
        %645 = vst.msk [vmem:[#allocation3 + $0x88] sm:$0xff] %vm627, -inf
        %646 = vst.msk [vmem:[#allocation3 + $0x90] sm:$0xff] %vm627, -inf
        %647 = vst.msk [vmem:[#allocation3 + $0x98] sm:$0xff] %vm627, -inf
        %648 = vst.msk [vmem:[#allocation3 + $0xa0] sm:$0xff] %vm627, -inf
        %649 = vst.msk [vmem:[#allocation3 + $0xa8] sm:$0xff] %vm627, -inf
        %650 = vst.msk [vmem:[#allocation3 + $0xb0] sm:$0xff] %vm627, -inf
        %651 = vst.msk [vmem:[#allocation3 + $0xb8] sm:$0xff] %vm627, -inf
        %652 = vst.msk [vmem:[#allocation3 + $0xc0] sm:$0xff] %vm627, -inf
        %653 = vst.msk [vmem:[#allocation3 + $0xc8] sm:$0xff] %vm627, -inf
        %654 = vst.msk [vmem:[#allocation3 + $0xd0] sm:$0xff] %vm627, -inf
        %655 = vst.msk [vmem:[#allocation3 + $0xd8] sm:$0xff] %vm627, -inf
        %656 = vst.msk [vmem:[#allocation3 + $0xe0] sm:$0xff] %vm627, -inf
        %657 = vst.msk [vmem:[#allocation3 + $0xe8] sm:$0xff] %vm627, -inf
        %658 = vst.msk [vmem:[#allocation3 + $0xf0] sm:$0xff] %vm627, -inf
        %659 = vst.msk [vmem:[#allocation3 + $0xf8] sm:$0xff] %vm627, -inf
        %660 = vst.msk [vmem:[#allocation3 + $0x100] sm:$0xff] %vm627, -inf
        %661 = vst.msk [vmem:[#allocation3 + $0x108] sm:$0xff] %vm627, -inf
        %662 = vst.msk [vmem:[#allocation3 + $0x110] sm:$0xff] %vm627, -inf
        %663 = vst.msk [vmem:[#allocation3 + $0x118] sm:$0xff] %vm627, -inf
        %664 = vst.msk [vmem:[#allocation3 + $0x120] sm:$0xff] %vm627, -inf
        %665 = vst.msk [vmem:[#allocation3 + $0x128] sm:$0xff] %vm627, -inf
        %666 = vst.msk [vmem:[#allocation3 + $0x130] sm:$0xff] %vm627, -inf
        %667 = vst.msk [vmem:[#allocation3 + $0x138] sm:$0xff] %vm627, -inf
        %668 = vst.msk [vmem:[#allocation3 + $0x140] sm:$0xff] %vm627, -inf
        %669 = vst.msk [vmem:[#allocation3 + $0x148] sm:$0xff] %vm627, -inf
        %670 = vst.msk [vmem:[#allocation3 + $0x150] sm:$0xff] %vm627, -inf
        %671 = vst.msk [vmem:[#allocation3 + $0x158] sm:$0xff] %vm627, -inf
        %672 = vst.msk [vmem:[#allocation3 + $0x160] sm:$0xff] %vm627, -inf
        %673 = vst.msk [vmem:[#allocation3 + $0x168] sm:$0xff] %vm627, -inf
        %674 = vst.msk [vmem:[#allocation3 + $0x170] sm:$0xff] %vm627, -inf
        %675 = vst.msk [vmem:[#allocation3 + $0x178] sm:$0xff] %vm627, -inf
        %676 = vst.msk [vmem:[#allocation3 + $0x180] sm:$0xff] %vm627, -inf
        %677 = vst.msk [vmem:[#allocation3 + $0x188] sm:$0xff] %vm627, -inf
        %678 = vst.msk [vmem:[#allocation3 + $0x190] sm:$0xff] %vm627, -inf
        %679 = vst.msk [vmem:[#allocation3 + $0x198] sm:$0xff] %vm627, -inf
        %680 = vst.msk [vmem:[#allocation3 + $0x1a0] sm:$0xff] %vm627, -inf
        %681 = vst.msk [vmem:[#allocation3 + $0x1a8] sm:$0xff] %vm627, -inf
        %682 = vst.msk [vmem:[#allocation3 + $0x1b0] sm:$0xff] %vm627, -inf
        %683 = vst.msk [vmem:[#allocation3 + $0x1b8] sm:$0xff] %vm627, -inf
        %684 = vst.msk [vmem:[#allocation3 + $0x1c0] sm:$0xff] %vm627, -inf
        %685 = vst.msk [vmem:[#allocation3 + $0x1c8] sm:$0xff] %vm627, -inf
        %686 = vst.msk [vmem:[#allocation3 + $0x1d0] sm:$0xff] %vm627, -inf
        %687 = vst.msk [vmem:[#allocation3 + $0x1d8] sm:$0xff] %vm627, -inf
        %688 = vst.msk [vmem:[#allocation3 + $0x1e0] sm:$0xff] %vm627, -inf
        %689 = vst.msk [vmem:[#allocation3 + $0x1e8] sm:$0xff] %vm627, -inf
        %690 = vst.msk [vmem:[#allocation3 + $0x1f0] sm:$0xff] %vm627, -inf
        %691 = vst.msk [vmem:[#allocation3 + $0x1f8] sm:$0xff] %vm627, -inf
        %692 = vst.msk [vmem:[#allocation4] sm:$0xff] %vm627, 0.0
        %693 = vst.msk [vmem:[#allocation4 + $0x8] sm:$0xff] %vm627, 0.0
        %694 = vst.msk [vmem:[#allocation4 + $0x10] sm:$0xff] %vm627, 0.0
        %695 = vst.msk [vmem:[#allocation4 + $0x18] sm:$0xff] %vm627, 0.0
        %696 = vst.msk [vmem:[#allocation4 + $0x20] sm:$0xff] %vm627, 0.0
        %697 = vst.msk [vmem:[#allocation4 + $0x28] sm:$0xff] %vm627, 0.0
        %698 = vst.msk [vmem:[#allocation4 + $0x30] sm:$0xff] %vm627, 0.0
        %699 = vst.msk [vmem:[#allocation4 + $0x38] sm:$0xff] %vm627, 0.0
        %700 = vst.msk [vmem:[#allocation4 + $0x40] sm:$0xff] %vm627, 0.0
        %701 = vst.msk [vmem:[#allocation4 + $0x48] sm:$0xff] %vm627, 0.0
        %702 = vst.msk [vmem:[#allocation4 + $0x50] sm:$0xff] %vm627, 0.0
        %703 = vst.msk [vmem:[#allocation4 + $0x58] sm:$0xff] %vm627, 0.0
        %704 = vst.msk [vmem:[#allocation4 + $0x60] sm:$0xff] %vm627, 0.0
        %705 = vst.msk [vmem:[#allocation4 + $0x68] sm:$0xff] %vm627, 0.0
        %706 = vst.msk [vmem:[#allocation4 + $0x70] sm:$0xff] %vm627, 0.0
        %707 = vst.msk [vmem:[#allocation4 + $0x78] sm:$0xff] %vm627, 0.0
        %708 = vst.msk [vmem:[#allocation4 + $0x80] sm:$0xff] %vm627, 0.0
        %709 = vst.msk [vmem:[#allocation4 + $0x88] sm:$0xff] %vm627, 0.0
        %710 = vst.msk [vmem:[#allocation4 + $0x90] sm:$0xff] %vm627, 0.0
        %711 = vst.msk [vmem:[#allocation4 + $0x98] sm:$0xff] %vm627, 0.0
        %712 = vst.msk [vmem:[#allocation4 + $0xa0] sm:$0xff] %vm627, 0.0
        %713 = vst.msk [vmem:[#allocation4 + $0xa8] sm:$0xff] %vm627, 0.0
        %714 = vst.msk [vmem:[#allocation4 + $0xb0] sm:$0xff] %vm627, 0.0
        %715 = vst.msk [vmem:[#allocation4 + $0xb8] sm:$0xff] %vm627, 0.0
        %716 = vst.msk [vmem:[#allocation4 + $0xc0] sm:$0xff] %vm627, 0.0
        %717 = vst.msk [vmem:[#allocation4 + $0xc8] sm:$0xff] %vm627, 0.0
        %718 = vst.msk [vmem:[#allocation4 + $0xd0] sm:$0xff] %vm627, 0.0
        %719 = vst.msk [vmem:[#allocation4 + $0xd8] sm:$0xff] %vm627, 0.0
        %720 = vst.msk [vmem:[#allocation4 + $0xe0] sm:$0xff] %vm627, 0.0
        %721 = vst.msk [vmem:[#allocation4 + $0xe8] sm:$0xff] %vm627, 0.0
        %722 = vst.msk [vmem:[#allocation4 + $0xf0] sm:$0xff] %vm627, 0.0
        %723 = vst.msk [vmem:[#allocation4 + $0xf8] sm:$0xff] %vm627, 0.0
        %724 = vst.msk [vmem:[#allocation4 + $0x100] sm:$0xff] %vm627, 0.0
        %725 = vst.msk [vmem:[#allocation4 + $0x108] sm:$0xff] %vm627, 0.0
        %726 = vst.msk [vmem:[#allocation4 + $0x110] sm:$0xff] %vm627, 0.0
        %727 = vst.msk [vmem:[#allocation4 + $0x118] sm:$0xff] %vm627, 0.0
        %728 = vst.msk [vmem:[#allocation4 + $0x120] sm:$0xff] %vm627, 0.0
        %729 = vst.msk [vmem:[#allocation4 + $0x128] sm:$0xff] %vm627, 0.0
        %730 = vst.msk [vmem:[#allocation4 + $0x130] sm:$0xff] %vm627, 0.0
        %731 = vst.msk [vmem:[#allocation4 + $0x138] sm:$0xff] %vm627, 0.0
        %732 = vst.msk [vmem:[#allocation4 + $0x140] sm:$0xff] %vm627, 0.0
        %733 = vst.msk [vmem:[#allocation4 + $0x148] sm:$0xff] %vm627, 0.0
        %734 = vst.msk [vmem:[#allocation4 + $0x150] sm:$0xff] %vm627, 0.0
        %735 = vst.msk [vmem:[#allocation4 + $0x158] sm:$0xff] %vm627, 0.0
        %736 = vst.msk [vmem:[#allocation4 + $0x160] sm:$0xff] %vm627, 0.0
        %737 = vst.msk [vmem:[#allocation4 + $0x168] sm:$0xff] %vm627, 0.0
        %738 = vst.msk [vmem:[#allocation4 + $0x170] sm:$0xff] %vm627, 0.0
        %739 = vst.msk [vmem:[#allocation4 + $0x178] sm:$0xff] %vm627, 0.0
        %740 = vst.msk [vmem:[#allocation4 + $0x180] sm:$0xff] %vm627, 0.0
        %741 = vst.msk [vmem:[#allocation4 + $0x188] sm:$0xff] %vm627, 0.0
        %742 = vst.msk [vmem:[#allocation4 + $0x190] sm:$0xff] %vm627, 0.0
        %743 = vst.msk [vmem:[#allocation4 + $0x198] sm:$0xff] %vm627, 0.0
        %744 = vst.msk [vmem:[#allocation4 + $0x1a0] sm:$0xff] %vm627, 0.0
        %745 = vst.msk [vmem:[#allocation4 + $0x1a8] sm:$0xff] %vm627, 0.0
        %746 = vst.msk [vmem:[#allocation4 + $0x1b0] sm:$0xff] %vm627, 0.0
        %747 = vst.msk [vmem:[#allocation4 + $0x1b8] sm:$0xff] %vm627, 0.0
        %748 = vst.msk [vmem:[#allocation4 + $0x1c0] sm:$0xff] %vm627, 0.0
        %749 = vst.msk [vmem:[#allocation4 + $0x1c8] sm:$0xff] %vm627, 0.0
        %750 = vst.msk [vmem:[#allocation4 + $0x1d0] sm:$0xff] %vm627, 0.0
        %751 = vst.msk [vmem:[#allocation4 + $0x1d8] sm:$0xff] %vm627, 0.0
        %752 = vst.msk [vmem:[#allocation4 + $0x1e0] sm:$0xff] %vm627, 0.0
        %753 = vst.msk [vmem:[#allocation4 + $0x1e8] sm:$0xff] %vm627, 0.0
        %754 = vst.msk [vmem:[#allocation4 + $0x1f0] sm:$0xff] %vm627, 0.0
        %755 = vst.msk [vmem:[#allocation4 + $0x1f8] sm:$0xff] %vm627, 0.0
        %vm756 = vcmask 261120
        %757 = vst.msk [vmem:[#allocation5] sm:$0xff] %vm756, 0.0
        %758 = vst.msk [vmem:[#allocation5 + $0x8] sm:$0xff] %vm756, 0.0
        %759 = vst.msk [vmem:[#allocation5 + $0x10] sm:$0xff] %vm756, 0.0
        %760 = vst.msk [vmem:[#allocation5 + $0x18] sm:$0xff] %vm756, 0.0
        %761 = vst.msk [vmem:[#allocation5 + $0x20] sm:$0xff] %vm756, 0.0
        %762 = vst.msk [vmem:[#allocation5 + $0x28] sm:$0xff] %vm756, 0.0
        %763 = vst.msk [vmem:[#allocation5 + $0x30] sm:$0xff] %vm756, 0.0
        %764 = vst.msk [vmem:[#allocation5 + $0x38] sm:$0xff] %vm756, 0.0
        %765 = vst.msk [vmem:[#allocation5 + $0x40] sm:$0xff] %vm756, 0.0
        %766 = vst.msk [vmem:[#allocation5 + $0x48] sm:$0xff] %vm756, 0.0
        %767 = vst.msk [vmem:[#allocation5 + $0x50] sm:$0xff] %vm756, 0.0
        %768 = vst.msk [vmem:[#allocation5 + $0x58] sm:$0xff] %vm756, 0.0
        %769 = vst.msk [vmem:[#allocation5 + $0x60] sm:$0xff] %vm756, 0.0
        %770 = vst.msk [vmem:[#allocation5 + $0x68] sm:$0xff] %vm756, 0.0
        %771 = vst.msk [vmem:[#allocation5 + $0x70] sm:$0xff] %vm756, 0.0
        %772 = vst.msk [vmem:[#allocation5 + $0x78] sm:$0xff] %vm756, 0.0
        %773 = vst.msk [vmem:[#allocation5 + $0x80] sm:$0xff] %vm756, 0.0
        %774 = vst.msk [vmem:[#allocation5 + $0x88] sm:$0xff] %vm756, 0.0
        %775 = vst.msk [vmem:[#allocation5 + $0x90] sm:$0xff] %vm756, 0.0
        %776 = vst.msk [vmem:[#allocation5 + $0x98] sm:$0xff] %vm756, 0.0
        %777 = vst.msk [vmem:[#allocation5 + $0xa0] sm:$0xff] %vm756, 0.0
        %778 = vst.msk [vmem:[#allocation5 + $0xa8] sm:$0xff] %vm756, 0.0
        %779 = vst.msk [vmem:[#allocation5 + $0xb0] sm:$0xff] %vm756, 0.0
        %780 = vst.msk [vmem:[#allocation5 + $0xb8] sm:$0xff] %vm756, 0.0
        %781 = vst.msk [vmem:[#allocation5 + $0xc0] sm:$0xff] %vm756, 0.0
        %782 = vst.msk [vmem:[#allocation5 + $0xc8] sm:$0xff] %vm756, 0.0
        %783 = vst.msk [vmem:[#allocation5 + $0xd0] sm:$0xff] %vm756, 0.0
        %784 = vst.msk [vmem:[#allocation5 + $0xd8] sm:$0xff] %vm756, 0.0
        %785 = vst.msk [vmem:[#allocation5 + $0xe0] sm:$0xff] %vm756, 0.0
        %786 = vst.msk [vmem:[#allocation5 + $0xe8] sm:$0xff] %vm756, 0.0
        %787 = vst.msk [vmem:[#allocation5 + $0xf0] sm:$0xff] %vm756, 0.0
        %788 = vst.msk [vmem:[#allocation5 + $0xf8] sm:$0xff] %vm756, 0.0
        %789 = vst.msk [vmem:[#allocation5 + $0x100] sm:$0xff] %vm756, 0.0
        %790 = vst.msk [vmem:[#allocation5 + $0x108] sm:$0xff] %vm756, 0.0
        %791 = vst.msk [vmem:[#allocation5 + $0x110] sm:$0xff] %vm756, 0.0
        %792 = vst.msk [vmem:[#allocation5 + $0x118] sm:$0xff] %vm756, 0.0
        %793 = vst.msk [vmem:[#allocation5 + $0x120] sm:$0xff] %vm756, 0.0
        %794 = vst.msk [vmem:[#allocation5 + $0x128] sm:$0xff] %vm756, 0.0
        %795 = vst.msk [vmem:[#allocation5 + $0x130] sm:$0xff] %vm756, 0.0
        %796 = vst.msk [vmem:[#allocation5 + $0x138] sm:$0xff] %vm756, 0.0
        %797 = vst.msk [vmem:[#allocation5 + $0x140] sm:$0xff] %vm756, 0.0
        %798 = vst.msk [vmem:[#allocation5 + $0x148] sm:$0xff] %vm756, 0.0
        %799 = vst.msk [vmem:[#allocation5 + $0x150] sm:$0xff] %vm756, 0.0
        %800 = vst.msk [vmem:[#allocation5 + $0x158] sm:$0xff] %vm756, 0.0
        %801 = vst.msk [vmem:[#allocation5 + $0x160] sm:$0xff] %vm756, 0.0
        %802 = vst.msk [vmem:[#allocation5 + $0x168] sm:$0xff] %vm756, 0.0
        %803 = vst.msk [vmem:[#allocation5 + $0x170] sm:$0xff] %vm756, 0.0
        %804 = vst.msk [vmem:[#allocation5 + $0x178] sm:$0xff] %vm756, 0.0
        %805 = vst.msk [vmem:[#allocation5 + $0x180] sm:$0xff] %vm756, 0.0
        %806 = vst.msk [vmem:[#allocation5 + $0x188] sm:$0xff] %vm756, 0.0
        %807 = vst.msk [vmem:[#allocation5 + $0x190] sm:$0xff] %vm756, 0.0
        %808 = vst.msk [vmem:[#allocation5 + $0x198] sm:$0xff] %vm756, 0.0
        %809 = vst.msk [vmem:[#allocation5 + $0x1a0] sm:$0xff] %vm756, 0.0
        %810 = vst.msk [vmem:[#allocation5 + $0x1a8] sm:$0xff] %vm756, 0.0
        %811 = vst.msk [vmem:[#allocation5 + $0x1b0] sm:$0xff] %vm756, 0.0
        %812 = vst.msk [vmem:[#allocation5 + $0x1b8] sm:$0xff] %vm756, 0.0
        %813 = vst.msk [vmem:[#allocation5 + $0x1c0] sm:$0xff] %vm756, 0.0
        %814 = vst.msk [vmem:[#allocation5 + $0x1c8] sm:$0xff] %vm756, 0.0
        %815 = vst.msk [vmem:[#allocation5 + $0x1d0] sm:$0xff] %vm756, 0.0
        %816 = vst.msk [vmem:[#allocation5 + $0x1d8] sm:$0xff] %vm756, 0.0
        %817 = vst.msk [vmem:[#allocation5 + $0x1e0] sm:$0xff] %vm756, 0.0
        %818 = vst.msk [vmem:[#allocation5 + $0x1e8] sm:$0xff] %vm756, 0.0
        %819 = vst.msk [vmem:[#allocation5 + $0x1f0] sm:$0xff] %vm756, 0.0
        %820 = vst.msk [vmem:[#allocation5 + $0x1f8] sm:$0xff] %vm756, 0.0
      $region36: #{tpu_custom_call.1} parent=31 // pred_fallthru
        _
      %v821 = vld [vmem:[#allocation2] sm:$0xf]
      %v822 = vld [vmem:[#allocation2 + $0x4] sm:$0xf]
      %v823 = vld [vmem:[#allocation2 + $0x8] sm:$0xf]
      %v824 = vld [vmem:[#allocation2 + $0xc] sm:$0xf]
      %v825 = vld [vmem:[#allocation2 + $0x10] sm:$0xf]
      %v826 = vld [vmem:[#allocation2 + $0x14] sm:$0xf]
      %v827 = vld [vmem:[#allocation2 + $0x18] sm:$0xf]
      %v828 = vld [vmem:[#allocation2 + $0x1c] sm:$0xf]
      %v829 = vld [vmem:[#allocation2 + $0x20] sm:$0xf]
      %v830 = vld [vmem:[#allocation2 + $0x24] sm:$0xf]
      %v831 = vld [vmem:[#allocation2 + $0x28] sm:$0xf]
      %v832 = vld [vmem:[#allocation2 + $0x2c] sm:$0xf]
      %v833 = vld [vmem:[#allocation2 + $0x30] sm:$0xf]
      %v834 = vld [vmem:[#allocation2 + $0x34] sm:$0xf]
      %v835 = vld [vmem:[#allocation2 + $0x38] sm:$0xf]
      %v836 = vld [vmem:[#allocation2 + $0x3c] sm:$0xf]
      %v837 = vld [vmem:[#allocation2 + $0x40] sm:$0xf]
      %v838 = vld [vmem:[#allocation2 + $0x44] sm:$0xf]
      %v839 = vld [vmem:[#allocation2 + $0x48] sm:$0xf]
      %v840 = vld [vmem:[#allocation2 + $0x4c] sm:$0xf]
      %v841 = vld [vmem:[#allocation2 + $0x50] sm:$0xf]
      %v842 = vld [vmem:[#allocation2 + $0x54] sm:$0xf]
      %v843 = vld [vmem:[#allocation2 + $0x58] sm:$0xf]
      %v844 = vld [vmem:[#allocation2 + $0x5c] sm:$0xf]
      %v845 = vld [vmem:[#allocation2 + $0x60] sm:$0xf]
      %v846 = vld [vmem:[#allocation2 + $0x64] sm:$0xf]
      %v847 = vld [vmem:[#allocation2 + $0x68] sm:$0xf]
      %v848 = vld [vmem:[#allocation2 + $0x6c] sm:$0xf]
      %v849 = vld [vmem:[#allocation2 + $0x70] sm:$0xf]
      %v850 = vld [vmem:[#allocation2 + $0x74] sm:$0xf]
      %v851 = vld [vmem:[#allocation2 + $0x78] sm:$0xf]
      %v852 = vld [vmem:[#allocation2 + $0x7c] sm:$0xf]
      %v853 = vld [vmem:[#allocation2 + $0x80] sm:$0xf]
      %v854 = vld [vmem:[#allocation2 + $0x84] sm:$0xf]
      %v855 = vld [vmem:[#allocation2 + $0x88] sm:$0xf]
      %v856 = vld [vmem:[#allocation2 + $0x8c] sm:$0xf]
      %v857 = vld [vmem:[#allocation2 + $0x90] sm:$0xf]
      %v858 = vld [vmem:[#allocation2 + $0x94] sm:$0xf]
      %v859 = vld [vmem:[#allocation2 + $0x98] sm:$0xf]
      %v860 = vld [vmem:[#allocation2 + $0x9c] sm:$0xf]
      %v861 = vld [vmem:[#allocation2 + $0xa0] sm:$0xf]
      %v862 = vld [vmem:[#allocation2 + $0xa4] sm:$0xf]
      %v863 = vld [vmem:[#allocation2 + $0xa8] sm:$0xf]
      %v864 = vld [vmem:[#allocation2 + $0xac] sm:$0xf]
      %v865 = vld [vmem:[#allocation2 + $0xb0] sm:$0xf]
      %v866 = vld [vmem:[#allocation2 + $0xb4] sm:$0xf]
      %v867 = vld [vmem:[#allocation2 + $0xb8] sm:$0xf]
      %v868 = vld [vmem:[#allocation2 + $0xbc] sm:$0xf]
      %v869 = vld [vmem:[#allocation2 + $0xc0] sm:$0xf]
      %v870 = vld [vmem:[#allocation2 + $0xc4] sm:$0xf]
      %v871 = vld [vmem:[#allocation2 + $0xc8] sm:$0xf]
      %v872 = vld [vmem:[#allocation2 + $0xcc] sm:$0xf]
      %v873 = vld [vmem:[#allocation2 + $0xd0] sm:$0xf]
      %v874 = vld [vmem:[#allocation2 + $0xd4] sm:$0xf]
      %v875 = vld [vmem:[#allocation2 + $0xd8] sm:$0xf]
      %v876 = vld [vmem:[#allocation2 + $0xdc] sm:$0xf]
      %v877 = vld [vmem:[#allocation2 + $0xe0] sm:$0xf]
      %v878 = vld [vmem:[#allocation2 + $0xe4] sm:$0xf]
      %v879 = vld [vmem:[#allocation2 + $0xe8] sm:$0xf]
      %v880 = vld [vmem:[#allocation2 + $0xec] sm:$0xf]
      %v881 = vld [vmem:[#allocation2 + $0xf0] sm:$0xf]
      %v882 = vld [vmem:[#allocation2 + $0xf4] sm:$0xf]
      %v883 = vld [vmem:[#allocation2 + $0xf8] sm:$0xf]
      %v884 = vld [vmem:[#allocation2 + $0xfc] sm:$0xf]
      %v885 = vld [vmem:[%s331] sm:$0xff]
      %v886 = vld [vmem:[%s331 + $0x8] sm:$0xff]
      %v887 = vld [vmem:[%s331 + $0x10] sm:$0xff]
      %v888 = vld [vmem:[%s331 + $0x18] sm:$0xff]
      %v889 = vld [vmem:[%s331 + $0x20] sm:$0xff]
      %v890 = vld [vmem:[%s331 + $0x28] sm:$0xff]
      %v891 = vld [vmem:[%s331 + $0x30] sm:$0xff]
      %v892 = vld [vmem:[%s331 + $0x38] sm:$0xff]
      %v893 = vld [vmem:[%s331 + $0x40] sm:$0xff]
      %v894 = vld [vmem:[%s331 + $0x48] sm:$0xff]
      %v895 = vld [vmem:[%s331 + $0x50] sm:$0xff]
      %v896 = vld [vmem:[%s331 + $0x58] sm:$0xff]
      %v897 = vld [vmem:[%s331 + $0x60] sm:$0xff]
      %v898 = vld [vmem:[%s331 + $0x68] sm:$0xff]
      %v899 = vld [vmem:[%s331 + $0x70] sm:$0xff]
      %v900 = vld [vmem:[%s331 + $0x78] sm:$0xff]
      %v901 = vld [vmem:[%s331 + $0x80] sm:$0xff]
      %v902 = vld [vmem:[%s331 + $0x88] sm:$0xff]
      %v903 = vld [vmem:[%s331 + $0x90] sm:$0xff]
      %v904 = vld [vmem:[%s331 + $0x98] sm:$0xff]
      %v905 = vld [vmem:[%s331 + $0xa0] sm:$0xff]
      %v906 = vld [vmem:[%s331 + $0xa8] sm:$0xff]
      %v907 = vld [vmem:[%s331 + $0xb0] sm:$0xff]
      %v908 = vld [vmem:[%s331 + $0xb8] sm:$0xff]
      %v909 = vld [vmem:[%s331 + $0xc0] sm:$0xff]
      %v910 = vld [vmem:[%s331 + $0xc8] sm:$0xff]
      %v911 = vld [vmem:[%s331 + $0xd0] sm:$0xff]
      %v912 = vld [vmem:[%s331 + $0xd8] sm:$0xff]
      %v913 = vld [vmem:[%s331 + $0xe0] sm:$0xff]
      %v914 = vld [vmem:[%s331 + $0xe8] sm:$0xff]
      %v915 = vld [vmem:[%s331 + $0xf0] sm:$0xff]
      %v916 = vld [vmem:[%s331 + $0xf8] sm:$0xff]
      %v917 = vld [vmem:[%s331 + $0x100] sm:$0xff]
      %v918 = vld [vmem:[%s331 + $0x108] sm:$0xff]
      %v919 = vld [vmem:[%s331 + $0x110] sm:$0xff]
      %v920 = vld [vmem:[%s331 + $0x118] sm:$0xff]
      %v921 = vld [vmem:[%s331 + $0x120] sm:$0xff]
      %v922 = vld [vmem:[%s331 + $0x128] sm:$0xff]
      %v923 = vld [vmem:[%s331 + $0x130] sm:$0xff]
      %v924 = vld [vmem:[%s331 + $0x138] sm:$0xff]
      %v925 = vld [vmem:[%s331 + $0x140] sm:$0xff]
      %v926 = vld [vmem:[%s331 + $0x148] sm:$0xff]
      %v927 = vld [vmem:[%s331 + $0x150] sm:$0xff]
      %v928 = vld [vmem:[%s331 + $0x158] sm:$0xff]
      %v929 = vld [vmem:[%s331 + $0x160] sm:$0xff]
      %v930 = vld [vmem:[%s331 + $0x168] sm:$0xff]
      %v931 = vld [vmem:[%s331 + $0x170] sm:$0xff]
      %v932 = vld [vmem:[%s331 + $0x178] sm:$0xff]
      %v933 = vld [vmem:[%s331 + $0x180] sm:$0xff]
      %v934 = vld [vmem:[%s331 + $0x188] sm:$0xff]
      %v935 = vld [vmem:[%s331 + $0x190] sm:$0xff]
      %v936 = vld [vmem:[%s331 + $0x198] sm:$0xff]
      %v937 = vld [vmem:[%s331 + $0x1a0] sm:$0xff]
      %v938 = vld [vmem:[%s331 + $0x1a8] sm:$0xff]
      %v939 = vld [vmem:[%s331 + $0x1b0] sm:$0xff]
      %v940 = vld [vmem:[%s331 + $0x1b8] sm:$0xff]
      %v941 = vld [vmem:[%s331 + $0x1c0] sm:$0xff]
      %v942 = vld [vmem:[%s331 + $0x1c8] sm:$0xff]
      %v943 = vld [vmem:[%s331 + $0x1d0] sm:$0xff]
      %v944 = vld [vmem:[%s331 + $0x1d8] sm:$0xff]
      %v945 = vld [vmem:[%s331 + $0x1e0] sm:$0xff]
      %v946 = vld [vmem:[%s331 + $0x1e8] sm:$0xff]
      %v947 = vld [vmem:[%s331 + $0x1f0] sm:$0xff]
      %v948 = vld [vmem:[%s331 + $0x1f8] sm:$0xff]
      %v949 = vpack.c.bf16 %v885, %v885
      %v950 = vpack.c.bf16 %v886, %v886
      %v951 = vpack.c.bf16 %v887, %v887
      %v952 = vpack.c.bf16 %v888, %v888
      %v953 = vpack.c.bf16 %v889, %v889
      %v954 = vpack.c.bf16 %v890, %v890
      %v955 = vpack.c.bf16 %v891, %v891
      %v956 = vpack.c.bf16 %v892, %v892
      %v957 = vpack.c.bf16 %v893, %v893
      %v958 = vpack.c.bf16 %v894, %v894
      %v959 = vpack.c.bf16 %v895, %v895
      %v960 = vpack.c.bf16 %v896, %v896
      %v961 = vpack.c.bf16 %v897, %v897
      %v962 = vpack.c.bf16 %v898, %v898
      %v963 = vpack.c.bf16 %v899, %v899
      %v964 = vpack.c.bf16 %v900, %v900
      %v965 = vpack.c.bf16 %v901, %v901
      %v966 = vpack.c.bf16 %v902, %v902
      %v967 = vpack.c.bf16 %v903, %v903
      %v968 = vpack.c.bf16 %v904, %v904
      %v969 = vpack.c.bf16 %v905, %v905
      %v970 = vpack.c.bf16 %v906, %v906
      %v971 = vpack.c.bf16 %v907, %v907
      %v972 = vpack.c.bf16 %v908, %v908
      %v973 = vpack.c.bf16 %v909, %v909
      %v974 = vpack.c.bf16 %v910, %v910
      %v975 = vpack.c.bf16 %v911, %v911
      %v976 = vpack.c.bf16 %v912, %v912
      %v977 = vpack.c.bf16 %v913, %v913
      %v978 = vpack.c.bf16 %v914, %v914
      %v979 = vpack.c.bf16 %v915, %v915
      %v980 = vpack.c.bf16 %v916, %v916
      %v981 = vpack.c.bf16 %v917, %v917
      %v982 = vpack.c.bf16 %v918, %v918
      %v983 = vpack.c.bf16 %v919, %v919
      %v984 = vpack.c.bf16 %v920, %v920
      %v985 = vpack.c.bf16 %v921, %v921
      %v986 = vpack.c.bf16 %v922, %v922
      %v987 = vpack.c.bf16 %v923, %v923
      %v988 = vpack.c.bf16 %v924, %v924
      %v989 = vpack.c.bf16 %v925, %v925
      %v990 = vpack.c.bf16 %v926, %v926
      %v991 = vpack.c.bf16 %v927, %v927
      %v992 = vpack.c.bf16 %v928, %v928
      %v993 = vpack.c.bf16 %v929, %v929
      %v994 = vpack.c.bf16 %v930, %v930
      %v995 = vpack.c.bf16 %v931, %v931
      %v996 = vpack.c.bf16 %v932, %v932
      %v997 = vpack.c.bf16 %v933, %v933
      %v998 = vpack.c.bf16 %v934, %v934
      %v999 = vpack.c.bf16 %v935, %v935
      %v1000 = vpack.c.bf16 %v936, %v936
      %v1001 = vpack.c.bf16 %v937, %v937
      %v1002 = vpack.c.bf16 %v938, %v938
      %v1003 = vpack.c.bf16 %v939, %v939
      %v1004 = vpack.c.bf16 %v940, %v940
      %v1005 = vpack.c.bf16 %v941, %v941
      %v1006 = vpack.c.bf16 %v942, %v942
      %v1007 = vpack.c.bf16 %v943, %v943
      %v1008 = vpack.c.bf16 %v944, %v944
      %v1009 = vpack.c.bf16 %v945, %v945
      %v1010 = vpack.c.bf16 %v946, %v946
      %v1011 = vpack.c.bf16 %v947, %v947
      %v1012 = vpack.c.bf16 %v948, %v948
      %v1013 = vld [vmem:[%s347] sm:$0xff]
      %v1014 = vld [vmem:[%s347 + $0x8] sm:$0xff]
      %v1015 = vld [vmem:[%s347 + $0x10] sm:$0xff]
      %v1016 = vld [vmem:[%s347 + $0x18] sm:$0xff]
      %v1017 = vld [vmem:[%s347 + $0x20] sm:$0xff]
      %v1018 = vld [vmem:[%s347 + $0x28] sm:$0xff]
      %v1019 = vld [vmem:[%s347 + $0x30] sm:$0xff]
      %v1020 = vld [vmem:[%s347 + $0x38] sm:$0xff]
      %v1021 = vld [vmem:[%s347 + $0x40] sm:$0xff]
      %v1022 = vld [vmem:[%s347 + $0x48] sm:$0xff]
      %v1023 = vld [vmem:[%s347 + $0x50] sm:$0xff]
      %v1024 = vld [vmem:[%s347 + $0x58] sm:$0xff]
      %v1025 = vld [vmem:[%s347 + $0x60] sm:$0xff]
      %v1026 = vld [vmem:[%s347 + $0x68] sm:$0xff]
      %v1027 = vld [vmem:[%s347 + $0x70] sm:$0xff]
      %v1028 = vld [vmem:[%s347 + $0x78] sm:$0xff]
      %v1029 = vld [vmem:[%s347 + $0x80] sm:$0xff]
      %v1030 = vld [vmem:[%s347 + $0x88] sm:$0xff]
      %v1031 = vld [vmem:[%s347 + $0x90] sm:$0xff]
      %v1032 = vld [vmem:[%s347 + $0x98] sm:$0xff]
      %v1033 = vld [vmem:[%s347 + $0xa0] sm:$0xff]
      %v1034 = vld [vmem:[%s347 + $0xa8] sm:$0xff]
      %v1035 = vld [vmem:[%s347 + $0xb0] sm:$0xff]
      %v1036 = vld [vmem:[%s347 + $0xb8] sm:$0xff]
      %v1037 = vld [vmem:[%s347 + $0xc0] sm:$0xff]
      %v1038 = vld [vmem:[%s347 + $0xc8] sm:$0xff]
      %v1039 = vld [vmem:[%s347 + $0xd0] sm:$0xff]
      %v1040 = vld [vmem:[%s347 + $0xd8] sm:$0xff]
      %v1041 = vld [vmem:[%s347 + $0xe0] sm:$0xff]
      %v1042 = vld [vmem:[%s347 + $0xe8] sm:$0xff]
      %v1043 = vld [vmem:[%s347 + $0xf0] sm:$0xff]
      %v1044 = vld [vmem:[%s347 + $0xf8] sm:$0xff]
      %v1045 = vld [vmem:[%s347 + $0x100] sm:$0xff]
      %v1046 = vld [vmem:[%s347 + $0x108] sm:$0xff]
      %v1047 = vld [vmem:[%s347 + $0x110] sm:$0xff]
      %v1048 = vld [vmem:[%s347 + $0x118] sm:$0xff]
      %v1049 = vld [vmem:[%s347 + $0x120] sm:$0xff]
      %v1050 = vld [vmem:[%s347 + $0x128] sm:$0xff]
      %v1051 = vld [vmem:[%s347 + $0x130] sm:$0xff]
      %v1052 = vld [vmem:[%s347 + $0x138] sm:$0xff]
      %v1053 = vld [vmem:[%s347 + $0x140] sm:$0xff]
      %v1054 = vld [vmem:[%s347 + $0x148] sm:$0xff]
      %v1055 = vld [vmem:[%s347 + $0x150] sm:$0xff]
      %v1056 = vld [vmem:[%s347 + $0x158] sm:$0xff]
      %v1057 = vld [vmem:[%s347 + $0x160] sm:$0xff]
      %v1058 = vld [vmem:[%s347 + $0x168] sm:$0xff]
      %v1059 = vld [vmem:[%s347 + $0x170] sm:$0xff]
      %v1060 = vld [vmem:[%s347 + $0x178] sm:$0xff]
      %v1061 = vld [vmem:[%s347 + $0x180] sm:$0xff]
      %v1062 = vld [vmem:[%s347 + $0x188] sm:$0xff]
      %v1063 = vld [vmem:[%s347 + $0x190] sm:$0xff]
      %v1064 = vld [vmem:[%s347 + $0x198] sm:$0xff]
      %v1065 = vld [vmem:[%s347 + $0x1a0] sm:$0xff]
      %v1066 = vld [vmem:[%s347 + $0x1a8] sm:$0xff]
      %v1067 = vld [vmem:[%s347 + $0x1b0] sm:$0xff]
      %v1068 = vld [vmem:[%s347 + $0x1b8] sm:$0xff]
      %v1069 = vld [vmem:[%s347 + $0x1c0] sm:$0xff]
      %v1070 = vld [vmem:[%s347 + $0x1c8] sm:$0xff]
      %v1071 = vld [vmem:[%s347 + $0x1d0] sm:$0xff]
      %v1072 = vld [vmem:[%s347 + $0x1d8] sm:$0xff]
      %v1073 = vld [vmem:[%s347 + $0x1e0] sm:$0xff]
      %v1074 = vld [vmem:[%s347 + $0x1e8] sm:$0xff]
      %v1075 = vld [vmem:[%s347 + $0x1f0] sm:$0xff]
      %v1076 = vld [vmem:[%s347 + $0x1f8] sm:$0xff]
      %v1077 = vpack.c.bf16 %v1013, %v1013
      %v1078 = vpack.c.bf16 %v1014, %v1014
      %v1079 = vpack.c.bf16 %v1015, %v1015
      %v1080 = vpack.c.bf16 %v1016, %v1016
      %v1081 = vpack.c.bf16 %v1017, %v1017
      %v1082 = vpack.c.bf16 %v1018, %v1018
      %v1083 = vpack.c.bf16 %v1019, %v1019
      %v1084 = vpack.c.bf16 %v1020, %v1020
      %v1085 = vpack.c.bf16 %v1021, %v1021
      %v1086 = vpack.c.bf16 %v1022, %v1022
      %v1087 = vpack.c.bf16 %v1023, %v1023
      %v1088 = vpack.c.bf16 %v1024, %v1024
      %v1089 = vpack.c.bf16 %v1025, %v1025
      %v1090 = vpack.c.bf16 %v1026, %v1026
      %v1091 = vpack.c.bf16 %v1027, %v1027
      %v1092 = vpack.c.bf16 %v1028, %v1028
      %v1093 = vpack.c.bf16 %v1029, %v1029
      %v1094 = vpack.c.bf16 %v1030, %v1030
      %v1095 = vpack.c.bf16 %v1031, %v1031
      %v1096 = vpack.c.bf16 %v1032, %v1032
      %v1097 = vpack.c.bf16 %v1033, %v1033
      %v1098 = vpack.c.bf16 %v1034, %v1034
      %v1099 = vpack.c.bf16 %v1035, %v1035
      %v1100 = vpack.c.bf16 %v1036, %v1036
      %v1101 = vpack.c.bf16 %v1037, %v1037
      %v1102 = vpack.c.bf16 %v1038, %v1038
      %v1103 = vpack.c.bf16 %v1039, %v1039
      %v1104 = vpack.c.bf16 %v1040, %v1040
      %v1105 = vpack.c.bf16 %v1041, %v1041
      %v1106 = vpack.c.bf16 %v1042, %v1042
      %v1107 = vpack.c.bf16 %v1043, %v1043
      %v1108 = vpack.c.bf16 %v1044, %v1044
      %v1109 = vpack.c.bf16 %v1045, %v1045
      %v1110 = vpack.c.bf16 %v1046, %v1046
      %v1111 = vpack.c.bf16 %v1047, %v1047
      %v1112 = vpack.c.bf16 %v1048, %v1048
      %v1113 = vpack.c.bf16 %v1049, %v1049
      %v1114 = vpack.c.bf16 %v1050, %v1050
      %v1115 = vpack.c.bf16 %v1051, %v1051
      %v1116 = vpack.c.bf16 %v1052, %v1052
      %v1117 = vpack.c.bf16 %v1053, %v1053
      %v1118 = vpack.c.bf16 %v1054, %v1054
      %v1119 = vpack.c.bf16 %v1055, %v1055
      %v1120 = vpack.c.bf16 %v1056, %v1056
      %v1121 = vpack.c.bf16 %v1057, %v1057
      %v1122 = vpack.c.bf16 %v1058, %v1058
      %v1123 = vpack.c.bf16 %v1059, %v1059
      %v1124 = vpack.c.bf16 %v1060, %v1060
      %v1125 = vpack.c.bf16 %v1061, %v1061
      %v1126 = vpack.c.bf16 %v1062, %v1062
      %v1127 = vpack.c.bf16 %v1063, %v1063
      %v1128 = vpack.c.bf16 %v1064, %v1064
      %v1129 = vpack.c.bf16 %v1065, %v1065
      %v1130 = vpack.c.bf16 %v1066, %v1066
      %v1131 = vpack.c.bf16 %v1067, %v1067
      %v1132 = vpack.c.bf16 %v1068, %v1068
      %v1133 = vpack.c.bf16 %v1069, %v1069
      %v1134 = vpack.c.bf16 %v1070, %v1070
      %v1135 = vpack.c.bf16 %v1071, %v1071
      %v1136 = vpack.c.bf16 %v1072, %v1072
      %v1137 = vpack.c.bf16 %v1073, %v1073
      %v1138 = vpack.c.bf16 %v1074, %v1074
      %v1139 = vpack.c.bf16 %v1075, %v1075
      %v1140 = vpack.c.bf16 %v1076, %v1076
      %v1157 = vunpack.c.l.b16 %v821
      %v1158 = vunpack.c.l.b16 %v822
      %v1159 = vunpack.c.l.b16 %v823
      %v1160 = vunpack.c.l.b16 %v824
      %v1161 = vunpack.c.l.b16 %v825
      %v1162 = vunpack.c.l.b16 %v826
      %v1163 = vunpack.c.l.b16 %v827
      %v1164 = vunpack.c.l.b16 %v828
      %v1165 = vunpack.c.l.b16 %v829
      %v1166 = vunpack.c.l.b16 %v830
      %v1167 = vunpack.c.l.b16 %v831
      %v1168 = vunpack.c.l.b16 %v832
      %v1169 = vunpack.c.l.b16 %v833
      %v1170 = vunpack.c.l.b16 %v834
      %v1171 = vunpack.c.l.b16 %v835
      %v1172 = vunpack.c.l.b16 %v836
      %v1173 = vpack.c.b16 %v1158, %v1157
      %v1174 = vpack.c.b16 %v1160, %v1159
      %v1175 = vpack.c.b16 %v1162, %v1161
      %v1176 = vpack.c.b16 %v1164, %v1163
      %v1177 = vpack.c.b16 %v1166, %v1165
      %v1178 = vpack.c.b16 %v1168, %v1167
      %v1179 = vpack.c.b16 %v1170, %v1169
      %v1180 = vpack.c.b16 %v1172, %v1171
      %v1197 = vunpack.c.l.b16 %v949
      %v1198 = vunpack.c.l.b16 %v950
      %v1199 = vunpack.c.l.b16 %v951
      %v1200 = vunpack.c.l.b16 %v952
      %v1201 = vunpack.c.l.b16 %v953
      %v1202 = vunpack.c.l.b16 %v954
      %v1203 = vunpack.c.l.b16 %v955
      %v1204 = vunpack.c.l.b16 %v956
      %v1205 = vunpack.c.l.b16 %v957
      %v1206 = vunpack.c.l.b16 %v958
      %v1207 = vunpack.c.l.b16 %v959
      %v1208 = vunpack.c.l.b16 %v960
      %v1209 = vunpack.c.l.b16 %v961
      %v1210 = vunpack.c.l.b16 %v962
      %v1211 = vunpack.c.l.b16 %v963
      %v1212 = vunpack.c.l.b16 %v964
      %v1213 = vpack.c.b16 %v1198, %v1197
      %v1214 = vpack.c.b16 %v1200, %v1199
      %v1215 = vpack.c.b16 %v1202, %v1201
      %v1216 = vpack.c.b16 %v1204, %v1203
      %v1217 = vpack.c.b16 %v1206, %v1205
      %v1218 = vpack.c.b16 %v1208, %v1207
      %v1219 = vpack.c.b16 %v1210, %v1209
      %v1220 = vpack.c.b16 %v1212, %v1211
      %vm1221 = vcmask 261120
      %v1223 = vsel %vm1221, %v1173, 0
      %v1226 = vsel %vm1221, %v1174, 0
      %v1229 = vsel %vm1221, %v1175, 0
      %v1232 = vsel %vm1221, %v1176, 0
      %v1235 = vsel %vm1221, %v1177, 0
      %v1238 = vsel %vm1221, %v1178, 0
      %v1241 = vsel %vm1221, %v1179, 0
      %v1244 = vsel %vm1221, %v1180, 0
      %v1247 = vsel %vm1221, %v1213, 0
      %v1250 = vsel %vm1221, %v1214, 0
      %v1253 = vsel %vm1221, %v1215, 0
      %v1256 = vsel %vm1221, %v1216, 0
      %v1259 = vsel %vm1221, %v1217, 0
      %v1262 = vsel %vm1221, %v1218, 0
      %v1265 = vsel %vm1221, %v1219, 0
      %v1268 = vsel %vm1221, %v1220, 0
      %1270 = vmatpush.bf16.xpose.msra.mxu0 %v1268
      %1271 = vmatpush.bf16.xpose.msra.mxu0 %v1265
      %1272 = vmatpush.bf16.xpose.msra.mxu0 %v1262
      %1273 = vmatpush.bf16.xpose.msra.mxu0 %v1259
      %1274 = vmatpush.bf16.xpose.msra.mxu0 %v1256
      %1275 = vmatpush.bf16.xpose.msra.mxu0 %v1253
      %1276 = vmatpush.bf16.xpose.msra.mxu0 %v1250
      %1277 = vmatpush.bf16.xpose.msra.mxu0 %v1247
      %1278 = vmatmul.bf16.gmra.mxu0 %v1223
      %v1279 = vpop.f32.mrf.mxu0
      %v1280 = vadd.f32 0.0, %v1279
      %v1281 = vpop.f32.mrf.mxu0
      %v1282 = vadd.f32 0.0, %v1281
      %1283 = vmatmul.bf16.gmra.mxu0 %v1226
      %v1284 = vpop.f32.mrf.mxu0
      %v1285 = vadd.f32 0.0, %v1284
      %v1286 = vpop.f32.mrf.mxu0
      %v1287 = vadd.f32 0.0, %v1286
      %1288 = vmatmul.bf16.gmra.mxu0 %v1229
      %v1289 = vpop.f32.mrf.mxu0
      %v1290 = vadd.f32 0.0, %v1289
      %v1291 = vpop.f32.mrf.mxu0
      %v1292 = vadd.f32 0.0, %v1291
      %1293 = vmatmul.bf16.gmra.mxu0 %v1232
      %v1294 = vpop.f32.mrf.mxu0
      %v1295 = vadd.f32 0.0, %v1294
      %v1296 = vpop.f32.mrf.mxu0
      %v1297 = vadd.f32 0.0, %v1296
      %1298 = vmatmul.bf16.gmra.mxu0 %v1235
      %v1299 = vpop.f32.mrf.mxu0
      %v1300 = vadd.f32 0.0, %v1299
      %v1301 = vpop.f32.mrf.mxu0
      %v1302 = vadd.f32 0.0, %v1301
      %1303 = vmatmul.bf16.gmra.mxu0 %v1238
      %v1304 = vpop.f32.mrf.mxu0
      %v1305 = vadd.f32 0.0, %v1304
      %v1306 = vpop.f32.mrf.mxu0
      %v1307 = vadd.f32 0.0, %v1306
      %1308 = vmatmul.bf16.gmra.mxu0 %v1241
      %v1309 = vpop.f32.mrf.mxu0
      %v1310 = vadd.f32 0.0, %v1309
      %v1311 = vpop.f32.mrf.mxu0
      %v1312 = vadd.f32 0.0, %v1311
      %1313 = vmatmul.bf16.gmra.mxu0 %v1244
      %v1314 = vpop.f32.mrf.mxu0
      %v1315 = vadd.f32 0.0, %v1314
      %v1316 = vpop.f32.mrf.mxu0
      %v1317 = vadd.f32 0.0, %v1316
      %1318 = vdwg.mxu0
      %v1335 = vunpack.c.l.b16 %v837
      %v1336 = vunpack.c.l.b16 %v838
      %v1337 = vunpack.c.l.b16 %v839
      %v1338 = vunpack.c.l.b16 %v840
      %v1339 = vunpack.c.l.b16 %v841
      %v1340 = vunpack.c.l.b16 %v842
      %v1341 = vunpack.c.l.b16 %v843
      %v1342 = vunpack.c.l.b16 %v844
      %v1343 = vunpack.c.l.b16 %v845
      %v1344 = vunpack.c.l.b16 %v846
      %v1345 = vunpack.c.l.b16 %v847
      %v1346 = vunpack.c.l.b16 %v848
      %v1347 = vunpack.c.l.b16 %v849
      %v1348 = vunpack.c.l.b16 %v850
      %v1349 = vunpack.c.l.b16 %v851
      %v1350 = vunpack.c.l.b16 %v852
      %v1351 = vpack.c.b16 %v1336, %v1335
      %v1352 = vpack.c.b16 %v1338, %v1337
      %v1353 = vpack.c.b16 %v1340, %v1339
      %v1354 = vpack.c.b16 %v1342, %v1341
      %v1355 = vpack.c.b16 %v1344, %v1343
      %v1356 = vpack.c.b16 %v1346, %v1345
      %v1357 = vpack.c.b16 %v1348, %v1347
      %v1358 = vpack.c.b16 %v1350, %v1349
      %v1375 = vunpack.c.l.b16 %v965
      %v1376 = vunpack.c.l.b16 %v966
      %v1377 = vunpack.c.l.b16 %v967
      %v1378 = vunpack.c.l.b16 %v968
      %v1379 = vunpack.c.l.b16 %v969
      %v1380 = vunpack.c.l.b16 %v970
      %v1381 = vunpack.c.l.b16 %v971
      %v1382 = vunpack.c.l.b16 %v972
      %v1383 = vunpack.c.l.b16 %v973
      %v1384 = vunpack.c.l.b16 %v974
      %v1385 = vunpack.c.l.b16 %v975
      %v1386 = vunpack.c.l.b16 %v976
      %v1387 = vunpack.c.l.b16 %v977
      %v1388 = vunpack.c.l.b16 %v978
      %v1389 = vunpack.c.l.b16 %v979
      %v1390 = vunpack.c.l.b16 %v980
      %v1391 = vpack.c.b16 %v1376, %v1375
      %v1392 = vpack.c.b16 %v1378, %v1377
      %v1393 = vpack.c.b16 %v1380, %v1379
      %v1394 = vpack.c.b16 %v1382, %v1381
      %v1395 = vpack.c.b16 %v1384, %v1383
      %v1396 = vpack.c.b16 %v1386, %v1385
      %v1397 = vpack.c.b16 %v1388, %v1387
      %v1398 = vpack.c.b16 %v1390, %v1389
      %v1400 = vsel %vm1221, %v1351, 0
      %v1403 = vsel %vm1221, %v1352, 0
      %v1406 = vsel %vm1221, %v1353, 0
      %v1409 = vsel %vm1221, %v1354, 0
      %v1412 = vsel %vm1221, %v1355, 0
      %v1415 = vsel %vm1221, %v1356, 0
      %v1418 = vsel %vm1221, %v1357, 0
      %v1421 = vsel %vm1221, %v1358, 0
      %v1424 = vsel %vm1221, %v1391, 0
      %v1427 = vsel %vm1221, %v1392, 0
      %v1430 = vsel %vm1221, %v1393, 0
      %v1433 = vsel %vm1221, %v1394, 0
      %v1436 = vsel %vm1221, %v1395, 0
      %v1439 = vsel %vm1221, %v1396, 0
      %v1442 = vsel %vm1221, %v1397, 0
      %v1445 = vsel %vm1221, %v1398, 0
      %1447 = vmatpush.bf16.xpose.msra.mxu0 %v1445
      %1448 = vmatpush.bf16.xpose.msra.mxu0 %v1442
      %1449 = vmatpush.bf16.xpose.msra.mxu0 %v1439
      %1450 = vmatpush.bf16.xpose.msra.mxu0 %v1436
      %1451 = vmatpush.bf16.xpose.msra.mxu0 %v1433
      %1452 = vmatpush.bf16.xpose.msra.mxu0 %v1430
      %1453 = vmatpush.bf16.xpose.msra.mxu0 %v1427
      %1454 = vmatpush.bf16.xpose.msra.mxu0 %v1424
      %1455 = vmatmul.bf16.gmra.mxu0 %v1400
      %v1456 = vpop.f32.mrf.mxu0
      %v1457 = vadd.f32 0.0, %v1456
      %v1458 = vpop.f32.mrf.mxu0
      %v1459 = vadd.f32 0.0, %v1458
      %1460 = vmatmul.bf16.gmra.mxu0 %v1403
      %v1461 = vpop.f32.mrf.mxu0
      %v1462 = vadd.f32 0.0, %v1461
      %v1463 = vpop.f32.mrf.mxu0
      %v1464 = vadd.f32 0.0, %v1463
      %1465 = vmatmul.bf16.gmra.mxu0 %v1406
      %v1466 = vpop.f32.mrf.mxu0
      %v1467 = vadd.f32 0.0, %v1466
      %v1468 = vpop.f32.mrf.mxu0
      %v1469 = vadd.f32 0.0, %v1468
      %1470 = vmatmul.bf16.gmra.mxu0 %v1409
      %v1471 = vpop.f32.mrf.mxu0
      %v1472 = vadd.f32 0.0, %v1471
      %v1473 = vpop.f32.mrf.mxu0
      %v1474 = vadd.f32 0.0, %v1473
      %1475 = vmatmul.bf16.gmra.mxu0 %v1412
      %v1476 = vpop.f32.mrf.mxu0
      %v1477 = vadd.f32 0.0, %v1476
      %v1478 = vpop.f32.mrf.mxu0
      %v1479 = vadd.f32 0.0, %v1478
      %1480 = vmatmul.bf16.gmra.mxu0 %v1415
      %v1481 = vpop.f32.mrf.mxu0
      %v1482 = vadd.f32 0.0, %v1481
      %v1483 = vpop.f32.mrf.mxu0
      %v1484 = vadd.f32 0.0, %v1483
      %1485 = vmatmul.bf16.gmra.mxu0 %v1418
      %v1486 = vpop.f32.mrf.mxu0
      %v1487 = vadd.f32 0.0, %v1486
      %v1488 = vpop.f32.mrf.mxu0
      %v1489 = vadd.f32 0.0, %v1488
      %1490 = vmatmul.bf16.gmra.mxu0 %v1421
      %v1491 = vpop.f32.mrf.mxu0
      %v1492 = vadd.f32 0.0, %v1491
      %v1493 = vpop.f32.mrf.mxu0
      %v1494 = vadd.f32 0.0, %v1493
      %1495 = vdwg.mxu0
      %v1512 = vunpack.c.l.b16 %v853
      %v1513 = vunpack.c.l.b16 %v854
      %v1514 = vunpack.c.l.b16 %v855
      %v1515 = vunpack.c.l.b16 %v856
      %v1516 = vunpack.c.l.b16 %v857
      %v1517 = vunpack.c.l.b16 %v858
      %v1518 = vunpack.c.l.b16 %v859
      %v1519 = vunpack.c.l.b16 %v860
      %v1520 = vunpack.c.l.b16 %v861
      %v1521 = vunpack.c.l.b16 %v862
      %v1522 = vunpack.c.l.b16 %v863
      %v1523 = vunpack.c.l.b16 %v864
      %v1524 = vunpack.c.l.b16 %v865
      %v1525 = vunpack.c.l.b16 %v866
      %v1526 = vunpack.c.l.b16 %v867
      %v1527 = vunpack.c.l.b16 %v868
      %v1528 = vpack.c.b16 %v1513, %v1512
      %v1529 = vpack.c.b16 %v1515, %v1514
      %v1530 = vpack.c.b16 %v1517, %v1516
      %v1531 = vpack.c.b16 %v1519, %v1518
      %v1532 = vpack.c.b16 %v1521, %v1520
      %v1533 = vpack.c.b16 %v1523, %v1522
      %v1534 = vpack.c.b16 %v1525, %v1524
      %v1535 = vpack.c.b16 %v1527, %v1526
      %v1552 = vunpack.c.l.b16 %v981
      %v1553 = vunpack.c.l.b16 %v982
      %v1554 = vunpack.c.l.b16 %v983
      %v1555 = vunpack.c.l.b16 %v984
      %v1556 = vunpack.c.l.b16 %v985
      %v1557 = vunpack.c.l.b16 %v986
      %v1558 = vunpack.c.l.b16 %v987
      %v1559 = vunpack.c.l.b16 %v988
      %v1560 = vunpack.c.l.b16 %v989
      %v1561 = vunpack.c.l.b16 %v990
      %v1562 = vunpack.c.l.b16 %v991
      %v1563 = vunpack.c.l.b16 %v992
      %v1564 = vunpack.c.l.b16 %v993
      %v1565 = vunpack.c.l.b16 %v994
      %v1566 = vunpack.c.l.b16 %v995
      %v1567 = vunpack.c.l.b16 %v996
      %v1568 = vpack.c.b16 %v1553, %v1552
      %v1569 = vpack.c.b16 %v1555, %v1554
      %v1570 = vpack.c.b16 %v1557, %v1556
      %v1571 = vpack.c.b16 %v1559, %v1558
      %v1572 = vpack.c.b16 %v1561, %v1560
      %v1573 = vpack.c.b16 %v1563, %v1562
      %v1574 = vpack.c.b16 %v1565, %v1564
      %v1575 = vpack.c.b16 %v1567, %v1566
      %v1577 = vsel %vm1221, %v1528, 0
      %v1580 = vsel %vm1221, %v1529, 0
      %v1583 = vsel %vm1221, %v1530, 0
      %v1586 = vsel %vm1221, %v1531, 0
      %v1589 = vsel %vm1221, %v1532, 0
      %v1592 = vsel %vm1221, %v1533, 0
      %v1595 = vsel %vm1221, %v1534, 0
      %v1598 = vsel %vm1221, %v1535, 0
      %v1601 = vsel %vm1221, %v1568, 0
      %v1604 = vsel %vm1221, %v1569, 0
      %v1607 = vsel %vm1221, %v1570, 0
      %v1610 = vsel %vm1221, %v1571, 0
      %v1613 = vsel %vm1221, %v1572, 0
      %v1616 = vsel %vm1221, %v1573, 0
      %v1619 = vsel %vm1221, %v1574, 0
      %v1622 = vsel %vm1221, %v1575, 0
      %1624 = vmatpush.bf16.xpose.msra.mxu0 %v1622
      %1625 = vmatpush.bf16.xpose.msra.mxu0 %v1619
      %1626 = vmatpush.bf16.xpose.msra.mxu0 %v1616
      %1627 = vmatpush.bf16.xpose.msra.mxu0 %v1613
      %1628 = vmatpush.bf16.xpose.msra.mxu0 %v1610
      %1629 = vmatpush.bf16.xpose.msra.mxu0 %v1607
      %1630 = vmatpush.bf16.xpose.msra.mxu0 %v1604
      %1631 = vmatpush.bf16.xpose.msra.mxu0 %v1601
      %1632 = vmatmul.bf16.gmra.mxu0 %v1577
      %v1633 = vpop.f32.mrf.mxu0
      %v1634 = vadd.f32 0.0, %v1633
      %v1635 = vpop.f32.mrf.mxu0
      %v1636 = vadd.f32 0.0, %v1635
      %1637 = vmatmul.bf16.gmra.mxu0 %v1580
      %v1638 = vpop.f32.mrf.mxu0
      %v1639 = vadd.f32 0.0, %v1638
      %v1640 = vpop.f32.mrf.mxu0
      %v1641 = vadd.f32 0.0, %v1640
      %1642 = vmatmul.bf16.gmra.mxu0 %v1583
      %v1643 = vpop.f32.mrf.mxu0
      %v1644 = vadd.f32 0.0, %v1643
      %v1645 = vpop.f32.mrf.mxu0
      %v1646 = vadd.f32 0.0, %v1645
      %1647 = vmatmul.bf16.gmra.mxu0 %v1586
      %v1648 = vpop.f32.mrf.mxu0
      %v1649 = vadd.f32 0.0, %v1648
      %v1650 = vpop.f32.mrf.mxu0
      %v1651 = vadd.f32 0.0, %v1650
      %1652 = vmatmul.bf16.gmra.mxu0 %v1589
      %v1653 = vpop.f32.mrf.mxu0
      %v1654 = vadd.f32 0.0, %v1653
      %v1655 = vpop.f32.mrf.mxu0
      %v1656 = vadd.f32 0.0, %v1655
      %1657 = vmatmul.bf16.gmra.mxu0 %v1592
      %v1658 = vpop.f32.mrf.mxu0
      %v1659 = vadd.f32 0.0, %v1658
      %v1660 = vpop.f32.mrf.mxu0
      %v1661 = vadd.f32 0.0, %v1660
      %1662 = vmatmul.bf16.gmra.mxu0 %v1595
      %v1663 = vpop.f32.mrf.mxu0
      %v1664 = vadd.f32 0.0, %v1663
      %v1665 = vpop.f32.mrf.mxu0
      %v1666 = vadd.f32 0.0, %v1665
      %1667 = vmatmul.bf16.gmra.mxu0 %v1598
      %v1668 = vpop.f32.mrf.mxu0
      %v1669 = vadd.f32 0.0, %v1668
      %v1670 = vpop.f32.mrf.mxu0
      %v1671 = vadd.f32 0.0, %v1670
      %1672 = vdwg.mxu0
      %v1689 = vunpack.c.l.b16 %v869
      %v1690 = vunpack.c.l.b16 %v870
      %v1691 = vunpack.c.l.b16 %v871
      %v1692 = vunpack.c.l.b16 %v872
      %v1693 = vunpack.c.l.b16 %v873
      %v1694 = vunpack.c.l.b16 %v874
      %v1695 = vunpack.c.l.b16 %v875
      %v1696 = vunpack.c.l.b16 %v876
      %v1697 = vunpack.c.l.b16 %v877
      %v1698 = vunpack.c.l.b16 %v878
      %v1699 = vunpack.c.l.b16 %v879
      %v1700 = vunpack.c.l.b16 %v880
      %v1701 = vunpack.c.l.b16 %v881
      %v1702 = vunpack.c.l.b16 %v882
      %v1703 = vunpack.c.l.b16 %v883
      %v1704 = vunpack.c.l.b16 %v884
      %v1705 = vpack.c.b16 %v1690, %v1689
      %v1706 = vpack.c.b16 %v1692, %v1691
      %v1707 = vpack.c.b16 %v1694, %v1693
      %v1708 = vpack.c.b16 %v1696, %v1695
      %v1709 = vpack.c.b16 %v1698, %v1697
      %v1710 = vpack.c.b16 %v1700, %v1699
      %v1711 = vpack.c.b16 %v1702, %v1701
      %v1712 = vpack.c.b16 %v1704, %v1703
      %v1729 = vunpack.c.l.b16 %v997
      %v1730 = vunpack.c.l.b16 %v998
      %v1731 = vunpack.c.l.b16 %v999
      %v1732 = vunpack.c.l.b16 %v1000
      %v1733 = vunpack.c.l.b16 %v1001
      %v1734 = vunpack.c.l.b16 %v1002
      %v1735 = vunpack.c.l.b16 %v1003
      %v1736 = vunpack.c.l.b16 %v1004
      %v1737 = vunpack.c.l.b16 %v1005
      %v1738 = vunpack.c.l.b16 %v1006
      %v1739 = vunpack.c.l.b16 %v1007
      %v1740 = vunpack.c.l.b16 %v1008
      %v1741 = vunpack.c.l.b16 %v1009
      %v1742 = vunpack.c.l.b16 %v1010
      %v1743 = vunpack.c.l.b16 %v1011
      %v1744 = vunpack.c.l.b16 %v1012
      %v1745 = vpack.c.b16 %v1730, %v1729
      %v1746 = vpack.c.b16 %v1732, %v1731
      %v1747 = vpack.c.b16 %v1734, %v1733
      %v1748 = vpack.c.b16 %v1736, %v1735
      %v1749 = vpack.c.b16 %v1738, %v1737
      %v1750 = vpack.c.b16 %v1740, %v1739
      %v1751 = vpack.c.b16 %v1742, %v1741
      %v1752 = vpack.c.b16 %v1744, %v1743
      %v1754 = vsel %vm1221, %v1705, 0
      %v1757 = vsel %vm1221, %v1706, 0
      %v1760 = vsel %vm1221, %v1707, 0
      %v1763 = vsel %vm1221, %v1708, 0
      %v1766 = vsel %vm1221, %v1709, 0
      %v1769 = vsel %vm1221, %v1710, 0
      %v1772 = vsel %vm1221, %v1711, 0
      %v1775 = vsel %vm1221, %v1712, 0
      %v1778 = vsel %vm1221, %v1745, 0
      %v1781 = vsel %vm1221, %v1746, 0
      %v1784 = vsel %vm1221, %v1747, 0
      %v1787 = vsel %vm1221, %v1748, 0
      %v1790 = vsel %vm1221, %v1749, 0
      %v1793 = vsel %vm1221, %v1750, 0
      %v1796 = vsel %vm1221, %v1751, 0
      %v1799 = vsel %vm1221, %v1752, 0
      %1801 = vmatpush.bf16.xpose.msra.mxu0 %v1799
      %1802 = vmatpush.bf16.xpose.msra.mxu0 %v1796
      %1803 = vmatpush.bf16.xpose.msra.mxu0 %v1793
      %1804 = vmatpush.bf16.xpose.msra.mxu0 %v1790
      %1805 = vmatpush.bf16.xpose.msra.mxu0 %v1787
      %1806 = vmatpush.bf16.xpose.msra.mxu0 %v1784
      %1807 = vmatpush.bf16.xpose.msra.mxu0 %v1781
      %1808 = vmatpush.bf16.xpose.msra.mxu0 %v1778
      %1809 = vmatmul.bf16.gmra.mxu0 %v1754
      %v1810 = vpop.f32.mrf.mxu0
      %v1811 = vadd.f32 0.0, %v1810
      %v1812 = vpop.f32.mrf.mxu0
      %v1813 = vadd.f32 0.0, %v1812
      %1814 = vmatmul.bf16.gmra.mxu0 %v1757
      %v1815 = vpop.f32.mrf.mxu0
      %v1816 = vadd.f32 0.0, %v1815
      %v1817 = vpop.f32.mrf.mxu0
      %v1818 = vadd.f32 0.0, %v1817
      %1819 = vmatmul.bf16.gmra.mxu0 %v1760
      %v1820 = vpop.f32.mrf.mxu0
      %v1821 = vadd.f32 0.0, %v1820
      %v1822 = vpop.f32.mrf.mxu0
      %v1823 = vadd.f32 0.0, %v1822
      %1824 = vmatmul.bf16.gmra.mxu0 %v1763
      %v1825 = vpop.f32.mrf.mxu0
      %v1826 = vadd.f32 0.0, %v1825
      %v1827 = vpop.f32.mrf.mxu0
      %v1828 = vadd.f32 0.0, %v1827
      %1829 = vmatmul.bf16.gmra.mxu0 %v1766
      %v1830 = vpop.f32.mrf.mxu0
      %v1831 = vadd.f32 0.0, %v1830
      %v1832 = vpop.f32.mrf.mxu0
      %v1833 = vadd.f32 0.0, %v1832
      %1834 = vmatmul.bf16.gmra.mxu0 %v1769
      %v1835 = vpop.f32.mrf.mxu0
      %v1836 = vadd.f32 0.0, %v1835
      %v1837 = vpop.f32.mrf.mxu0
      %v1838 = vadd.f32 0.0, %v1837
      %1839 = vmatmul.bf16.gmra.mxu0 %v1772
      %v1840 = vpop.f32.mrf.mxu0
      %v1841 = vadd.f32 0.0, %v1840
      %v1842 = vpop.f32.mrf.mxu0
      %v1843 = vadd.f32 0.0, %v1842
      %1844 = vmatmul.bf16.gmra.mxu0 %v1775
      %v1845 = vpop.f32.mrf.mxu0
      %v1846 = vadd.f32 0.0, %v1845
      %v1847 = vpop.f32.mrf.mxu0
      %v1848 = vadd.f32 0.0, %v1847
      %1849 = vdwg.mxu0
      %s1850 = smul.u32 %s23, 128
      %v1851 = vlaneseq
      %v1852 = vand.u32 %v1851, 127
      %v1853 = vstv %s1850
      %v1854 = vadd.s32 %v1853, %v1852
      %vm1855 = vcmp.lt.s32.totalorder %v1854, 8
      %v1856 = vsel %vm1855, 1, 0
      %vm1857 = vcmp.eq.s32.totalorder %v1856, 1
      %v1858 = vsel %vm1857, %v1280, -inf
      %v1859 = vsel %vm1857, %v1282, -inf
      %v1860 = vsel %vm1857, %v1285, -inf
      %v1861 = vsel %vm1857, %v1287, -inf
      %v1862 = vsel %vm1857, %v1290, -inf
      %v1863 = vsel %vm1857, %v1292, -inf
      %v1864 = vsel %vm1857, %v1295, -inf
      %v1865 = vsel %vm1857, %v1297, -inf
      %v1866 = vsel %vm1857, %v1300, -inf
      %v1867 = vsel %vm1857, %v1302, -inf
      %v1868 = vsel %vm1857, %v1305, -inf
      %v1869 = vsel %vm1857, %v1307, -inf
      %v1870 = vsel %vm1857, %v1310, -inf
      %v1871 = vsel %vm1857, %v1312, -inf
      %v1872 = vsel %vm1857, %v1315, -inf
      %v1873 = vsel %vm1857, %v1317, -inf
      %v1874 = vsel %vm1857, %v1457, -inf
      %v1875 = vsel %vm1857, %v1459, -inf
      %v1876 = vsel %vm1857, %v1462, -inf
      %v1877 = vsel %vm1857, %v1464, -inf
      %v1878 = vsel %vm1857, %v1467, -inf
      %v1879 = vsel %vm1857, %v1469, -inf
      %v1880 = vsel %vm1857, %v1472, -inf
      %v1881 = vsel %vm1857, %v1474, -inf
      %v1882 = vsel %vm1857, %v1477, -inf
      %v1883 = vsel %vm1857, %v1479, -inf
      %v1884 = vsel %vm1857, %v1482, -inf
      %v1885 = vsel %vm1857, %v1484, -inf
      %v1886 = vsel %vm1857, %v1487, -inf
      %v1887 = vsel %vm1857, %v1489, -inf
      %v1888 = vsel %vm1857, %v1492, -inf
      %v1889 = vsel %vm1857, %v1494, -inf
      %v1890 = vsel %vm1857, %v1634, -inf
      %v1891 = vsel %vm1857, %v1636, -inf
      %v1892 = vsel %vm1857, %v1639, -inf
      %v1893 = vsel %vm1857, %v1641, -inf
      %v1894 = vsel %vm1857, %v1644, -inf
      %v1895 = vsel %vm1857, %v1646, -inf
      %v1896 = vsel %vm1857, %v1649, -inf
      %v1897 = vsel %vm1857, %v1651, -inf
      %v1898 = vsel %vm1857, %v1654, -inf
      %v1899 = vsel %vm1857, %v1656, -inf
      %v1900 = vsel %vm1857, %v1659, -inf
      %v1901 = vsel %vm1857, %v1661, -inf
      %v1902 = vsel %vm1857, %v1664, -inf
      %v1903 = vsel %vm1857, %v1666, -inf
      %v1904 = vsel %vm1857, %v1669, -inf
      %v1905 = vsel %vm1857, %v1671, -inf
      %v1906 = vsel %vm1857, %v1811, -inf
      %v1907 = vsel %vm1857, %v1813, -inf
      %v1908 = vsel %vm1857, %v1816, -inf
      %v1909 = vsel %vm1857, %v1818, -inf
      %v1910 = vsel %vm1857, %v1821, -inf
      %v1911 = vsel %vm1857, %v1823, -inf
      %v1912 = vsel %vm1857, %v1826, -inf
      %v1913 = vsel %vm1857, %v1828, -inf
      %v1914 = vsel %vm1857, %v1831, -inf
      %v1915 = vsel %vm1857, %v1833, -inf
      %v1916 = vsel %vm1857, %v1836, -inf
      %v1917 = vsel %vm1857, %v1838, -inf
      %v1918 = vsel %vm1857, %v1841, -inf
      %v1919 = vsel %vm1857, %v1843, -inf
      %v1920 = vsel %vm1857, %v1846, -inf
      %v1921 = vsel %vm1857, %v1848, -inf
      %v1922 = vld [vmem:[#allocation3] sm:$0xff]
      %v1923 = vld [vmem:[#allocation3 + $0x8] sm:$0xff]
      %v1924 = vld [vmem:[#allocation3 + $0x10] sm:$0xff]
      %v1925 = vld [vmem:[#allocation3 + $0x18] sm:$0xff]
      %v1926 = vld [vmem:[#allocation3 + $0x20] sm:$0xff]
      %v1927 = vld [vmem:[#allocation3 + $0x28] sm:$0xff]
      %v1928 = vld [vmem:[#allocation3 + $0x30] sm:$0xff]
      %v1929 = vld [vmem:[#allocation3 + $0x38] sm:$0xff]
      %v1930 = vld [vmem:[#allocation3 + $0x40] sm:$0xff]
      %v1931 = vld [vmem:[#allocation3 + $0x48] sm:$0xff]
      %v1932 = vld [vmem:[#allocation3 + $0x50] sm:$0xff]
      %v1933 = vld [vmem:[#allocation3 + $0x58] sm:$0xff]
      %v1934 = vld [vmem:[#allocation3 + $0x60] sm:$0xff]
      %v1935 = vld [vmem:[#allocation3 + $0x68] sm:$0xff]
      %v1936 = vld [vmem:[#allocation3 + $0x70] sm:$0xff]
      %v1937 = vld [vmem:[#allocation3 + $0x78] sm:$0xff]
      %v1938 = vld [vmem:[#allocation3 + $0x80] sm:$0xff]
      %v1939 = vld [vmem:[#allocation3 + $0x88] sm:$0xff]
      %v1940 = vld [vmem:[#allocation3 + $0x90] sm:$0xff]
      %v1941 = vld [vmem:[#allocation3 + $0x98] sm:$0xff]
      %v1942 = vld [vmem:[#allocation3 + $0xa0] sm:$0xff]
      %v1943 = vld [vmem:[#allocation3 + $0xa8] sm:$0xff]
      %v1944 = vld [vmem:[#allocation3 + $0xb0] sm:$0xff]
      %v1945 = vld [vmem:[#allocation3 + $0xb8] sm:$0xff]
      %v1946 = vld [vmem:[#allocation3 + $0xc0] sm:$0xff]
      %v1947 = vld [vmem:[#allocation3 + $0xc8] sm:$0xff]
      %v1948 = vld [vmem:[#allocation3 + $0xd0] sm:$0xff]
      %v1949 = vld [vmem:[#allocation3 + $0xd8] sm:$0xff]
      %v1950 = vld [vmem:[#allocation3 + $0xe0] sm:$0xff]
      %v1951 = vld [vmem:[#allocation3 + $0xe8] sm:$0xff]
      %v1952 = vld [vmem:[#allocation3 + $0xf0] sm:$0xff]
      %v1953 = vld [vmem:[#allocation3 + $0xf8] sm:$0xff]
      %v1954 = vld [vmem:[#allocation3 + $0x100] sm:$0xff]
      %v1955 = vld [vmem:[#allocation3 + $0x108] sm:$0xff]
      %v1956 = vld [vmem:[#allocation3 + $0x110] sm:$0xff]
      %v1957 = vld [vmem:[#allocation3 + $0x118] sm:$0xff]
      %v1958 = vld [vmem:[#allocation3 + $0x120] sm:$0xff]
      %v1959 = vld [vmem:[#allocation3 + $0x128] sm:$0xff]
      %v1960 = vld [vmem:[#allocation3 + $0x130] sm:$0xff]
      %v1961 = vld [vmem:[#allocation3 + $0x138] sm:$0xff]
      %v1962 = vld [vmem:[#allocation3 + $0x140] sm:$0xff]
      %v1963 = vld [vmem:[#allocation3 + $0x148] sm:$0xff]
      %v1964 = vld [vmem:[#allocation3 + $0x150] sm:$0xff]
      %v1965 = vld [vmem:[#allocation3 + $0x158] sm:$0xff]
      %v1966 = vld [vmem:[#allocation3 + $0x160] sm:$0xff]
      %v1967 = vld [vmem:[#allocation3 + $0x168] sm:$0xff]
      %v1968 = vld [vmem:[#allocation3 + $0x170] sm:$0xff]
      %v1969 = vld [vmem:[#allocation3 + $0x178] sm:$0xff]
      %v1970 = vld [vmem:[#allocation3 + $0x180] sm:$0xff]
      %v1971 = vld [vmem:[#allocation3 + $0x188] sm:$0xff]
      %v1972 = vld [vmem:[#allocation3 + $0x190] sm:$0xff]
      %v1973 = vld [vmem:[#allocation3 + $0x198] sm:$0xff]
      %v1974 = vld [vmem:[#allocation3 + $0x1a0] sm:$0xff]
      %v1975 = vld [vmem:[#allocation3 + $0x1a8] sm:$0xff]
      %v1976 = vld [vmem:[#allocation3 + $0x1b0] sm:$0xff]
      %v1977 = vld [vmem:[#allocation3 + $0x1b8] sm:$0xff]
      %v1978 = vld [vmem:[#allocation3 + $0x1c0] sm:$0xff]
      %v1979 = vld [vmem:[#allocation3 + $0x1c8] sm:$0xff]
      %v1980 = vld [vmem:[#allocation3 + $0x1d0] sm:$0xff]
      %v1981 = vld [vmem:[#allocation3 + $0x1d8] sm:$0xff]
      %v1982 = vld [vmem:[#allocation3 + $0x1e0] sm:$0xff]
      %v1983 = vld [vmem:[#allocation3 + $0x1e8] sm:$0xff]
      %v1984 = vld [vmem:[#allocation3 + $0x1f0] sm:$0xff]
      %v1985 = vld [vmem:[#allocation3 + $0x1f8] sm:$0xff]
      %1986 = vmax.xlane.f32.xlu0 %v1858
      %v1987 = vpop.xlane.xlu0 %1986
      %1988 = vmax.xlane.f32.xlu0 %v1859
      %v1989 = vpop.xlane.xlu0 %1988
      %1990 = vmax.xlane.f32.xlu0 %v1860
      %v1991 = vpop.xlane.xlu0 %1990
      %1992 = vmax.xlane.f32.xlu0 %v1861
      %v1993 = vpop.xlane.xlu0 %1992
      %1994 = vmax.xlane.f32.xlu0 %v1862
      %v1995 = vpop.xlane.xlu0 %1994
      %1996 = vmax.xlane.f32.xlu0 %v1863
      %v1997 = vpop.xlane.xlu0 %1996
      %1998 = vmax.xlane.f32.xlu0 %v1864
      %v1999 = vpop.xlane.xlu0 %1998
      %2000 = vmax.xlane.f32.xlu0 %v1865
      %v2001 = vpop.xlane.xlu0 %2000
      %2002 = vmax.xlane.f32.xlu0 %v1866
      %v2003 = vpop.xlane.xlu0 %2002
      %2004 = vmax.xlane.f32.xlu0 %v1867
      %v2005 = vpop.xlane.xlu0 %2004
      %2006 = vmax.xlane.f32.xlu0 %v1868
      %v2007 = vpop.xlane.xlu0 %2006
      %2008 = vmax.xlane.f32.xlu0 %v1869
      %v2009 = vpop.xlane.xlu0 %2008
      %2010 = vmax.xlane.f32.xlu0 %v1870
      %v2011 = vpop.xlane.xlu0 %2010
      %2012 = vmax.xlane.f32.xlu0 %v1871
      %v2013 = vpop.xlane.xlu0 %2012
      %2014 = vmax.xlane.f32.xlu0 %v1872
      %v2015 = vpop.xlane.xlu0 %2014
      %2016 = vmax.xlane.f32.xlu0 %v1873
      %v2017 = vpop.xlane.xlu0 %2016
      %2018 = vmax.xlane.f32.xlu0 %v1874
      %v2019 = vpop.xlane.xlu0 %2018
      %2020 = vmax.xlane.f32.xlu0 %v1875
      %v2021 = vpop.xlane.xlu0 %2020
      %2022 = vmax.xlane.f32.xlu0 %v1876
      %v2023 = vpop.xlane.xlu0 %2022
      %2024 = vmax.xlane.f32.xlu0 %v1877
      %v2025 = vpop.xlane.xlu0 %2024
      %2026 = vmax.xlane.f32.xlu0 %v1878
      %v2027 = vpop.xlane.xlu0 %2026
      %2028 = vmax.xlane.f32.xlu0 %v1879
      %v2029 = vpop.xlane.xlu0 %2028
      %2030 = vmax.xlane.f32.xlu0 %v1880
      %v2031 = vpop.xlane.xlu0 %2030
      %2032 = vmax.xlane.f32.xlu0 %v1881
      %v2033 = vpop.xlane.xlu0 %2032
      %2034 = vmax.xlane.f32.xlu0 %v1882
      %v2035 = vpop.xlane.xlu0 %2034
      %2036 = vmax.xlane.f32.xlu0 %v1883
      %v2037 = vpop.xlane.xlu0 %2036
      %2038 = vmax.xlane.f32.xlu0 %v1884
      %v2039 = vpop.xlane.xlu0 %2038
      %2040 = vmax.xlane.f32.xlu0 %v1885
      %v2041 = vpop.xlane.xlu0 %2040
      %2042 = vmax.xlane.f32.xlu0 %v1886
      %v2043 = vpop.xlane.xlu0 %2042
      %2044 = vmax.xlane.f32.xlu0 %v1887
      %v2045 = vpop.xlane.xlu0 %2044
      %2046 = vmax.xlane.f32.xlu0 %v1888
      %v2047 = vpop.xlane.xlu0 %2046
      %2048 = vmax.xlane.f32.xlu0 %v1889
      %v2049 = vpop.xlane.xlu0 %2048
      %2050 = vmax.xlane.f32.xlu0 %v1890
      %v2051 = vpop.xlane.xlu0 %2050
      %2052 = vmax.xlane.f32.xlu0 %v1891
      %v2053 = vpop.xlane.xlu0 %2052
      %2054 = vmax.xlane.f32.xlu0 %v1892
      %v2055 = vpop.xlane.xlu0 %2054
      %2056 = vmax.xlane.f32.xlu0 %v1893
      %v2057 = vpop.xlane.xlu0 %2056
      %2058 = vmax.xlane.f32.xlu0 %v1894
      %v2059 = vpop.xlane.xlu0 %2058
      %2060 = vmax.xlane.f32.xlu0 %v1895
      %v2061 = vpop.xlane.xlu0 %2060
      %2062 = vmax.xlane.f32.xlu0 %v1896
      %v2063 = vpop.xlane.xlu0 %2062
      %2064 = vmax.xlane.f32.xlu0 %v1897
      %v2065 = vpop.xlane.xlu0 %2064
      %2066 = vmax.xlane.f32.xlu0 %v1898
      %v2067 = vpop.xlane.xlu0 %2066
      %2068 = vmax.xlane.f32.xlu0 %v1899
      %v2069 = vpop.xlane.xlu0 %2068
      %2070 = vmax.xlane.f32.xlu0 %v1900
      %v2071 = vpop.xlane.xlu0 %2070
      %2072 = vmax.xlane.f32.xlu0 %v1901
      %v2073 = vpop.xlane.xlu0 %2072
      %2074 = vmax.xlane.f32.xlu0 %v1902
      %v2075 = vpop.xlane.xlu0 %2074
      %2076 = vmax.xlane.f32.xlu0 %v1903
      %v2077 = vpop.xlane.xlu0 %2076
      %2078 = vmax.xlane.f32.xlu0 %v1904
      %v2079 = vpop.xlane.xlu0 %2078
      %2080 = vmax.xlane.f32.xlu0 %v1905
      %v2081 = vpop.xlane.xlu0 %2080
      %2082 = vmax.xlane.f32.xlu0 %v1906
      %v2083 = vpop.xlane.xlu0 %2082
      %2084 = vmax.xlane.f32.xlu0 %v1907
      %v2085 = vpop.xlane.xlu0 %2084
      %2086 = vmax.xlane.f32.xlu0 %v1908
      %v2087 = vpop.xlane.xlu0 %2086
      %2088 = vmax.xlane.f32.xlu0 %v1909
      %v2089 = vpop.xlane.xlu0 %2088
      %2090 = vmax.xlane.f32.xlu0 %v1910
      %v2091 = vpop.xlane.xlu0 %2090
      %2092 = vmax.xlane.f32.xlu0 %v1911
      %v2093 = vpop.xlane.xlu0 %2092
      %2094 = vmax.xlane.f32.xlu0 %v1912
      %v2095 = vpop.xlane.xlu0 %2094
      %2096 = vmax.xlane.f32.xlu0 %v1913
      %v2097 = vpop.xlane.xlu0 %2096
      %2098 = vmax.xlane.f32.xlu0 %v1914
      %v2099 = vpop.xlane.xlu0 %2098
      %2100 = vmax.xlane.f32.xlu0 %v1915
      %v2101 = vpop.xlane.xlu0 %2100
      %2102 = vmax.xlane.f32.xlu0 %v1916
      %v2103 = vpop.xlane.xlu0 %2102
      %2104 = vmax.xlane.f32.xlu0 %v1917
      %v2105 = vpop.xlane.xlu0 %2104
      %2106 = vmax.xlane.f32.xlu0 %v1918
      %v2107 = vpop.xlane.xlu0 %2106
      %2108 = vmax.xlane.f32.xlu0 %v1919
      %v2109 = vpop.xlane.xlu0 %2108
      %2110 = vmax.xlane.f32.xlu0 %v1920
      %v2111 = vpop.xlane.xlu0 %2110
      %2112 = vmax.xlane.f32.xlu0 %v1921
      %v2113 = vpop.xlane.xlu0 %2112
      %v2114 = vmax.f32 %v1922, %v1987
      %v2115 = vmax.f32 %v1923, %v1989
      %v2116 = vmax.f32 %v1924, %v1991
      %v2117 = vmax.f32 %v1925, %v1993
      %v2118 = vmax.f32 %v1926, %v1995
      %v2119 = vmax.f32 %v1927, %v1997
      %v2120 = vmax.f32 %v1928, %v1999
      %v2121 = vmax.f32 %v1929, %v2001
      %v2122 = vmax.f32 %v1930, %v2003
      %v2123 = vmax.f32 %v1931, %v2005
      %v2124 = vmax.f32 %v1932, %v2007
      %v2125 = vmax.f32 %v1933, %v2009
      %v2126 = vmax.f32 %v1934, %v2011
      %v2127 = vmax.f32 %v1935, %v2013
      %v2128 = vmax.f32 %v1936, %v2015
      %v2129 = vmax.f32 %v1937, %v2017
      %v2130 = vmax.f32 %v1938, %v2019
      %v2131 = vmax.f32 %v1939, %v2021
      %v2132 = vmax.f32 %v1940, %v2023
      %v2133 = vmax.f32 %v1941, %v2025
      %v2134 = vmax.f32 %v1942, %v2027
      %v2135 = vmax.f32 %v1943, %v2029
      %v2136 = vmax.f32 %v1944, %v2031
      %v2137 = vmax.f32 %v1945, %v2033
      %v2138 = vmax.f32 %v1946, %v2035
      %v2139 = vmax.f32 %v1947, %v2037
      %v2140 = vmax.f32 %v1948, %v2039
      %v2141 = vmax.f32 %v1949, %v2041
      %v2142 = vmax.f32 %v1950, %v2043
      %v2143 = vmax.f32 %v1951, %v2045
      %v2144 = vmax.f32 %v1952, %v2047
      %v2145 = vmax.f32 %v1953, %v2049
      %v2146 = vmax.f32 %v1954, %v2051
      %v2147 = vmax.f32 %v1955, %v2053
      %v2148 = vmax.f32 %v1956, %v2055
      %v2149 = vmax.f32 %v1957, %v2057
      %v2150 = vmax.f32 %v1958, %v2059
      %v2151 = vmax.f32 %v1959, %v2061
      %v2152 = vmax.f32 %v1960, %v2063
      %v2153 = vmax.f32 %v1961, %v2065
      %v2154 = vmax.f32 %v1962, %v2067
      %v2155 = vmax.f32 %v1963, %v2069
      %v2156 = vmax.f32 %v1964, %v2071
      %v2157 = vmax.f32 %v1965, %v2073
      %v2158 = vmax.f32 %v1966, %v2075
      %v2159 = vmax.f32 %v1967, %v2077
      %v2160 = vmax.f32 %v1968, %v2079
      %v2161 = vmax.f32 %v1969, %v2081
      %v2162 = vmax.f32 %v1970, %v2083
      %v2163 = vmax.f32 %v1971, %v2085
      %v2164 = vmax.f32 %v1972, %v2087
      %v2165 = vmax.f32 %v1973, %v2089
      %v2166 = vmax.f32 %v1974, %v2091
      %v2167 = vmax.f32 %v1975, %v2093
      %v2168 = vmax.f32 %v1976, %v2095
      %v2169 = vmax.f32 %v1977, %v2097
      %v2170 = vmax.f32 %v1978, %v2099
      %v2171 = vmax.f32 %v1979, %v2101
      %v2172 = vmax.f32 %v1980, %v2103
      %v2173 = vmax.f32 %v1981, %v2105
      %v2174 = vmax.f32 %v1982, %v2107
      %v2175 = vmax.f32 %v1983, %v2109
      %v2176 = vmax.f32 %v1984, %v2111
      %v2177 = vmax.f32 %v1985, %v2113
      %v2178 = vsub.f32 %v1922, %v2114
      %v2179 = vsub.f32 %v1923, %v2115
      %v2180 = vsub.f32 %v1924, %v2116
      %v2181 = vsub.f32 %v1925, %v2117
      %v2182 = vsub.f32 %v1926, %v2118
      %v2183 = vsub.f32 %v1927, %v2119
      %v2184 = vsub.f32 %v1928, %v2120
      %v2185 = vsub.f32 %v1929, %v2121
      %v2186 = vsub.f32 %v1930, %v2122
      %v2187 = vsub.f32 %v1931, %v2123
      %v2188 = vsub.f32 %v1932, %v2124
      %v2189 = vsub.f32 %v1933, %v2125
      %v2190 = vsub.f32 %v1934, %v2126
      %v2191 = vsub.f32 %v1935, %v2127
      %v2192 = vsub.f32 %v1936, %v2128
      %v2193 = vsub.f32 %v1937, %v2129
      %v2194 = vsub.f32 %v1938, %v2130
      %v2195 = vsub.f32 %v1939, %v2131
      %v2196 = vsub.f32 %v1940, %v2132
      %v2197 = vsub.f32 %v1941, %v2133
      %v2198 = vsub.f32 %v1942, %v2134
      %v2199 = vsub.f32 %v1943, %v2135
      %v2200 = vsub.f32 %v1944, %v2136
      %v2201 = vsub.f32 %v1945, %v2137
      %v2202 = vsub.f32 %v1946, %v2138
      %v2203 = vsub.f32 %v1947, %v2139
      %v2204 = vsub.f32 %v1948, %v2140
      %v2205 = vsub.f32 %v1949, %v2141
      %v2206 = vsub.f32 %v1950, %v2142
      %v2207 = vsub.f32 %v1951, %v2143
      %v2208 = vsub.f32 %v1952, %v2144
      %v2209 = vsub.f32 %v1953, %v2145
      %v2210 = vsub.f32 %v1954, %v2146
      %v2211 = vsub.f32 %v1955, %v2147
      %v2212 = vsub.f32 %v1956, %v2148
      %v2213 = vsub.f32 %v1957, %v2149
      %v2214 = vsub.f32 %v1958, %v2150
      %v2215 = vsub.f32 %v1959, %v2151
      %v2216 = vsub.f32 %v1960, %v2152
      %v2217 = vsub.f32 %v1961, %v2153
      %v2218 = vsub.f32 %v1962, %v2154
      %v2219 = vsub.f32 %v1963, %v2155
      %v2220 = vsub.f32 %v1964, %v2156
      %v2221 = vsub.f32 %v1965, %v2157
      %v2222 = vsub.f32 %v1966, %v2158
      %v2223 = vsub.f32 %v1967, %v2159
      %v2224 = vsub.f32 %v1968, %v2160
      %v2225 = vsub.f32 %v1969, %v2161
      %v2226 = vsub.f32 %v1970, %v2162
      %v2227 = vsub.f32 %v1971, %v2163
      %v2228 = vsub.f32 %v1972, %v2164
      %v2229 = vsub.f32 %v1973, %v2165
      %v2230 = vsub.f32 %v1974, %v2166
      %v2231 = vsub.f32 %v1975, %v2167
      %v2232 = vsub.f32 %v1976, %v2168
      %v2233 = vsub.f32 %v1977, %v2169
      %v2234 = vsub.f32 %v1978, %v2170
      %v2235 = vsub.f32 %v1979, %v2171
      %v2236 = vsub.f32 %v1980, %v2172
      %v2237 = vsub.f32 %v1981, %v2173
      %v2238 = vsub.f32 %v1982, %v2174
      %v2239 = vsub.f32 %v1983, %v2175
      %v2240 = vsub.f32 %v1984, %v2176
      %v2241 = vsub.f32 %v1985, %v2177
      %v2242 = vmul.f32 %v2178, 1.442695
      %v2243 = vpow.pop %v2242
      %v2244 = vmul.f32 %v2179, 1.442695
      %v2245 = vpow.pop %v2244
      %v2246 = vmul.f32 %v2180, 1.442695
      %v2247 = vpow.pop %v2246
      %v2248 = vmul.f32 %v2181, 1.442695
      %v2249 = vpow.pop %v2248
      %v2250 = vmul.f32 %v2182, 1.442695
      %v2251 = vpow.pop %v2250
      %v2252 = vmul.f32 %v2183, 1.442695
      %v2253 = vpow.pop %v2252
      %v2254 = vmul.f32 %v2184, 1.442695
      %v2255 = vpow.pop %v2254
      %v2256 = vmul.f32 %v2185, 1.442695
      %v2257 = vpow.pop %v2256
      %v2258 = vmul.f32 %v2186, 1.442695
      %v2259 = vpow.pop %v2258
      %v2260 = vmul.f32 %v2187, 1.442695
      %v2261 = vpow.pop %v2260
      %v2262 = vmul.f32 %v2188, 1.442695
      %v2263 = vpow.pop %v2262
      %v2264 = vmul.f32 %v2189, 1.442695
      %v2265 = vpow.pop %v2264
      %v2266 = vmul.f32 %v2190, 1.442695
      %v2267 = vpow.pop %v2266
      %v2268 = vmul.f32 %v2191, 1.442695
      %v2269 = vpow.pop %v2268
      %v2270 = vmul.f32 %v2192, 1.442695
      %v2271 = vpow.pop %v2270
      %v2272 = vmul.f32 %v2193, 1.442695
      %v2273 = vpow.pop %v2272
      %v2274 = vmul.f32 %v2194, 1.442695
      %v2275 = vpow.pop %v2274
      %v2276 = vmul.f32 %v2195, 1.442695
      %v2277 = vpow.pop %v2276
      %v2278 = vmul.f32 %v2196, 1.442695
      %v2279 = vpow.pop %v2278
      %v2280 = vmul.f32 %v2197, 1.442695
      %v2281 = vpow.pop %v2280
      %v2282 = vmul.f32 %v2198, 1.442695
      %v2283 = vpow.pop %v2282
      %v2284 = vmul.f32 %v2199, 1.442695
      %v2285 = vpow.pop %v2284
      %v2286 = vmul.f32 %v2200, 1.442695
      %v2287 = vpow.pop %v2286
      %v2288 = vmul.f32 %v2201, 1.442695
      %v2289 = vpow.pop %v2288
      %v2290 = vmul.f32 %v2202, 1.442695
      %v2291 = vpow.pop %v2290
      %v2292 = vmul.f32 %v2203, 1.442695
      %v2293 = vpow.pop %v2292
      %v2294 = vmul.f32 %v2204, 1.442695
      %v2295 = vpow.pop %v2294
      %v2296 = vmul.f32 %v2205, 1.442695
      %v2297 = vpow.pop %v2296
      %v2298 = vmul.f32 %v2206, 1.442695
      %v2299 = vpow.pop %v2298
      %v2300 = vmul.f32 %v2207, 1.442695
      %v2301 = vpow.pop %v2300
      %v2302 = vmul.f32 %v2208, 1.442695
      %v2303 = vpow.pop %v2302
      %v2304 = vmul.f32 %v2209, 1.442695
      %v2305 = vpow.pop %v2304
      %v2306 = vmul.f32 %v2210, 1.442695
      %v2307 = vpow.pop %v2306
      %v2308 = vmul.f32 %v2211, 1.442695
      %v2309 = vpow.pop %v2308
      %v2310 = vmul.f32 %v2212, 1.442695
      %v2311 = vpow.pop %v2310
      %v2312 = vmul.f32 %v2213, 1.442695
      %v2313 = vpow.pop %v2312
      %v2314 = vmul.f32 %v2214, 1.442695
      %v2315 = vpow.pop %v2314
      %v2316 = vmul.f32 %v2215, 1.442695
      %v2317 = vpow.pop %v2316
      %v2318 = vmul.f32 %v2216, 1.442695
      %v2319 = vpow.pop %v2318
      %v2320 = vmul.f32 %v2217, 1.442695
      %v2321 = vpow.pop %v2320
      %v2322 = vmul.f32 %v2218, 1.442695
      %v2323 = vpow.pop %v2322
      %v2324 = vmul.f32 %v2219, 1.442695
      %v2325 = vpow.pop %v2324
      %v2326 = vmul.f32 %v2220, 1.442695
      %v2327 = vpow.pop %v2326
      %v2328 = vmul.f32 %v2221, 1.442695
      %v2329 = vpow.pop %v2328
      %v2330 = vmul.f32 %v2222, 1.442695
      %v2331 = vpow.pop %v2330
      %v2332 = vmul.f32 %v2223, 1.442695
      %v2333 = vpow.pop %v2332
      %v2334 = vmul.f32 %v2224, 1.442695
      %v2335 = vpow.pop %v2334
      %v2336 = vmul.f32 %v2225, 1.442695
      %v2337 = vpow.pop %v2336
      %v2338 = vmul.f32 %v2226, 1.442695
      %v2339 = vpow.pop %v2338
      %v2340 = vmul.f32 %v2227, 1.442695
      %v2341 = vpow.pop %v2340
      %v2342 = vmul.f32 %v2228, 1.442695
      %v2343 = vpow.pop %v2342
      %v2344 = vmul.f32 %v2229, 1.442695
      %v2345 = vpow.pop %v2344
      %v2346 = vmul.f32 %v2230, 1.442695
      %v2347 = vpow.pop %v2346
      %v2348 = vmul.f32 %v2231, 1.442695
      %v2349 = vpow.pop %v2348
      %v2350 = vmul.f32 %v2232, 1.442695
      %v2351 = vpow.pop %v2350
      %v2352 = vmul.f32 %v2233, 1.442695
      %v2353 = vpow.pop %v2352
      %v2354 = vmul.f32 %v2234, 1.442695
      %v2355 = vpow.pop %v2354
      %v2356 = vmul.f32 %v2235, 1.442695
      %v2357 = vpow.pop %v2356
      %v2358 = vmul.f32 %v2236, 1.442695
      %v2359 = vpow.pop %v2358
      %v2360 = vmul.f32 %v2237, 1.442695
      %v2361 = vpow.pop %v2360
      %v2362 = vmul.f32 %v2238, 1.442695
      %v2363 = vpow.pop %v2362
      %v2364 = vmul.f32 %v2239, 1.442695
      %v2365 = vpow.pop %v2364
      %v2366 = vmul.f32 %v2240, 1.442695
      %v2367 = vpow.pop %v2366
      %v2368 = vmul.f32 %v2241, 1.442695
      %v2369 = vpow.pop %v2368
      %2371 = vset.pattern.permute.xlu0 0
      %2372 = vperm.xlu0 %2371, %v2114
      %v2373 = vpop.permute.xlu0 %2372
      %2376 = vset.pattern.permute.xlu0 0
      %2377 = vperm.xlu0 %2376, %v2115
      %v2378 = vpop.permute.xlu0 %2377
      %2381 = vset.pattern.permute.xlu0 0
      %2382 = vperm.xlu0 %2381, %v2116
      %v2383 = vpop.permute.xlu0 %2382
      %2386 = vset.pattern.permute.xlu0 0
      %2387 = vperm.xlu0 %2386, %v2117
      %v2388 = vpop.permute.xlu0 %2387
      %2391 = vset.pattern.permute.xlu0 0
      %2392 = vperm.xlu0 %2391, %v2118
      %v2393 = vpop.permute.xlu0 %2392
      %2396 = vset.pattern.permute.xlu0 0
      %2397 = vperm.xlu0 %2396, %v2119
      %v2398 = vpop.permute.xlu0 %2397
      %2401 = vset.pattern.permute.xlu0 0
      %2402 = vperm.xlu0 %2401, %v2120
      %v2403 = vpop.permute.xlu0 %2402
      %2406 = vset.pattern.permute.xlu0 0
      %2407 = vperm.xlu0 %2406, %v2121
      %v2408 = vpop.permute.xlu0 %2407
      %2411 = vset.pattern.permute.xlu0 0
      %2412 = vperm.xlu0 %2411, %v2122
      %v2413 = vpop.permute.xlu0 %2412
      %2416 = vset.pattern.permute.xlu0 0
      %2417 = vperm.xlu0 %2416, %v2123
      %v2418 = vpop.permute.xlu0 %2417
      %2421 = vset.pattern.permute.xlu0 0
      %2422 = vperm.xlu0 %2421, %v2124
      %v2423 = vpop.permute.xlu0 %2422
      %2426 = vset.pattern.permute.xlu0 0
      %2427 = vperm.xlu0 %2426, %v2125
      %v2428 = vpop.permute.xlu0 %2427
      %2431 = vset.pattern.permute.xlu0 0
      %2432 = vperm.xlu0 %2431, %v2126
      %v2433 = vpop.permute.xlu0 %2432
      %2436 = vset.pattern.permute.xlu0 0
      %2437 = vperm.xlu0 %2436, %v2127
      %v2438 = vpop.permute.xlu0 %2437
      %2441 = vset.pattern.permute.xlu0 0
      %2442 = vperm.xlu0 %2441, %v2128
      %v2443 = vpop.permute.xlu0 %2442
      %2446 = vset.pattern.permute.xlu0 0
      %2447 = vperm.xlu0 %2446, %v2129
      %v2448 = vpop.permute.xlu0 %2447
      %2451 = vset.pattern.permute.xlu0 0
      %2452 = vperm.xlu0 %2451, %v2130
      %v2453 = vpop.permute.xlu0 %2452
      %2456 = vset.pattern.permute.xlu0 0
      %2457 = vperm.xlu0 %2456, %v2131
      %v2458 = vpop.permute.xlu0 %2457
      %2461 = vset.pattern.permute.xlu0 0
      %2462 = vperm.xlu0 %2461, %v2132
      %v2463 = vpop.permute.xlu0 %2462
      %2466 = vset.pattern.permute.xlu0 0
      %2467 = vperm.xlu0 %2466, %v2133
      %v2468 = vpop.permute.xlu0 %2467
      %2471 = vset.pattern.permute.xlu0 0
      %2472 = vperm.xlu0 %2471, %v2134
      %v2473 = vpop.permute.xlu0 %2472
      %2476 = vset.pattern.permute.xlu0 0
      %2477 = vperm.xlu0 %2476, %v2135
      %v2478 = vpop.permute.xlu0 %2477
      %2481 = vset.pattern.permute.xlu0 0
      %2482 = vperm.xlu0 %2481, %v2136
      %v2483 = vpop.permute.xlu0 %2482
      %2486 = vset.pattern.permute.xlu0 0
      %2487 = vperm.xlu0 %2486, %v2137
      %v2488 = vpop.permute.xlu0 %2487
      %2491 = vset.pattern.permute.xlu0 0
      %2492 = vperm.xlu0 %2491, %v2138
      %v2493 = vpop.permute.xlu0 %2492
      %2496 = vset.pattern.permute.xlu0 0
      %2497 = vperm.xlu0 %2496, %v2139
      %v2498 = vpop.permute.xlu0 %2497
      %2501 = vset.pattern.permute.xlu0 0
      %2502 = vperm.xlu0 %2501, %v2140
      %v2503 = vpop.permute.xlu0 %2502
      %2506 = vset.pattern.permute.xlu0 0
      %2507 = vperm.xlu0 %2506, %v2141
      %v2508 = vpop.permute.xlu0 %2507
      %2511 = vset.pattern.permute.xlu0 0
      %2512 = vperm.xlu0 %2511, %v2142
      %v2513 = vpop.permute.xlu0 %2512
      %2516 = vset.pattern.permute.xlu0 0
      %2517 = vperm.xlu0 %2516, %v2143
      %v2518 = vpop.permute.xlu0 %2517
      %2521 = vset.pattern.permute.xlu0 0
      %2522 = vperm.xlu0 %2521, %v2144
      %v2523 = vpop.permute.xlu0 %2522
      %2526 = vset.pattern.permute.xlu0 0
      %2527 = vperm.xlu0 %2526, %v2145
      %v2528 = vpop.permute.xlu0 %2527
      %2531 = vset.pattern.permute.xlu0 0
      %2532 = vperm.xlu0 %2531, %v2146
      %v2533 = vpop.permute.xlu0 %2532
      %2536 = vset.pattern.permute.xlu0 0
      %2537 = vperm.xlu0 %2536, %v2147
      %v2538 = vpop.permute.xlu0 %2537
      %2541 = vset.pattern.permute.xlu0 0
      %2542 = vperm.xlu0 %2541, %v2148
      %v2543 = vpop.permute.xlu0 %2542
      %2546 = vset.pattern.permute.xlu0 0
      %2547 = vperm.xlu0 %2546, %v2149
      %v2548 = vpop.permute.xlu0 %2547
      %2551 = vset.pattern.permute.xlu0 0
      %2552 = vperm.xlu0 %2551, %v2150
      %v2553 = vpop.permute.xlu0 %2552
      %2556 = vset.pattern.permute.xlu0 0
      %2557 = vperm.xlu0 %2556, %v2151
      %v2558 = vpop.permute.xlu0 %2557
      %2561 = vset.pattern.permute.xlu0 0
      %2562 = vperm.xlu0 %2561, %v2152
      %v2563 = vpop.permute.xlu0 %2562
      %2566 = vset.pattern.permute.xlu0 0
      %2567 = vperm.xlu0 %2566, %v2153
      %v2568 = vpop.permute.xlu0 %2567
      %2571 = vset.pattern.permute.xlu0 0
      %2572 = vperm.xlu0 %2571, %v2154
      %v2573 = vpop.permute.xlu0 %2572
      %2576 = vset.pattern.permute.xlu0 0
      %2577 = vperm.xlu0 %2576, %v2155
      %v2578 = vpop.permute.xlu0 %2577
      %2581 = vset.pattern.permute.xlu0 0
      %2582 = vperm.xlu0 %2581, %v2156
      %v2583 = vpop.permute.xlu0 %2582
      %2586 = vset.pattern.permute.xlu0 0
      %2587 = vperm.xlu0 %2586, %v2157
      %v2588 = vpop.permute.xlu0 %2587
      %2591 = vset.pattern.permute.xlu0 0
      %2592 = vperm.xlu0 %2591, %v2158
      %v2593 = vpop.permute.xlu0 %2592
      %2596 = vset.pattern.permute.xlu0 0
      %2597 = vperm.xlu0 %2596, %v2159
      %v2598 = vpop.permute.xlu0 %2597
      %2601 = vset.pattern.permute.xlu0 0
      %2602 = vperm.xlu0 %2601, %v2160
      %v2603 = vpop.permute.xlu0 %2602
      %2606 = vset.pattern.permute.xlu0 0
      %2607 = vperm.xlu0 %2606, %v2161
      %v2608 = vpop.permute.xlu0 %2607
      %2611 = vset.pattern.permute.xlu0 0
      %2612 = vperm.xlu0 %2611, %v2162
      %v2613 = vpop.permute.xlu0 %2612
      %2616 = vset.pattern.permute.xlu0 0
      %2617 = vperm.xlu0 %2616, %v2163
      %v2618 = vpop.permute.xlu0 %2617
      %2621 = vset.pattern.permute.xlu0 0
      %2622 = vperm.xlu0 %2621, %v2164
      %v2623 = vpop.permute.xlu0 %2622
      %2626 = vset.pattern.permute.xlu0 0
      %2627 = vperm.xlu0 %2626, %v2165
      %v2628 = vpop.permute.xlu0 %2627
      %2631 = vset.pattern.permute.xlu0 0
      %2632 = vperm.xlu0 %2631, %v2166
      %v2633 = vpop.permute.xlu0 %2632
      %2636 = vset.pattern.permute.xlu0 0
      %2637 = vperm.xlu0 %2636, %v2167
      %v2638 = vpop.permute.xlu0 %2637
      %2641 = vset.pattern.permute.xlu0 0
      %2642 = vperm.xlu0 %2641, %v2168
      %v2643 = vpop.permute.xlu0 %2642
      %2646 = vset.pattern.permute.xlu0 0
      %2647 = vperm.xlu0 %2646, %v2169
      %v2648 = vpop.permute.xlu0 %2647
      %2651 = vset.pattern.permute.xlu0 0
      %2652 = vperm.xlu0 %2651, %v2170
      %v2653 = vpop.permute.xlu0 %2652
      %2656 = vset.pattern.permute.xlu0 0
      %2657 = vperm.xlu0 %2656, %v2171
      %v2658 = vpop.permute.xlu0 %2657
      %2661 = vset.pattern.permute.xlu0 0
      %2662 = vperm.xlu0 %2661, %v2172
      %v2663 = vpop.permute.xlu0 %2662
      %2666 = vset.pattern.permute.xlu0 0
      %2667 = vperm.xlu0 %2666, %v2173
      %v2668 = vpop.permute.xlu0 %2667
      %2671 = vset.pattern.permute.xlu0 0
      %2672 = vperm.xlu0 %2671, %v2174
      %v2673 = vpop.permute.xlu0 %2672
      %2676 = vset.pattern.permute.xlu0 0
      %2677 = vperm.xlu0 %2676, %v2175
      %v2678 = vpop.permute.xlu0 %2677
      %2681 = vset.pattern.permute.xlu0 0
      %2682 = vperm.xlu0 %2681, %v2176
      %v2683 = vpop.permute.xlu0 %2682
      %2686 = vset.pattern.permute.xlu0 0
      %2687 = vperm.xlu0 %2686, %v2177
      %v2688 = vpop.permute.xlu0 %2687
      %v2690 = vsub.f32 %v1858, %v2373
      %v2691 = vsub.f32 %v1859, %v2378
      %v2692 = vsub.f32 %v1860, %v2383
      %v2693 = vsub.f32 %v1861, %v2388
      %v2694 = vsub.f32 %v1862, %v2393
      %v2695 = vsub.f32 %v1863, %v2398
      %v2696 = vsub.f32 %v1864, %v2403
      %v2697 = vsub.f32 %v1865, %v2408
      %v2698 = vsub.f32 %v1866, %v2413
      %v2699 = vsub.f32 %v1867, %v2418
      %v2700 = vsub.f32 %v1868, %v2423
      %v2701 = vsub.f32 %v1869, %v2428
      %v2702 = vsub.f32 %v1870, %v2433
      %v2703 = vsub.f32 %v1871, %v2438
      %v2704 = vsub.f32 %v1872, %v2443
      %v2705 = vsub.f32 %v1873, %v2448
      %v2706 = vsub.f32 %v1874, %v2453
      %v2707 = vsub.f32 %v1875, %v2458
      %v2708 = vsub.f32 %v1876, %v2463
      %v2709 = vsub.f32 %v1877, %v2468
      %v2710 = vsub.f32 %v1878, %v2473
      %v2711 = vsub.f32 %v1879, %v2478
      %v2712 = vsub.f32 %v1880, %v2483
      %v2713 = vsub.f32 %v1881, %v2488
      %v2714 = vsub.f32 %v1882, %v2493
      %v2715 = vsub.f32 %v1883, %v2498
      %v2716 = vsub.f32 %v1884, %v2503
      %v2717 = vsub.f32 %v1885, %v2508
      %v2718 = vsub.f32 %v1886, %v2513
      %v2719 = vsub.f32 %v1887, %v2518
      %v2720 = vsub.f32 %v1888, %v2523
      %v2721 = vsub.f32 %v1889, %v2528
      %v2722 = vsub.f32 %v1890, %v2533
      %v2723 = vsub.f32 %v1891, %v2538
      %v2724 = vsub.f32 %v1892, %v2543
      %v2725 = vsub.f32 %v1893, %v2548
      %v2726 = vsub.f32 %v1894, %v2553
      %v2727 = vsub.f32 %v1895, %v2558
      %v2728 = vsub.f32 %v1896, %v2563
      %v2729 = vsub.f32 %v1897, %v2568
      %v2730 = vsub.f32 %v1898, %v2573
      %v2731 = vsub.f32 %v1899, %v2578
      %v2732 = vsub.f32 %v1900, %v2583
      %v2733 = vsub.f32 %v1901, %v2588
      %v2734 = vsub.f32 %v1902, %v2593
      %v2735 = vsub.f32 %v1903, %v2598
      %v2736 = vsub.f32 %v1904, %v2603
      %v2737 = vsub.f32 %v1905, %v2608
      %v2738 = vsub.f32 %v1906, %v2613
      %v2739 = vsub.f32 %v1907, %v2618
      %v2740 = vsub.f32 %v1908, %v2623
      %v2741 = vsub.f32 %v1909, %v2628
      %v2742 = vsub.f32 %v1910, %v2633
      %v2743 = vsub.f32 %v1911, %v2638
      %v2744 = vsub.f32 %v1912, %v2643
      %v2745 = vsub.f32 %v1913, %v2648
      %v2746 = vsub.f32 %v1914, %v2653
      %v2747 = vsub.f32 %v1915, %v2658
      %v2748 = vsub.f32 %v1916, %v2663
      %v2749 = vsub.f32 %v1917, %v2668
      %v2750 = vsub.f32 %v1918, %v2673
      %v2751 = vsub.f32 %v1919, %v2678
      %v2752 = vsub.f32 %v1920, %v2683
      %v2753 = vsub.f32 %v1921, %v2688
      %v2754 = vmul.f32 %v2690, 1.442695
      %v2755 = vpow.pop %v2754
      %v2756 = vmul.f32 %v2691, 1.442695
      %v2757 = vpow.pop %v2756
      %v2758 = vmul.f32 %v2692, 1.442695
      %v2759 = vpow.pop %v2758
      %v2760 = vmul.f32 %v2693, 1.442695
      %v2761 = vpow.pop %v2760
      %v2762 = vmul.f32 %v2694, 1.442695
      %v2763 = vpow.pop %v2762
      %v2764 = vmul.f32 %v2695, 1.442695
      %v2765 = vpow.pop %v2764
      %v2766 = vmul.f32 %v2696, 1.442695
      %v2767 = vpow.pop %v2766
      %v2768 = vmul.f32 %v2697, 1.442695
      %v2769 = vpow.pop %v2768
      %v2770 = vmul.f32 %v2698, 1.442695
      %v2771 = vpow.pop %v2770
      %v2772 = vmul.f32 %v2699, 1.442695
      %v2773 = vpow.pop %v2772
      %v2774 = vmul.f32 %v2700, 1.442695
      %v2775 = vpow.pop %v2774
      %v2776 = vmul.f32 %v2701, 1.442695
      %v2777 = vpow.pop %v2776
      %v2778 = vmul.f32 %v2702, 1.442695
      %v2779 = vpow.pop %v2778
      %v2780 = vmul.f32 %v2703, 1.442695
      %v2781 = vpow.pop %v2780
      %v2782 = vmul.f32 %v2704, 1.442695
      %v2783 = vpow.pop %v2782
      %v2784 = vmul.f32 %v2705, 1.442695
      %v2785 = vpow.pop %v2784
      %v2786 = vmul.f32 %v2706, 1.442695
      %v2787 = vpow.pop %v2786
      %v2788 = vmul.f32 %v2707, 1.442695
      %v2789 = vpow.pop %v2788
      %v2790 = vmul.f32 %v2708, 1.442695
      %v2791 = vpow.pop %v2790
      %v2792 = vmul.f32 %v2709, 1.442695
      %v2793 = vpow.pop %v2792
      %v2794 = vmul.f32 %v2710, 1.442695
      %v2795 = vpow.pop %v2794
      %v2796 = vmul.f32 %v2711, 1.442695
      %v2797 = vpow.pop %v2796
      %v2798 = vmul.f32 %v2712, 1.442695
      %v2799 = vpow.pop %v2798
      %v2800 = vmul.f32 %v2713, 1.442695
      %v2801 = vpow.pop %v2800
      %v2802 = vmul.f32 %v2714, 1.442695
      %v2803 = vpow.pop %v2802
      %v2804 = vmul.f32 %v2715, 1.442695
      %v2805 = vpow.pop %v2804
      %v2806 = vmul.f32 %v2716, 1.442695
      %v2807 = vpow.pop %v2806
      %v2808 = vmul.f32 %v2717, 1.442695
      %v2809 = vpow.pop %v2808
      %v2810 = vmul.f32 %v2718, 1.442695
      %v2811 = vpow.pop %v2810
      %v2812 = vmul.f32 %v2719, 1.442695
      %v2813 = vpow.pop %v2812
      %v2814 = vmul.f32 %v2720, 1.442695
      %v2815 = vpow.pop %v2814
      %v2816 = vmul.f32 %v2721, 1.442695
      %v2817 = vpow.pop %v2816
      %v2818 = vmul.f32 %v2722, 1.442695
      %v2819 = vpow.pop %v2818
      %v2820 = vmul.f32 %v2723, 1.442695
      %v2821 = vpow.pop %v2820
      %v2822 = vmul.f32 %v2724, 1.442695
      %v2823 = vpow.pop %v2822
      %v2824 = vmul.f32 %v2725, 1.442695
      %v2825 = vpow.pop %v2824
      %v2826 = vmul.f32 %v2726, 1.442695
      %v2827 = vpow.pop %v2826
      %v2828 = vmul.f32 %v2727, 1.442695
      %v2829 = vpow.pop %v2828
      %v2830 = vmul.f32 %v2728, 1.442695
      %v2831 = vpow.pop %v2830
      %v2832 = vmul.f32 %v2729, 1.442695
      %v2833 = vpow.pop %v2832
      %v2834 = vmul.f32 %v2730, 1.442695
      %v2835 = vpow.pop %v2834
      %v2836 = vmul.f32 %v2731, 1.442695
      %v2837 = vpow.pop %v2836
      %v2838 = vmul.f32 %v2732, 1.442695
      %v2839 = vpow.pop %v2838
      %v2840 = vmul.f32 %v2733, 1.442695
      %v2841 = vpow.pop %v2840
      %v2842 = vmul.f32 %v2734, 1.442695
      %v2843 = vpow.pop %v2842
      %v2844 = vmul.f32 %v2735, 1.442695
      %v2845 = vpow.pop %v2844
      %v2846 = vmul.f32 %v2736, 1.442695
      %v2847 = vpow.pop %v2846
      %v2848 = vmul.f32 %v2737, 1.442695
      %v2849 = vpow.pop %v2848
      %v2850 = vmul.f32 %v2738, 1.442695
      %v2851 = vpow.pop %v2850
      %v2852 = vmul.f32 %v2739, 1.442695
      %v2853 = vpow.pop %v2852
      %v2854 = vmul.f32 %v2740, 1.442695
      %v2855 = vpow.pop %v2854
      %v2856 = vmul.f32 %v2741, 1.442695
      %v2857 = vpow.pop %v2856
      %v2858 = vmul.f32 %v2742, 1.442695
      %v2859 = vpow.pop %v2858
      %v2860 = vmul.f32 %v2743, 1.442695
      %v2861 = vpow.pop %v2860
      %v2862 = vmul.f32 %v2744, 1.442695
      %v2863 = vpow.pop %v2862
      %v2864 = vmul.f32 %v2745, 1.442695
      %v2865 = vpow.pop %v2864
      %v2866 = vmul.f32 %v2746, 1.442695
      %v2867 = vpow.pop %v2866
      %v2868 = vmul.f32 %v2747, 1.442695
      %v2869 = vpow.pop %v2868
      %v2870 = vmul.f32 %v2748, 1.442695
      %v2871 = vpow.pop %v2870
      %v2872 = vmul.f32 %v2749, 1.442695
      %v2873 = vpow.pop %v2872
      %v2874 = vmul.f32 %v2750, 1.442695
      %v2875 = vpow.pop %v2874
      %v2876 = vmul.f32 %v2751, 1.442695
      %v2877 = vpow.pop %v2876
      %v2878 = vmul.f32 %v2752, 1.442695
      %v2879 = vpow.pop %v2878
      %v2880 = vmul.f32 %v2753, 1.442695
      %v2881 = vpow.pop %v2880
      %v2882 = vld [vmem:[#allocation4] sm:$0xff]
      %v2883 = vld [vmem:[#allocation4 + $0x8] sm:$0xff]
      %v2884 = vld [vmem:[#allocation4 + $0x10] sm:$0xff]
      %v2885 = vld [vmem:[#allocation4 + $0x18] sm:$0xff]
      %v2886 = vld [vmem:[#allocation4 + $0x20] sm:$0xff]
      %v2887 = vld [vmem:[#allocation4 + $0x28] sm:$0xff]
      %v2888 = vld [vmem:[#allocation4 + $0x30] sm:$0xff]
      %v2889 = vld [vmem:[#allocation4 + $0x38] sm:$0xff]
      %v2890 = vld [vmem:[#allocation4 + $0x40] sm:$0xff]
      %v2891 = vld [vmem:[#allocation4 + $0x48] sm:$0xff]
      %v2892 = vld [vmem:[#allocation4 + $0x50] sm:$0xff]
      %v2893 = vld [vmem:[#allocation4 + $0x58] sm:$0xff]
      %v2894 = vld [vmem:[#allocation4 + $0x60] sm:$0xff]
      %v2895 = vld [vmem:[#allocation4 + $0x68] sm:$0xff]
      %v2896 = vld [vmem:[#allocation4 + $0x70] sm:$0xff]
      %v2897 = vld [vmem:[#allocation4 + $0x78] sm:$0xff]
      %v2898 = vld [vmem:[#allocation4 + $0x80] sm:$0xff]
      %v2899 = vld [vmem:[#allocation4 + $0x88] sm:$0xff]
      %v2900 = vld [vmem:[#allocation4 + $0x90] sm:$0xff]
      %v2901 = vld [vmem:[#allocation4 + $0x98] sm:$0xff]
      %v2902 = vld [vmem:[#allocation4 + $0xa0] sm:$0xff]
      %v2903 = vld [vmem:[#allocation4 + $0xa8] sm:$0xff]
      %v2904 = vld [vmem:[#allocation4 + $0xb0] sm:$0xff]
      %v2905 = vld [vmem:[#allocation4 + $0xb8] sm:$0xff]
      %v2906 = vld [vmem:[#allocation4 + $0xc0] sm:$0xff]
      %v2907 = vld [vmem:[#allocation4 + $0xc8] sm:$0xff]
      %v2908 = vld [vmem:[#allocation4 + $0xd0] sm:$0xff]
      %v2909 = vld [vmem:[#allocation4 + $0xd8] sm:$0xff]
      %v2910 = vld [vmem:[#allocation4 + $0xe0] sm:$0xff]
      %v2911 = vld [vmem:[#allocation4 + $0xe8] sm:$0xff]
      %v2912 = vld [vmem:[#allocation4 + $0xf0] sm:$0xff]
      %v2913 = vld [vmem:[#allocation4 + $0xf8] sm:$0xff]
      %v2914 = vld [vmem:[#allocation4 + $0x100] sm:$0xff]
      %v2915 = vld [vmem:[#allocation4 + $0x108] sm:$0xff]
      %v2916 = vld [vmem:[#allocation4 + $0x110] sm:$0xff]
      %v2917 = vld [vmem:[#allocation4 + $0x118] sm:$0xff]
      %v2918 = vld [vmem:[#allocation4 + $0x120] sm:$0xff]
      %v2919 = vld [vmem:[#allocation4 + $0x128] sm:$0xff]
      %v2920 = vld [vmem:[#allocation4 + $0x130] sm:$0xff]
      %v2921 = vld [vmem:[#allocation4 + $0x138] sm:$0xff]
      %v2922 = vld [vmem:[#allocation4 + $0x140] sm:$0xff]
      %v2923 = vld [vmem:[#allocation4 + $0x148] sm:$0xff]
      %v2924 = vld [vmem:[#allocation4 + $0x150] sm:$0xff]
      %v2925 = vld [vmem:[#allocation4 + $0x158] sm:$0xff]
      %v2926 = vld [vmem:[#allocation4 + $0x160] sm:$0xff]
      %v2927 = vld [vmem:[#allocation4 + $0x168] sm:$0xff]
      %v2928 = vld [vmem:[#allocation4 + $0x170] sm:$0xff]
      %v2929 = vld [vmem:[#allocation4 + $0x178] sm:$0xff]
      %v2930 = vld [vmem:[#allocation4 + $0x180] sm:$0xff]
      %v2931 = vld [vmem:[#allocation4 + $0x188] sm:$0xff]
      %v2932 = vld [vmem:[#allocation4 + $0x190] sm:$0xff]
      %v2933 = vld [vmem:[#allocation4 + $0x198] sm:$0xff]
      %v2934 = vld [vmem:[#allocation4 + $0x1a0] sm:$0xff]
      %v2935 = vld [vmem:[#allocation4 + $0x1a8] sm:$0xff]
      %v2936 = vld [vmem:[#allocation4 + $0x1b0] sm:$0xff]
      %v2937 = vld [vmem:[#allocation4 + $0x1b8] sm:$0xff]
      %v2938 = vld [vmem:[#allocation4 + $0x1c0] sm:$0xff]
      %v2939 = vld [vmem:[#allocation4 + $0x1c8] sm:$0xff]
      %v2940 = vld [vmem:[#allocation4 + $0x1d0] sm:$0xff]
      %v2941 = vld [vmem:[#allocation4 + $0x1d8] sm:$0xff]
      %v2942 = vld [vmem:[#allocation4 + $0x1e0] sm:$0xff]
      %v2943 = vld [vmem:[#allocation4 + $0x1e8] sm:$0xff]
      %v2944 = vld [vmem:[#allocation4 + $0x1f0] sm:$0xff]
      %v2945 = vld [vmem:[#allocation4 + $0x1f8] sm:$0xff]
      %v2946 = vmul.f32 %v2243, %v2882
      %v2947 = vmul.f32 %v2245, %v2883
      %v2948 = vmul.f32 %v2247, %v2884
      %v2949 = vmul.f32 %v2249, %v2885
      %v2950 = vmul.f32 %v2251, %v2886
      %v2951 = vmul.f32 %v2253, %v2887
      %v2952 = vmul.f32 %v2255, %v2888
      %v2953 = vmul.f32 %v2257, %v2889
      %v2954 = vmul.f32 %v2259, %v2890
      %v2955 = vmul.f32 %v2261, %v2891
      %v2956 = vmul.f32 %v2263, %v2892
      %v2957 = vmul.f32 %v2265, %v2893
      %v2958 = vmul.f32 %v2267, %v2894
      %v2959 = vmul.f32 %v2269, %v2895
      %v2960 = vmul.f32 %v2271, %v2896
      %v2961 = vmul.f32 %v2273, %v2897
      %v2962 = vmul.f32 %v2275, %v2898
      %v2963 = vmul.f32 %v2277, %v2899
      %v2964 = vmul.f32 %v2279, %v2900
      %v2965 = vmul.f32 %v2281, %v2901
      %v2966 = vmul.f32 %v2283, %v2902
      %v2967 = vmul.f32 %v2285, %v2903
      %v2968 = vmul.f32 %v2287, %v2904
      %v2969 = vmul.f32 %v2289, %v2905
      %v2970 = vmul.f32 %v2291, %v2906
      %v2971 = vmul.f32 %v2293, %v2907
      %v2972 = vmul.f32 %v2295, %v2908
      %v2973 = vmul.f32 %v2297, %v2909
      %v2974 = vmul.f32 %v2299, %v2910
      %v2975 = vmul.f32 %v2301, %v2911
      %v2976 = vmul.f32 %v2303, %v2912
      %v2977 = vmul.f32 %v2305, %v2913
      %v2978 = vmul.f32 %v2307, %v2914
      %v2979 = vmul.f32 %v2309, %v2915
      %v2980 = vmul.f32 %v2311, %v2916
      %v2981 = vmul.f32 %v2313, %v2917
      %v2982 = vmul.f32 %v2315, %v2918
      %v2983 = vmul.f32 %v2317, %v2919
      %v2984 = vmul.f32 %v2319, %v2920
      %v2985 = vmul.f32 %v2321, %v2921
      %v2986 = vmul.f32 %v2323, %v2922
      %v2987 = vmul.f32 %v2325, %v2923
      %v2988 = vmul.f32 %v2327, %v2924
      %v2989 = vmul.f32 %v2329, %v2925
      %v2990 = vmul.f32 %v2331, %v2926
      %v2991 = vmul.f32 %v2333, %v2927
      %v2992 = vmul.f32 %v2335, %v2928
      %v2993 = vmul.f32 %v2337, %v2929
      %v2994 = vmul.f32 %v2339, %v2930
      %v2995 = vmul.f32 %v2341, %v2931
      %v2996 = vmul.f32 %v2343, %v2932
      %v2997 = vmul.f32 %v2345, %v2933
      %v2998 = vmul.f32 %v2347, %v2934
      %v2999 = vmul.f32 %v2349, %v2935
      %v3000 = vmul.f32 %v2351, %v2936
      %v3001 = vmul.f32 %v2353, %v2937
      %v3002 = vmul.f32 %v2355, %v2938
      %v3003 = vmul.f32 %v2357, %v2939
      %v3004 = vmul.f32 %v2359, %v2940
      %v3005 = vmul.f32 %v2361, %v2941
      %v3006 = vmul.f32 %v2363, %v2942
      %v3007 = vmul.f32 %v2365, %v2943
      %v3008 = vmul.f32 %v2367, %v2944
      %v3009 = vmul.f32 %v2369, %v2945
      %3010 = vadd.xlane.f32.xlu0 %v2755
      %v3011 = vpop.xlane.xlu0 %3010
      %3012 = vadd.xlane.f32.xlu0 %v2757
      %v3013 = vpop.xlane.xlu0 %3012
      %3014 = vadd.xlane.f32.xlu0 %v2759
      %v3015 = vpop.xlane.xlu0 %3014
      %3016 = vadd.xlane.f32.xlu0 %v2761
      %v3017 = vpop.xlane.xlu0 %3016
      %3018 = vadd.xlane.f32.xlu0 %v2763
      %v3019 = vpop.xlane.xlu0 %3018
      %3020 = vadd.xlane.f32.xlu0 %v2765
      %v3021 = vpop.xlane.xlu0 %3020
      %3022 = vadd.xlane.f32.xlu0 %v2767
      %v3023 = vpop.xlane.xlu0 %3022
      %3024 = vadd.xlane.f32.xlu0 %v2769
      %v3025 = vpop.xlane.xlu0 %3024
      %3026 = vadd.xlane.f32.xlu0 %v2771
      %v3027 = vpop.xlane.xlu0 %3026
      %3028 = vadd.xlane.f32.xlu0 %v2773
      %v3029 = vpop.xlane.xlu0 %3028
      %3030 = vadd.xlane.f32.xlu0 %v2775
      %v3031 = vpop.xlane.xlu0 %3030
      %3032 = vadd.xlane.f32.xlu0 %v2777
      %v3033 = vpop.xlane.xlu0 %3032
      %3034 = vadd.xlane.f32.xlu0 %v2779
      %v3035 = vpop.xlane.xlu0 %3034
      %3036 = vadd.xlane.f32.xlu0 %v2781
      %v3037 = vpop.xlane.xlu0 %3036
      %3038 = vadd.xlane.f32.xlu0 %v2783
      %v3039 = vpop.xlane.xlu0 %3038
      %3040 = vadd.xlane.f32.xlu0 %v2785
      %v3041 = vpop.xlane.xlu0 %3040
      %3042 = vadd.xlane.f32.xlu0 %v2787
      %v3043 = vpop.xlane.xlu0 %3042
      %3044 = vadd.xlane.f32.xlu0 %v2789
      %v3045 = vpop.xlane.xlu0 %3044
      %3046 = vadd.xlane.f32.xlu0 %v2791
      %v3047 = vpop.xlane.xlu0 %3046
      %3048 = vadd.xlane.f32.xlu0 %v2793
      %v3049 = vpop.xlane.xlu0 %3048
      %3050 = vadd.xlane.f32.xlu0 %v2795
      %v3051 = vpop.xlane.xlu0 %3050
      %3052 = vadd.xlane.f32.xlu0 %v2797
      %v3053 = vpop.xlane.xlu0 %3052
      %3054 = vadd.xlane.f32.xlu0 %v2799
      %v3055 = vpop.xlane.xlu0 %3054
      %3056 = vadd.xlane.f32.xlu0 %v2801
      %v3057 = vpop.xlane.xlu0 %3056
      %3058 = vadd.xlane.f32.xlu0 %v2803
      %v3059 = vpop.xlane.xlu0 %3058
      %3060 = vadd.xlane.f32.xlu0 %v2805
      %v3061 = vpop.xlane.xlu0 %3060
      %3062 = vadd.xlane.f32.xlu0 %v2807
      %v3063 = vpop.xlane.xlu0 %3062
      %3064 = vadd.xlane.f32.xlu0 %v2809
      %v3065 = vpop.xlane.xlu0 %3064
      %3066 = vadd.xlane.f32.xlu0 %v2811
      %v3067 = vpop.xlane.xlu0 %3066
      %3068 = vadd.xlane.f32.xlu0 %v2813
      %v3069 = vpop.xlane.xlu0 %3068
      %3070 = vadd.xlane.f32.xlu0 %v2815
      %v3071 = vpop.xlane.xlu0 %3070
      %3072 = vadd.xlane.f32.xlu0 %v2817
      %v3073 = vpop.xlane.xlu0 %3072
      %3074 = vadd.xlane.f32.xlu0 %v2819
      %v3075 = vpop.xlane.xlu0 %3074
      %3076 = vadd.xlane.f32.xlu0 %v2821
      %v3077 = vpop.xlane.xlu0 %3076
      %3078 = vadd.xlane.f32.xlu0 %v2823
      %v3079 = vpop.xlane.xlu0 %3078
      %3080 = vadd.xlane.f32.xlu0 %v2825
      %v3081 = vpop.xlane.xlu0 %3080
      %3082 = vadd.xlane.f32.xlu0 %v2827
      %v3083 = vpop.xlane.xlu0 %3082
      %3084 = vadd.xlane.f32.xlu0 %v2829
      %v3085 = vpop.xlane.xlu0 %3084
      %3086 = vadd.xlane.f32.xlu0 %v2831
      %v3087 = vpop.xlane.xlu0 %3086
      %3088 = vadd.xlane.f32.xlu0 %v2833
      %v3089 = vpop.xlane.xlu0 %3088
      %3090 = vadd.xlane.f32.xlu0 %v2835
      %v3091 = vpop.xlane.xlu0 %3090
      %3092 = vadd.xlane.f32.xlu0 %v2837
      %v3093 = vpop.xlane.xlu0 %3092
      %3094 = vadd.xlane.f32.xlu0 %v2839
      %v3095 = vpop.xlane.xlu0 %3094
      %3096 = vadd.xlane.f32.xlu0 %v2841
      %v3097 = vpop.xlane.xlu0 %3096
      %3098 = vadd.xlane.f32.xlu0 %v2843
      %v3099 = vpop.xlane.xlu0 %3098
      %3100 = vadd.xlane.f32.xlu0 %v2845
      %v3101 = vpop.xlane.xlu0 %3100
      %3102 = vadd.xlane.f32.xlu0 %v2847
      %v3103 = vpop.xlane.xlu0 %3102
      %3104 = vadd.xlane.f32.xlu0 %v2849
      %v3105 = vpop.xlane.xlu0 %3104
      %3106 = vadd.xlane.f32.xlu0 %v2851
      %v3107 = vpop.xlane.xlu0 %3106
      %3108 = vadd.xlane.f32.xlu0 %v2853
      %v3109 = vpop.xlane.xlu0 %3108
      %3110 = vadd.xlane.f32.xlu0 %v2855
      %v3111 = vpop.xlane.xlu0 %3110
      %3112 = vadd.xlane.f32.xlu0 %v2857
      %v3113 = vpop.xlane.xlu0 %3112
      %3114 = vadd.xlane.f32.xlu0 %v2859
      %v3115 = vpop.xlane.xlu0 %3114
      %3116 = vadd.xlane.f32.xlu0 %v2861
      %v3117 = vpop.xlane.xlu0 %3116
      %3118 = vadd.xlane.f32.xlu0 %v2863
      %v3119 = vpop.xlane.xlu0 %3118
      %3120 = vadd.xlane.f32.xlu0 %v2865
      %v3121 = vpop.xlane.xlu0 %3120
      %3122 = vadd.xlane.f32.xlu0 %v2867
      %v3123 = vpop.xlane.xlu0 %3122
      %3124 = vadd.xlane.f32.xlu0 %v2869
      %v3125 = vpop.xlane.xlu0 %3124
      %3126 = vadd.xlane.f32.xlu0 %v2871
      %v3127 = vpop.xlane.xlu0 %3126
      %3128 = vadd.xlane.f32.xlu0 %v2873
      %v3129 = vpop.xlane.xlu0 %3128
      %3130 = vadd.xlane.f32.xlu0 %v2875
      %v3131 = vpop.xlane.xlu0 %3130
      %3132 = vadd.xlane.f32.xlu0 %v2877
      %v3133 = vpop.xlane.xlu0 %3132
      %3134 = vadd.xlane.f32.xlu0 %v2879
      %v3135 = vpop.xlane.xlu0 %3134
      %3136 = vadd.xlane.f32.xlu0 %v2881
      %v3137 = vpop.xlane.xlu0 %3136
      %v3138 = vadd.f32 %v2946, %v3011
      %v3139 = vadd.f32 %v2947, %v3013
      %v3140 = vadd.f32 %v2948, %v3015
      %v3141 = vadd.f32 %v2949, %v3017
      %v3142 = vadd.f32 %v2950, %v3019
      %v3143 = vadd.f32 %v2951, %v3021
      %v3144 = vadd.f32 %v2952, %v3023
      %v3145 = vadd.f32 %v2953, %v3025
      %v3146 = vadd.f32 %v2954, %v3027
      %v3147 = vadd.f32 %v2955, %v3029
      %v3148 = vadd.f32 %v2956, %v3031
      %v3149 = vadd.f32 %v2957, %v3033
      %v3150 = vadd.f32 %v2958, %v3035
      %v3151 = vadd.f32 %v2959, %v3037
      %v3152 = vadd.f32 %v2960, %v3039
      %v3153 = vadd.f32 %v2961, %v3041
      %v3154 = vadd.f32 %v2962, %v3043
      %v3155 = vadd.f32 %v2963, %v3045
      %v3156 = vadd.f32 %v2964, %v3047
      %v3157 = vadd.f32 %v2965, %v3049
      %v3158 = vadd.f32 %v2966, %v3051
      %v3159 = vadd.f32 %v2967, %v3053
      %v3160 = vadd.f32 %v2968, %v3055
      %v3161 = vadd.f32 %v2969, %v3057
      %v3162 = vadd.f32 %v2970, %v3059
      %v3163 = vadd.f32 %v2971, %v3061
      %v3164 = vadd.f32 %v2972, %v3063
      %v3165 = vadd.f32 %v2973, %v3065
      %v3166 = vadd.f32 %v2974, %v3067
      %v3167 = vadd.f32 %v2975, %v3069
      %v3168 = vadd.f32 %v2976, %v3071
      %v3169 = vadd.f32 %v2977, %v3073
      %v3170 = vadd.f32 %v2978, %v3075
      %v3171 = vadd.f32 %v2979, %v3077
      %v3172 = vadd.f32 %v2980, %v3079
      %v3173 = vadd.f32 %v2981, %v3081
      %v3174 = vadd.f32 %v2982, %v3083
      %v3175 = vadd.f32 %v2983, %v3085
      %v3176 = vadd.f32 %v2984, %v3087
      %v3177 = vadd.f32 %v2985, %v3089
      %v3178 = vadd.f32 %v2986, %v3091
      %v3179 = vadd.f32 %v2987, %v3093
      %v3180 = vadd.f32 %v2988, %v3095
      %v3181 = vadd.f32 %v2989, %v3097
      %v3182 = vadd.f32 %v2990, %v3099
      %v3183 = vadd.f32 %v2991, %v3101
      %v3184 = vadd.f32 %v2992, %v3103
      %v3185 = vadd.f32 %v2993, %v3105
      %v3186 = vadd.f32 %v2994, %v3107
      %v3187 = vadd.f32 %v2995, %v3109
      %v3188 = vadd.f32 %v2996, %v3111
      %v3189 = vadd.f32 %v2997, %v3113
      %v3190 = vadd.f32 %v2998, %v3115
      %v3191 = vadd.f32 %v2999, %v3117
      %v3192 = vadd.f32 %v3000, %v3119
      %v3193 = vadd.f32 %v3001, %v3121
      %v3194 = vadd.f32 %v3002, %v3123
      %v3195 = vadd.f32 %v3003, %v3125
      %v3196 = vadd.f32 %v3004, %v3127
      %v3197 = vadd.f32 %v3005, %v3129
      %v3198 = vadd.f32 %v3006, %v3131
      %v3199 = vadd.f32 %v3007, %v3133
      %v3200 = vadd.f32 %v3008, %v3135
      %v3201 = vadd.f32 %v3009, %v3137
      %vm3202 = vcmask 7168
      %3203 = vst.msk [vmem:[#allocation4] sm:$0xff] %vm3202, %v3138
      %3204 = vst.msk [vmem:[#allocation4 + $0x8] sm:$0xff] %vm3202, %v3139
      %3205 = vst.msk [vmem:[#allocation4 + $0x10] sm:$0xff] %vm3202, %v3140
      %3206 = vst.msk [vmem:[#allocation4 + $0x18] sm:$0xff] %vm3202, %v3141
      %3207 = vst.msk [vmem:[#allocation4 + $0x20] sm:$0xff] %vm3202, %v3142
      %3208 = vst.msk [vmem:[#allocation4 + $0x28] sm:$0xff] %vm3202, %v3143
      %3209 = vst.msk [vmem:[#allocation4 + $0x30] sm:$0xff] %vm3202, %v3144
      %3210 = vst.msk [vmem:[#allocation4 + $0x38] sm:$0xff] %vm3202, %v3145
      %3211 = vst.msk [vmem:[#allocation4 + $0x40] sm:$0xff] %vm3202, %v3146
      %3212 = vst.msk [vmem:[#allocation4 + $0x48] sm:$0xff] %vm3202, %v3147
      %3213 = vst.msk [vmem:[#allocation4 + $0x50] sm:$0xff] %vm3202, %v3148
      %3214 = vst.msk [vmem:[#allocation4 + $0x58] sm:$0xff] %vm3202, %v3149
      %3215 = vst.msk [vmem:[#allocation4 + $0x60] sm:$0xff] %vm3202, %v3150
      %3216 = vst.msk [vmem:[#allocation4 + $0x68] sm:$0xff] %vm3202, %v3151
      %3217 = vst.msk [vmem:[#allocation4 + $0x70] sm:$0xff] %vm3202, %v3152
      %3218 = vst.msk [vmem:[#allocation4 + $0x78] sm:$0xff] %vm3202, %v3153
      %3219 = vst.msk [vmem:[#allocation4 + $0x80] sm:$0xff] %vm3202, %v3154
      %3220 = vst.msk [vmem:[#allocation4 + $0x88] sm:$0xff] %vm3202, %v3155
      %3221 = vst.msk [vmem:[#allocation4 + $0x90] sm:$0xff] %vm3202, %v3156
      %3222 = vst.msk [vmem:[#allocation4 + $0x98] sm:$0xff] %vm3202, %v3157
      %3223 = vst.msk [vmem:[#allocation4 + $0xa0] sm:$0xff] %vm3202, %v3158
      %3224 = vst.msk [vmem:[#allocation4 + $0xa8] sm:$0xff] %vm3202, %v3159
      %3225 = vst.msk [vmem:[#allocation4 + $0xb0] sm:$0xff] %vm3202, %v3160
      %3226 = vst.msk [vmem:[#allocation4 + $0xb8] sm:$0xff] %vm3202, %v3161
      %3227 = vst.msk [vmem:[#allocation4 + $0xc0] sm:$0xff] %vm3202, %v3162
      %3228 = vst.msk [vmem:[#allocation4 + $0xc8] sm:$0xff] %vm3202, %v3163
      %3229 = vst.msk [vmem:[#allocation4 + $0xd0] sm:$0xff] %vm3202, %v3164
      %3230 = vst.msk [vmem:[#allocation4 + $0xd8] sm:$0xff] %vm3202, %v3165
      %3231 = vst.msk [vmem:[#allocation4 + $0xe0] sm:$0xff] %vm3202, %v3166
      %3232 = vst.msk [vmem:[#allocation4 + $0xe8] sm:$0xff] %vm3202, %v3167
      %3233 = vst.msk [vmem:[#allocation4 + $0xf0] sm:$0xff] %vm3202, %v3168
      %3234 = vst.msk [vmem:[#allocation4 + $0xf8] sm:$0xff] %vm3202, %v3169
      %3235 = vst.msk [vmem:[#allocation4 + $0x100] sm:$0xff] %vm3202, %v3170
      %3236 = vst.msk [vmem:[#allocation4 + $0x108] sm:$0xff] %vm3202, %v3171
      %3237 = vst.msk [vmem:[#allocation4 + $0x110] sm:$0xff] %vm3202, %v3172
      %3238 = vst.msk [vmem:[#allocation4 + $0x118] sm:$0xff] %vm3202, %v3173
      %3239 = vst.msk [vmem:[#allocation4 + $0x120] sm:$0xff] %vm3202, %v3174
      %3240 = vst.msk [vmem:[#allocation4 + $0x128] sm:$0xff] %vm3202, %v3175
      %3241 = vst.msk [vmem:[#allocation4 + $0x130] sm:$0xff] %vm3202, %v3176
      %3242 = vst.msk [vmem:[#allocation4 + $0x138] sm:$0xff] %vm3202, %v3177
      %3243 = vst.msk [vmem:[#allocation4 + $0x140] sm:$0xff] %vm3202, %v3178
      %3244 = vst.msk [vmem:[#allocation4 + $0x148] sm:$0xff] %vm3202, %v3179
      %3245 = vst.msk [vmem:[#allocation4 + $0x150] sm:$0xff] %vm3202, %v3180
      %3246 = vst.msk [vmem:[#allocation4 + $0x158] sm:$0xff] %vm3202, %v3181
      %3247 = vst.msk [vmem:[#allocation4 + $0x160] sm:$0xff] %vm3202, %v3182
      %3248 = vst.msk [vmem:[#allocation4 + $0x168] sm:$0xff] %vm3202, %v3183
      %3249 = vst.msk [vmem:[#allocation4 + $0x170] sm:$0xff] %vm3202, %v3184
      %3250 = vst.msk [vmem:[#allocation4 + $0x178] sm:$0xff] %vm3202, %v3185
      %3251 = vst.msk [vmem:[#allocation4 + $0x180] sm:$0xff] %vm3202, %v3186
      %3252 = vst.msk [vmem:[#allocation4 + $0x188] sm:$0xff] %vm3202, %v3187
      %3253 = vst.msk [vmem:[#allocation4 + $0x190] sm:$0xff] %vm3202, %v3188
      %3254 = vst.msk [vmem:[#allocation4 + $0x198] sm:$0xff] %vm3202, %v3189
      %3255 = vst.msk [vmem:[#allocation4 + $0x1a0] sm:$0xff] %vm3202, %v3190
      %3256 = vst.msk [vmem:[#allocation4 + $0x1a8] sm:$0xff] %vm3202, %v3191
      %3257 = vst.msk [vmem:[#allocation4 + $0x1b0] sm:$0xff] %vm3202, %v3192
      %3258 = vst.msk [vmem:[#allocation4 + $0x1b8] sm:$0xff] %vm3202, %v3193
      %3259 = vst.msk [vmem:[#allocation4 + $0x1c0] sm:$0xff] %vm3202, %v3194
      %3260 = vst.msk [vmem:[#allocation4 + $0x1c8] sm:$0xff] %vm3202, %v3195
      %3261 = vst.msk [vmem:[#allocation4 + $0x1d0] sm:$0xff] %vm3202, %v3196
      %3262 = vst.msk [vmem:[#allocation4 + $0x1d8] sm:$0xff] %vm3202, %v3197
      %3263 = vst.msk [vmem:[#allocation4 + $0x1e0] sm:$0xff] %vm3202, %v3198
      %3264 = vst.msk [vmem:[#allocation4 + $0x1e8] sm:$0xff] %vm3202, %v3199
      %3265 = vst.msk [vmem:[#allocation4 + $0x1f0] sm:$0xff] %vm3202, %v3200
      %3266 = vst.msk [vmem:[#allocation4 + $0x1f8] sm:$0xff] %vm3202, %v3201
      %v3267 = vpack.c.bf16 %v2755, %v2755
      %v3268 = vpack.c.bf16 %v2757, %v2757
      %v3269 = vpack.c.bf16 %v2759, %v2759
      %v3270 = vpack.c.bf16 %v2761, %v2761
      %v3271 = vpack.c.bf16 %v2763, %v2763
      %v3272 = vpack.c.bf16 %v2765, %v2765
      %v3273 = vpack.c.bf16 %v2767, %v2767
      %v3274 = vpack.c.bf16 %v2769, %v2769
      %v3275 = vpack.c.bf16 %v2771, %v2771
      %v3276 = vpack.c.bf16 %v2773, %v2773
      %v3277 = vpack.c.bf16 %v2775, %v2775
      %v3278 = vpack.c.bf16 %v2777, %v2777
      %v3279 = vpack.c.bf16 %v2779, %v2779
      %v3280 = vpack.c.bf16 %v2781, %v2781
      %v3281 = vpack.c.bf16 %v2783, %v2783
      %v3282 = vpack.c.bf16 %v2785, %v2785
      %v3283 = vpack.c.bf16 %v2787, %v2787
      %v3284 = vpack.c.bf16 %v2789, %v2789
      %v3285 = vpack.c.bf16 %v2791, %v2791
      %v3286 = vpack.c.bf16 %v2793, %v2793
      %v3287 = vpack.c.bf16 %v2795, %v2795
      %v3288 = vpack.c.bf16 %v2797, %v2797
      %v3289 = vpack.c.bf16 %v2799, %v2799
      %v3290 = vpack.c.bf16 %v2801, %v2801
      %v3291 = vpack.c.bf16 %v2803, %v2803
      %v3292 = vpack.c.bf16 %v2805, %v2805
      %v3293 = vpack.c.bf16 %v2807, %v2807
      %v3294 = vpack.c.bf16 %v2809, %v2809
      %v3295 = vpack.c.bf16 %v2811, %v2811
      %v3296 = vpack.c.bf16 %v2813, %v2813
      %v3297 = vpack.c.bf16 %v2815, %v2815
      %v3298 = vpack.c.bf16 %v2817, %v2817
      %v3299 = vpack.c.bf16 %v2819, %v2819
      %v3300 = vpack.c.bf16 %v2821, %v2821
      %v3301 = vpack.c.bf16 %v2823, %v2823
      %v3302 = vpack.c.bf16 %v2825, %v2825
      %v3303 = vpack.c.bf16 %v2827, %v2827
      %v3304 = vpack.c.bf16 %v2829, %v2829
      %v3305 = vpack.c.bf16 %v2831, %v2831
      %v3306 = vpack.c.bf16 %v2833, %v2833
      %v3307 = vpack.c.bf16 %v2835, %v2835
      %v3308 = vpack.c.bf16 %v2837, %v2837
      %v3309 = vpack.c.bf16 %v2839, %v2839
      %v3310 = vpack.c.bf16 %v2841, %v2841
      %v3311 = vpack.c.bf16 %v2843, %v2843
      %v3312 = vpack.c.bf16 %v2845, %v2845
      %v3313 = vpack.c.bf16 %v2847, %v2847
      %v3314 = vpack.c.bf16 %v2849, %v2849
      %v3315 = vpack.c.bf16 %v2851, %v2851
      %v3316 = vpack.c.bf16 %v2853, %v2853
      %v3317 = vpack.c.bf16 %v2855, %v2855
      %v3318 = vpack.c.bf16 %v2857, %v2857
      %v3319 = vpack.c.bf16 %v2859, %v2859
      %v3320 = vpack.c.bf16 %v2861, %v2861
      %v3321 = vpack.c.bf16 %v2863, %v2863
      %v3322 = vpack.c.bf16 %v2865, %v2865
      %v3323 = vpack.c.bf16 %v2867, %v2867
      %v3324 = vpack.c.bf16 %v2869, %v2869
      %v3325 = vpack.c.bf16 %v2871, %v2871
      %v3326 = vpack.c.bf16 %v2873, %v2873
      %v3327 = vpack.c.bf16 %v2875, %v2875
      %v3328 = vpack.c.bf16 %v2877, %v2877
      %v3329 = vpack.c.bf16 %v2879, %v2879
      %v3330 = vpack.c.bf16 %v2881, %v2881
      %v3347 = vunpack.c.l.b16 %v3267
      %v3348 = vunpack.c.l.b16 %v3268
      %v3349 = vunpack.c.l.b16 %v3269
      %v3350 = vunpack.c.l.b16 %v3270
      %v3351 = vunpack.c.l.b16 %v3271
      %v3352 = vunpack.c.l.b16 %v3272
      %v3353 = vunpack.c.l.b16 %v3273
      %v3354 = vunpack.c.l.b16 %v3274
      %v3355 = vunpack.c.l.b16 %v3275
      %v3356 = vunpack.c.l.b16 %v3276
      %v3357 = vunpack.c.l.b16 %v3277
      %v3358 = vunpack.c.l.b16 %v3278
      %v3359 = vunpack.c.l.b16 %v3279
      %v3360 = vunpack.c.l.b16 %v3280
      %v3361 = vunpack.c.l.b16 %v3281
      %v3362 = vunpack.c.l.b16 %v3282
      %v3363 = vpack.c.b16 %v3348, %v3347
      %v3364 = vpack.c.b16 %v3350, %v3349
      %v3365 = vpack.c.b16 %v3352, %v3351
      %v3366 = vpack.c.b16 %v3354, %v3353
      %v3367 = vpack.c.b16 %v3356, %v3355
      %v3368 = vpack.c.b16 %v3358, %v3357
      %v3369 = vpack.c.b16 %v3360, %v3359
      %v3370 = vpack.c.b16 %v3362, %v3361
      %v3395 = vunpack.c.l.b16 %v1077
      %v3396 = vunpack.c.l.b16 %v1078
      %v3397 = vunpack.c.l.b16 %v1079
      %v3398 = vunpack.c.l.b16 %v1080
      %v3399 = vunpack.c.l.b16 %v1081
      %v3400 = vunpack.c.l.b16 %v1082
      %v3401 = vunpack.c.l.b16 %v1083
      %v3402 = vunpack.c.l.b16 %v1084
      %v3403 = vunpack.c.l.b16 %v1085
      %v3404 = vunpack.c.l.b16 %v1086
      %v3405 = vunpack.c.l.b16 %v1087
      %v3406 = vunpack.c.l.b16 %v1088
      %v3407 = vunpack.c.l.b16 %v1089
      %v3408 = vunpack.c.l.b16 %v1090
      %v3409 = vunpack.c.l.b16 %v1091
      %v3410 = vunpack.c.l.b16 %v1092
      %v3411 = vpack.c.b16 %v3396, %v3395
      %v3412 = vpack.c.b16 %v3398, %v3397
      %v3413 = vpack.c.b16 %v3400, %v3399
      %v3414 = vpack.c.b16 %v3402, %v3401
      %v3415 = vpack.c.b16 %v3404, %v3403
      %v3416 = vpack.c.b16 %v3406, %v3405
      %v3417 = vpack.c.b16 %v3408, %v3407
      %v3418 = vpack.c.b16 %v3410, %v3409
      %3427 = vmatpush.bf16.msra.mxu0 %v3418
      %3428 = vmatpush.bf16.msra.mxu0 %v3417
      %3429 = vmatpush.bf16.msra.mxu0 %v3416
      %3430 = vmatpush.bf16.msra.mxu0 %v3415
      %3431 = vmatpush.bf16.msra.mxu0 %v3414
      %3432 = vmatpush.bf16.msra.mxu0 %v3413
      %3433 = vmatpush.bf16.msra.mxu0 %v3412
      %3434 = vmatpush.bf16.msra.mxu0 %v3411
      %3435 = vmatmul.bf16.gmra.mxu0 %v3363
      %v3436 = vpop.f32.mrf.mxu0
      %v3437 = vadd.f32 0.0, %v3436
      %v3438 = vpop.f32.mrf.mxu0
      %v3439 = vadd.f32 0.0, %v3438
      %3440 = vmatmul.bf16.gmra.mxu0 %v3364
      %v3441 = vpop.f32.mrf.mxu0
      %v3442 = vadd.f32 0.0, %v3441
      %v3443 = vpop.f32.mrf.mxu0
      %v3444 = vadd.f32 0.0, %v3443
      %3445 = vmatmul.bf16.gmra.mxu0 %v3365
      %v3446 = vpop.f32.mrf.mxu0
      %v3447 = vadd.f32 0.0, %v3446
      %v3448 = vpop.f32.mrf.mxu0
      %v3449 = vadd.f32 0.0, %v3448
      %3450 = vmatmul.bf16.gmra.mxu0 %v3366
      %v3451 = vpop.f32.mrf.mxu0
      %v3452 = vadd.f32 0.0, %v3451
      %v3453 = vpop.f32.mrf.mxu0
      %v3454 = vadd.f32 0.0, %v3453
      %3455 = vmatmul.bf16.gmra.mxu0 %v3367
      %v3456 = vpop.f32.mrf.mxu0
      %v3457 = vadd.f32 0.0, %v3456
      %v3458 = vpop.f32.mrf.mxu0
      %v3459 = vadd.f32 0.0, %v3458
      %3460 = vmatmul.bf16.gmra.mxu0 %v3368
      %v3461 = vpop.f32.mrf.mxu0
      %v3462 = vadd.f32 0.0, %v3461
      %v3463 = vpop.f32.mrf.mxu0
      %v3464 = vadd.f32 0.0, %v3463
      %3465 = vmatmul.bf16.gmra.mxu0 %v3369
      %v3466 = vpop.f32.mrf.mxu0
      %v3467 = vadd.f32 0.0, %v3466
      %v3468 = vpop.f32.mrf.mxu0
      %v3469 = vadd.f32 0.0, %v3468
      %3470 = vmatmul.bf16.gmra.mxu0 %v3370
      %v3471 = vpop.f32.mrf.mxu0
      %v3472 = vadd.f32 0.0, %v3471
      %v3473 = vpop.f32.mrf.mxu0
      %v3474 = vadd.f32 0.0, %v3473
      %3475 = vdwg.mxu0
      %v3492 = vunpack.c.l.b16 %v3283
      %v3493 = vunpack.c.l.b16 %v3284
      %v3494 = vunpack.c.l.b16 %v3285
      %v3495 = vunpack.c.l.b16 %v3286
      %v3496 = vunpack.c.l.b16 %v3287
      %v3497 = vunpack.c.l.b16 %v3288
      %v3498 = vunpack.c.l.b16 %v3289
      %v3499 = vunpack.c.l.b16 %v3290
      %v3500 = vunpack.c.l.b16 %v3291
      %v3501 = vunpack.c.l.b16 %v3292
      %v3502 = vunpack.c.l.b16 %v3293
      %v3503 = vunpack.c.l.b16 %v3294
      %v3504 = vunpack.c.l.b16 %v3295
      %v3505 = vunpack.c.l.b16 %v3296
      %v3506 = vunpack.c.l.b16 %v3297
      %v3507 = vunpack.c.l.b16 %v3298
      %v3508 = vpack.c.b16 %v3493, %v3492
      %v3509 = vpack.c.b16 %v3495, %v3494
      %v3510 = vpack.c.b16 %v3497, %v3496
      %v3511 = vpack.c.b16 %v3499, %v3498
      %v3512 = vpack.c.b16 %v3501, %v3500
      %v3513 = vpack.c.b16 %v3503, %v3502
      %v3514 = vpack.c.b16 %v3505, %v3504
      %v3515 = vpack.c.b16 %v3507, %v3506
      %v3540 = vunpack.c.l.b16 %v1093
      %v3541 = vunpack.c.l.b16 %v1094
      %v3542 = vunpack.c.l.b16 %v1095
      %v3543 = vunpack.c.l.b16 %v1096
      %v3544 = vunpack.c.l.b16 %v1097
      %v3545 = vunpack.c.l.b16 %v1098
      %v3546 = vunpack.c.l.b16 %v1099
      %v3547 = vunpack.c.l.b16 %v1100
      %v3548 = vunpack.c.l.b16 %v1101
      %v3549 = vunpack.c.l.b16 %v1102
      %v3550 = vunpack.c.l.b16 %v1103
      %v3551 = vunpack.c.l.b16 %v1104
      %v3552 = vunpack.c.l.b16 %v1105
      %v3553 = vunpack.c.l.b16 %v1106
      %v3554 = vunpack.c.l.b16 %v1107
      %v3555 = vunpack.c.l.b16 %v1108
      %v3556 = vpack.c.b16 %v3541, %v3540
      %v3557 = vpack.c.b16 %v3543, %v3542
      %v3558 = vpack.c.b16 %v3545, %v3544
      %v3559 = vpack.c.b16 %v3547, %v3546
      %v3560 = vpack.c.b16 %v3549, %v3548
      %v3561 = vpack.c.b16 %v3551, %v3550
      %v3562 = vpack.c.b16 %v3553, %v3552
      %v3563 = vpack.c.b16 %v3555, %v3554
      %3572 = vmatpush.bf16.msra.mxu0 %v3563
      %3573 = vmatpush.bf16.msra.mxu0 %v3562
      %3574 = vmatpush.bf16.msra.mxu0 %v3561
      %3575 = vmatpush.bf16.msra.mxu0 %v3560
      %3576 = vmatpush.bf16.msra.mxu0 %v3559
      %3577 = vmatpush.bf16.msra.mxu0 %v3558
      %3578 = vmatpush.bf16.msra.mxu0 %v3557
      %3579 = vmatpush.bf16.msra.mxu0 %v3556
      %3580 = vmatmul.bf16.gmra.mxu0 %v3508
      %v3581 = vpop.f32.mrf.mxu0
      %v3582 = vadd.f32 0.0, %v3581
      %v3583 = vpop.f32.mrf.mxu0
      %v3584 = vadd.f32 0.0, %v3583
      %3585 = vmatmul.bf16.gmra.mxu0 %v3509
      %v3586 = vpop.f32.mrf.mxu0
      %v3587 = vadd.f32 0.0, %v3586
      %v3588 = vpop.f32.mrf.mxu0
      %v3589 = vadd.f32 0.0, %v3588
      %3590 = vmatmul.bf16.gmra.mxu0 %v3510
      %v3591 = vpop.f32.mrf.mxu0
      %v3592 = vadd.f32 0.0, %v3591
      %v3593 = vpop.f32.mrf.mxu0
      %v3594 = vadd.f32 0.0, %v3593
      %3595 = vmatmul.bf16.gmra.mxu0 %v3511
      %v3596 = vpop.f32.mrf.mxu0
      %v3597 = vadd.f32 0.0, %v3596
      %v3598 = vpop.f32.mrf.mxu0
      %v3599 = vadd.f32 0.0, %v3598
      %3600 = vmatmul.bf16.gmra.mxu0 %v3512
      %v3601 = vpop.f32.mrf.mxu0
      %v3602 = vadd.f32 0.0, %v3601
      %v3603 = vpop.f32.mrf.mxu0
      %v3604 = vadd.f32 0.0, %v3603
      %3605 = vmatmul.bf16.gmra.mxu0 %v3513
      %v3606 = vpop.f32.mrf.mxu0
      %v3607 = vadd.f32 0.0, %v3606
      %v3608 = vpop.f32.mrf.mxu0
      %v3609 = vadd.f32 0.0, %v3608
      %3610 = vmatmul.bf16.gmra.mxu0 %v3514
      %v3611 = vpop.f32.mrf.mxu0
      %v3612 = vadd.f32 0.0, %v3611
      %v3613 = vpop.f32.mrf.mxu0
      %v3614 = vadd.f32 0.0, %v3613
      %3615 = vmatmul.bf16.gmra.mxu0 %v3515
      %v3616 = vpop.f32.mrf.mxu0
      %v3617 = vadd.f32 0.0, %v3616
      %v3618 = vpop.f32.mrf.mxu0
      %v3619 = vadd.f32 0.0, %v3618
      %3620 = vdwg.mxu0
      %v3637 = vunpack.c.l.b16 %v3299
      %v3638 = vunpack.c.l.b16 %v3300
      %v3639 = vunpack.c.l.b16 %v3301
      %v3640 = vunpack.c.l.b16 %v3302
      %v3641 = vunpack.c.l.b16 %v3303
      %v3642 = vunpack.c.l.b16 %v3304
      %v3643 = vunpack.c.l.b16 %v3305
      %v3644 = vunpack.c.l.b16 %v3306
      %v3645 = vunpack.c.l.b16 %v3307
      %v3646 = vunpack.c.l.b16 %v3308
      %v3647 = vunpack.c.l.b16 %v3309
      %v3648 = vunpack.c.l.b16 %v3310
      %v3649 = vunpack.c.l.b16 %v3311
      %v3650 = vunpack.c.l.b16 %v3312
      %v3651 = vunpack.c.l.b16 %v3313
      %v3652 = vunpack.c.l.b16 %v3314
      %v3653 = vpack.c.b16 %v3638, %v3637
      %v3654 = vpack.c.b16 %v3640, %v3639
      %v3655 = vpack.c.b16 %v3642, %v3641
      %v3656 = vpack.c.b16 %v3644, %v3643
      %v3657 = vpack.c.b16 %v3646, %v3645
      %v3658 = vpack.c.b16 %v3648, %v3647
      %v3659 = vpack.c.b16 %v3650, %v3649
      %v3660 = vpack.c.b16 %v3652, %v3651
      %v3685 = vunpack.c.l.b16 %v1109
      %v3686 = vunpack.c.l.b16 %v1110
      %v3687 = vunpack.c.l.b16 %v1111
      %v3688 = vunpack.c.l.b16 %v1112
      %v3689 = vunpack.c.l.b16 %v1113
      %v3690 = vunpack.c.l.b16 %v1114
      %v3691 = vunpack.c.l.b16 %v1115
      %v3692 = vunpack.c.l.b16 %v1116
      %v3693 = vunpack.c.l.b16 %v1117
      %v3694 = vunpack.c.l.b16 %v1118
      %v3695 = vunpack.c.l.b16 %v1119
      %v3696 = vunpack.c.l.b16 %v1120
      %v3697 = vunpack.c.l.b16 %v1121
      %v3698 = vunpack.c.l.b16 %v1122
      %v3699 = vunpack.c.l.b16 %v1123
      %v3700 = vunpack.c.l.b16 %v1124
      %v3701 = vpack.c.b16 %v3686, %v3685
      %v3702 = vpack.c.b16 %v3688, %v3687
      %v3703 = vpack.c.b16 %v3690, %v3689
      %v3704 = vpack.c.b16 %v3692, %v3691
      %v3705 = vpack.c.b16 %v3694, %v3693
      %v3706 = vpack.c.b16 %v3696, %v3695
      %v3707 = vpack.c.b16 %v3698, %v3697
      %v3708 = vpack.c.b16 %v3700, %v3699
      %3717 = vmatpush.bf16.msra.mxu0 %v3708
      %3718 = vmatpush.bf16.msra.mxu0 %v3707
      %3719 = vmatpush.bf16.msra.mxu0 %v3706
      %3720 = vmatpush.bf16.msra.mxu0 %v3705
      %3721 = vmatpush.bf16.msra.mxu0 %v3704
      %3722 = vmatpush.bf16.msra.mxu0 %v3703
      %3723 = vmatpush.bf16.msra.mxu0 %v3702
      %3724 = vmatpush.bf16.msra.mxu0 %v3701
      %3725 = vmatmul.bf16.gmra.mxu0 %v3653
      %v3726 = vpop.f32.mrf.mxu0
      %v3727 = vadd.f32 0.0, %v3726
      %v3728 = vpop.f32.mrf.mxu0
      %v3729 = vadd.f32 0.0, %v3728
      %3730 = vmatmul.bf16.gmra.mxu0 %v3654
      %v3731 = vpop.f32.mrf.mxu0
      %v3732 = vadd.f32 0.0, %v3731
      %v3733 = vpop.f32.mrf.mxu0
      %v3734 = vadd.f32 0.0, %v3733
      %3735 = vmatmul.bf16.gmra.mxu0 %v3655
      %v3736 = vpop.f32.mrf.mxu0
      %v3737 = vadd.f32 0.0, %v3736
      %v3738 = vpop.f32.mrf.mxu0
      %v3739 = vadd.f32 0.0, %v3738
      %3740 = vmatmul.bf16.gmra.mxu0 %v3656
      %v3741 = vpop.f32.mrf.mxu0
      %v3742 = vadd.f32 0.0, %v3741
      %v3743 = vpop.f32.mrf.mxu0
      %v3744 = vadd.f32 0.0, %v3743
      %3745 = vmatmul.bf16.gmra.mxu0 %v3657
      %v3746 = vpop.f32.mrf.mxu0
      %v3747 = vadd.f32 0.0, %v3746
      %v3748 = vpop.f32.mrf.mxu0
      %v3749 = vadd.f32 0.0, %v3748
      %3750 = vmatmul.bf16.gmra.mxu0 %v3658
      %v3751 = vpop.f32.mrf.mxu0
      %v3752 = vadd.f32 0.0, %v3751
      %v3753 = vpop.f32.mrf.mxu0
      %v3754 = vadd.f32 0.0, %v3753
      %3755 = vmatmul.bf16.gmra.mxu0 %v3659
      %v3756 = vpop.f32.mrf.mxu0
      %v3757 = vadd.f32 0.0, %v3756
      %v3758 = vpop.f32.mrf.mxu0
      %v3759 = vadd.f32 0.0, %v3758
      %3760 = vmatmul.bf16.gmra.mxu0 %v3660
      %v3761 = vpop.f32.mrf.mxu0
      %v3762 = vadd.f32 0.0, %v3761
      %v3763 = vpop.f32.mrf.mxu0
      %v3764 = vadd.f32 0.0, %v3763
      %3765 = vdwg.mxu0
      %v3782 = vunpack.c.l.b16 %v3315
      %v3783 = vunpack.c.l.b16 %v3316
      %v3784 = vunpack.c.l.b16 %v3317
      %v3785 = vunpack.c.l.b16 %v3318
      %v3786 = vunpack.c.l.b16 %v3319
      %v3787 = vunpack.c.l.b16 %v3320
      %v3788 = vunpack.c.l.b16 %v3321
      %v3789 = vunpack.c.l.b16 %v3322
      %v3790 = vunpack.c.l.b16 %v3323
      %v3791 = vunpack.c.l.b16 %v3324
      %v3792 = vunpack.c.l.b16 %v3325
      %v3793 = vunpack.c.l.b16 %v3326
      %v3794 = vunpack.c.l.b16 %v3327
      %v3795 = vunpack.c.l.b16 %v3328
      %v3796 = vunpack.c.l.b16 %v3329
      %v3797 = vunpack.c.l.b16 %v3330
      %v3798 = vpack.c.b16 %v3783, %v3782
      %v3799 = vpack.c.b16 %v3785, %v3784
      %v3800 = vpack.c.b16 %v3787, %v3786
      %v3801 = vpack.c.b16 %v3789, %v3788
      %v3802 = vpack.c.b16 %v3791, %v3790
      %v3803 = vpack.c.b16 %v3793, %v3792
      %v3804 = vpack.c.b16 %v3795, %v3794
      %v3805 = vpack.c.b16 %v3797, %v3796
      %v3830 = vunpack.c.l.b16 %v1125
      %v3831 = vunpack.c.l.b16 %v1126
      %v3832 = vunpack.c.l.b16 %v1127
      %v3833 = vunpack.c.l.b16 %v1128
      %v3834 = vunpack.c.l.b16 %v1129
      %v3835 = vunpack.c.l.b16 %v1130
      %v3836 = vunpack.c.l.b16 %v1131
      %v3837 = vunpack.c.l.b16 %v1132
      %v3838 = vunpack.c.l.b16 %v1133
      %v3839 = vunpack.c.l.b16 %v1134
      %v3840 = vunpack.c.l.b16 %v1135
      %v3841 = vunpack.c.l.b16 %v1136
      %v3842 = vunpack.c.l.b16 %v1137
      %v3843 = vunpack.c.l.b16 %v1138
      %v3844 = vunpack.c.l.b16 %v1139
      %v3845 = vunpack.c.l.b16 %v1140
      %v3846 = vpack.c.b16 %v3831, %v3830
      %v3847 = vpack.c.b16 %v3833, %v3832
      %v3848 = vpack.c.b16 %v3835, %v3834
      %v3849 = vpack.c.b16 %v3837, %v3836
      %v3850 = vpack.c.b16 %v3839, %v3838
      %v3851 = vpack.c.b16 %v3841, %v3840
      %v3852 = vpack.c.b16 %v3843, %v3842
      %v3853 = vpack.c.b16 %v3845, %v3844
      %3862 = vmatpush.bf16.msra.mxu0 %v3853
      %3863 = vmatpush.bf16.msra.mxu0 %v3852
      %3864 = vmatpush.bf16.msra.mxu0 %v3851
      %3865 = vmatpush.bf16.msra.mxu0 %v3850
      %3866 = vmatpush.bf16.msra.mxu0 %v3849
      %3867 = vmatpush.bf16.msra.mxu0 %v3848
      %3868 = vmatpush.bf16.msra.mxu0 %v3847
      %3869 = vmatpush.bf16.msra.mxu0 %v3846
      %3870 = vmatmul.bf16.gmra.mxu0 %v3798
      %v3871 = vpop.f32.mrf.mxu0
      %v3872 = vadd.f32 0.0, %v3871
      %v3873 = vpop.f32.mrf.mxu0
      %v3874 = vadd.f32 0.0, %v3873
      %3875 = vmatmul.bf16.gmra.mxu0 %v3799
      %v3876 = vpop.f32.mrf.mxu0
      %v3877 = vadd.f32 0.0, %v3876
      %v3878 = vpop.f32.mrf.mxu0
      %v3879 = vadd.f32 0.0, %v3878
      %3880 = vmatmul.bf16.gmra.mxu0 %v3800
      %v3881 = vpop.f32.mrf.mxu0
      %v3882 = vadd.f32 0.0, %v3881
      %v3883 = vpop.f32.mrf.mxu0
      %v3884 = vadd.f32 0.0, %v3883
      %3885 = vmatmul.bf16.gmra.mxu0 %v3801
      %v3886 = vpop.f32.mrf.mxu0
      %v3887 = vadd.f32 0.0, %v3886
      %v3888 = vpop.f32.mrf.mxu0
      %v3889 = vadd.f32 0.0, %v3888
      %3890 = vmatmul.bf16.gmra.mxu0 %v3802
      %v3891 = vpop.f32.mrf.mxu0
      %v3892 = vadd.f32 0.0, %v3891
      %v3893 = vpop.f32.mrf.mxu0
      %v3894 = vadd.f32 0.0, %v3893
      %3895 = vmatmul.bf16.gmra.mxu0 %v3803
      %v3896 = vpop.f32.mrf.mxu0
      %v3897 = vadd.f32 0.0, %v3896
      %v3898 = vpop.f32.mrf.mxu0
      %v3899 = vadd.f32 0.0, %v3898
      %3900 = vmatmul.bf16.gmra.mxu0 %v3804
      %v3901 = vpop.f32.mrf.mxu0
      %v3902 = vadd.f32 0.0, %v3901
      %v3903 = vpop.f32.mrf.mxu0
      %v3904 = vadd.f32 0.0, %v3903
      %3905 = vmatmul.bf16.gmra.mxu0 %v3805
      %v3906 = vpop.f32.mrf.mxu0
      %v3907 = vadd.f32 0.0, %v3906
      %v3908 = vpop.f32.mrf.mxu0
      %v3909 = vadd.f32 0.0, %v3908
      %3910 = vdwg.mxu0
      %v3911 = vld [vmem:[#allocation5] sm:$0xff]
      %v3912 = vld [vmem:[#allocation5 + $0x8] sm:$0xff]
      %v3913 = vld [vmem:[#allocation5 + $0x10] sm:$0xff]
      %v3914 = vld [vmem:[#allocation5 + $0x18] sm:$0xff]
      %v3915 = vld [vmem:[#allocation5 + $0x20] sm:$0xff]
      %v3916 = vld [vmem:[#allocation5 + $0x28] sm:$0xff]
      %v3917 = vld [vmem:[#allocation5 + $0x30] sm:$0xff]
      %v3918 = vld [vmem:[#allocation5 + $0x38] sm:$0xff]
      %v3919 = vld [vmem:[#allocation5 + $0x40] sm:$0xff]
      %v3920 = vld [vmem:[#allocation5 + $0x48] sm:$0xff]
      %v3921 = vld [vmem:[#allocation5 + $0x50] sm:$0xff]
      %v3922 = vld [vmem:[#allocation5 + $0x58] sm:$0xff]
      %v3923 = vld [vmem:[#allocation5 + $0x60] sm:$0xff]
      %v3924 = vld [vmem:[#allocation5 + $0x68] sm:$0xff]
      %v3925 = vld [vmem:[#allocation5 + $0x70] sm:$0xff]
      %v3926 = vld [vmem:[#allocation5 + $0x78] sm:$0xff]
      %v3927 = vld [vmem:[#allocation5 + $0x80] sm:$0xff]
      %v3928 = vld [vmem:[#allocation5 + $0x88] sm:$0xff]
      %v3929 = vld [vmem:[#allocation5 + $0x90] sm:$0xff]
      %v3930 = vld [vmem:[#allocation5 + $0x98] sm:$0xff]
      %v3931 = vld [vmem:[#allocation5 + $0xa0] sm:$0xff]
      %v3932 = vld [vmem:[#allocation5 + $0xa8] sm:$0xff]
      %v3933 = vld [vmem:[#allocation5 + $0xb0] sm:$0xff]
      %v3934 = vld [vmem:[#allocation5 + $0xb8] sm:$0xff]
      %v3935 = vld [vmem:[#allocation5 + $0xc0] sm:$0xff]
      %v3936 = vld [vmem:[#allocation5 + $0xc8] sm:$0xff]
      %v3937 = vld [vmem:[#allocation5 + $0xd0] sm:$0xff]
      %v3938 = vld [vmem:[#allocation5 + $0xd8] sm:$0xff]
      %v3939 = vld [vmem:[#allocation5 + $0xe0] sm:$0xff]
      %v3940 = vld [vmem:[#allocation5 + $0xe8] sm:$0xff]
      %v3941 = vld [vmem:[#allocation5 + $0xf0] sm:$0xff]
      %v3942 = vld [vmem:[#allocation5 + $0xf8] sm:$0xff]
      %v3943 = vld [vmem:[#allocation5 + $0x100] sm:$0xff]
      %v3944 = vld [vmem:[#allocation5 + $0x108] sm:$0xff]
      %v3945 = vld [vmem:[#allocation5 + $0x110] sm:$0xff]
      %v3946 = vld [vmem:[#allocation5 + $0x118] sm:$0xff]
      %v3947 = vld [vmem:[#allocation5 + $0x120] sm:$0xff]
      %v3948 = vld [vmem:[#allocation5 + $0x128] sm:$0xff]
      %v3949 = vld [vmem:[#allocation5 + $0x130] sm:$0xff]
      %v3950 = vld [vmem:[#allocation5 + $0x138] sm:$0xff]
      %v3951 = vld [vmem:[#allocation5 + $0x140] sm:$0xff]
      %v3952 = vld [vmem:[#allocation5 + $0x148] sm:$0xff]
      %v3953 = vld [vmem:[#allocation5 + $0x150] sm:$0xff]
      %v3954 = vld [vmem:[#allocation5 + $0x158] sm:$0xff]
      %v3955 = vld [vmem:[#allocation5 + $0x160] sm:$0xff]
      %v3956 = vld [vmem:[#allocation5 + $0x168] sm:$0xff]
      %v3957 = vld [vmem:[#allocation5 + $0x170] sm:$0xff]
      %v3958 = vld [vmem:[#allocation5 + $0x178] sm:$0xff]
      %v3959 = vld [vmem:[#allocation5 + $0x180] sm:$0xff]
      %v3960 = vld [vmem:[#allocation5 + $0x188] sm:$0xff]
      %v3961 = vld [vmem:[#allocation5 + $0x190] sm:$0xff]
      %v3962 = vld [vmem:[#allocation5 + $0x198] sm:$0xff]
      %v3963 = vld [vmem:[#allocation5 + $0x1a0] sm:$0xff]
      %v3964 = vld [vmem:[#allocation5 + $0x1a8] sm:$0xff]
      %v3965 = vld [vmem:[#allocation5 + $0x1b0] sm:$0xff]
      %v3966 = vld [vmem:[#allocation5 + $0x1b8] sm:$0xff]
      %v3967 = vld [vmem:[#allocation5 + $0x1c0] sm:$0xff]
      %v3968 = vld [vmem:[#allocation5 + $0x1c8] sm:$0xff]
      %v3969 = vld [vmem:[#allocation5 + $0x1d0] sm:$0xff]
      %v3970 = vld [vmem:[#allocation5 + $0x1d8] sm:$0xff]
      %v3971 = vld [vmem:[#allocation5 + $0x1e0] sm:$0xff]
      %v3972 = vld [vmem:[#allocation5 + $0x1e8] sm:$0xff]
      %v3973 = vld [vmem:[#allocation5 + $0x1f0] sm:$0xff]
      %v3974 = vld [vmem:[#allocation5 + $0x1f8] sm:$0xff]
      %3976 = vset.pattern.permute.xlu0 0
      %3977 = vperm.xlu0 %3976, %v2243
      %v3978 = vpop.permute.xlu0 %3977
      %3981 = vset.pattern.permute.xlu0 0
      %3982 = vperm.xlu0 %3981, %v2245
      %v3983 = vpop.permute.xlu0 %3982
      %3986 = vset.pattern.permute.xlu0 0
      %3987 = vperm.xlu0 %3986, %v2247
      %v3988 = vpop.permute.xlu0 %3987
      %3991 = vset.pattern.permute.xlu0 0
      %3992 = vperm.xlu0 %3991, %v2249
      %v3993 = vpop.permute.xlu0 %3992
      %3996 = vset.pattern.permute.xlu0 0
      %3997 = vperm.xlu0 %3996, %v2251
      %v3998 = vpop.permute.xlu0 %3997
      %4001 = vset.pattern.permute.xlu0 0
      %4002 = vperm.xlu0 %4001, %v2253
      %v4003 = vpop.permute.xlu0 %4002
      %4006 = vset.pattern.permute.xlu0 0
      %4007 = vperm.xlu0 %4006, %v2255
      %v4008 = vpop.permute.xlu0 %4007
      %4011 = vset.pattern.permute.xlu0 0
      %4012 = vperm.xlu0 %4011, %v2257
      %v4013 = vpop.permute.xlu0 %4012
      %4016 = vset.pattern.permute.xlu0 0
      %4017 = vperm.xlu0 %4016, %v2259
      %v4018 = vpop.permute.xlu0 %4017
      %4021 = vset.pattern.permute.xlu0 0
      %4022 = vperm.xlu0 %4021, %v2261
      %v4023 = vpop.permute.xlu0 %4022
      %4026 = vset.pattern.permute.xlu0 0
      %4027 = vperm.xlu0 %4026, %v2263
      %v4028 = vpop.permute.xlu0 %4027
      %4031 = vset.pattern.permute.xlu0 0
      %4032 = vperm.xlu0 %4031, %v2265
      %v4033 = vpop.permute.xlu0 %4032
      %4036 = vset.pattern.permute.xlu0 0
      %4037 = vperm.xlu0 %4036, %v2267
      %v4038 = vpop.permute.xlu0 %4037
      %4041 = vset.pattern.permute.xlu0 0
      %4042 = vperm.xlu0 %4041, %v2269
      %v4043 = vpop.permute.xlu0 %4042
      %4046 = vset.pattern.permute.xlu0 0
      %4047 = vperm.xlu0 %4046, %v2271
      %v4048 = vpop.permute.xlu0 %4047
      %4051 = vset.pattern.permute.xlu0 0
      %4052 = vperm.xlu0 %4051, %v2273
      %v4053 = vpop.permute.xlu0 %4052
      %4056 = vset.pattern.permute.xlu0 0
      %4057 = vperm.xlu0 %4056, %v2275
      %v4058 = vpop.permute.xlu0 %4057
      %4061 = vset.pattern.permute.xlu0 0
      %4062 = vperm.xlu0 %4061, %v2277
      %v4063 = vpop.permute.xlu0 %4062
      %4066 = vset.pattern.permute.xlu0 0
      %4067 = vperm.xlu0 %4066, %v2279
      %v4068 = vpop.permute.xlu0 %4067
      %4071 = vset.pattern.permute.xlu0 0
      %4072 = vperm.xlu0 %4071, %v2281
      %v4073 = vpop.permute.xlu0 %4072
      %4076 = vset.pattern.permute.xlu0 0
      %4077 = vperm.xlu0 %4076, %v2283
      %v4078 = vpop.permute.xlu0 %4077
      %4081 = vset.pattern.permute.xlu0 0
      %4082 = vperm.xlu0 %4081, %v2285
      %v4083 = vpop.permute.xlu0 %4082
      %4086 = vset.pattern.permute.xlu0 0
      %4087 = vperm.xlu0 %4086, %v2287
      %v4088 = vpop.permute.xlu0 %4087
      %4091 = vset.pattern.permute.xlu0 0
      %4092 = vperm.xlu0 %4091, %v2289
      %v4093 = vpop.permute.xlu0 %4092
      %4096 = vset.pattern.permute.xlu0 0
      %4097 = vperm.xlu0 %4096, %v2291
      %v4098 = vpop.permute.xlu0 %4097
      %4101 = vset.pattern.permute.xlu0 0
      %4102 = vperm.xlu0 %4101, %v2293
      %v4103 = vpop.permute.xlu0 %4102
      %4106 = vset.pattern.permute.xlu0 0
      %4107 = vperm.xlu0 %4106, %v2295
      %v4108 = vpop.permute.xlu0 %4107
      %4111 = vset.pattern.permute.xlu0 0
      %4112 = vperm.xlu0 %4111, %v2297
      %v4113 = vpop.permute.xlu0 %4112
      %4116 = vset.pattern.permute.xlu0 0
      %4117 = vperm.xlu0 %4116, %v2299
      %v4118 = vpop.permute.xlu0 %4117
      %4121 = vset.pattern.permute.xlu0 0
      %4122 = vperm.xlu0 %4121, %v2301
      %v4123 = vpop.permute.xlu0 %4122
      %4126 = vset.pattern.permute.xlu0 0
      %4127 = vperm.xlu0 %4126, %v2303
      %v4128 = vpop.permute.xlu0 %4127
      %4131 = vset.pattern.permute.xlu0 0
      %4132 = vperm.xlu0 %4131, %v2305
      %v4133 = vpop.permute.xlu0 %4132
      %4136 = vset.pattern.permute.xlu0 0
      %4137 = vperm.xlu0 %4136, %v2307
      %v4138 = vpop.permute.xlu0 %4137
      %4141 = vset.pattern.permute.xlu0 0
      %4142 = vperm.xlu0 %4141, %v2309
      %v4143 = vpop.permute.xlu0 %4142
      %4146 = vset.pattern.permute.xlu0 0
      %4147 = vperm.xlu0 %4146, %v2311
      %v4148 = vpop.permute.xlu0 %4147
      %4151 = vset.pattern.permute.xlu0 0
      %4152 = vperm.xlu0 %4151, %v2313
      %v4153 = vpop.permute.xlu0 %4152
      %4156 = vset.pattern.permute.xlu0 0
      %4157 = vperm.xlu0 %4156, %v2315
      %v4158 = vpop.permute.xlu0 %4157
      %4161 = vset.pattern.permute.xlu0 0
      %4162 = vperm.xlu0 %4161, %v2317
      %v4163 = vpop.permute.xlu0 %4162
      %4166 = vset.pattern.permute.xlu0 0
      %4167 = vperm.xlu0 %4166, %v2319
      %v4168 = vpop.permute.xlu0 %4167
      %4171 = vset.pattern.permute.xlu0 0
      %4172 = vperm.xlu0 %4171, %v2321
      %v4173 = vpop.permute.xlu0 %4172
      %4176 = vset.pattern.permute.xlu0 0
      %4177 = vperm.xlu0 %4176, %v2323
      %v4178 = vpop.permute.xlu0 %4177
      %4181 = vset.pattern.permute.xlu0 0
      %4182 = vperm.xlu0 %4181, %v2325
      %v4183 = vpop.permute.xlu0 %4182
      %4186 = vset.pattern.permute.xlu0 0
      %4187 = vperm.xlu0 %4186, %v2327
      %v4188 = vpop.permute.xlu0 %4187
      %4191 = vset.pattern.permute.xlu0 0
      %4192 = vperm.xlu0 %4191, %v2329
      %v4193 = vpop.permute.xlu0 %4192
      %4196 = vset.pattern.permute.xlu0 0
      %4197 = vperm.xlu0 %4196, %v2331
      %v4198 = vpop.permute.xlu0 %4197
      %4201 = vset.pattern.permute.xlu0 0
      %4202 = vperm.xlu0 %4201, %v2333
      %v4203 = vpop.permute.xlu0 %4202
      %4206 = vset.pattern.permute.xlu0 0
      %4207 = vperm.xlu0 %4206, %v2335
      %v4208 = vpop.permute.xlu0 %4207
      %4211 = vset.pattern.permute.xlu0 0
      %4212 = vperm.xlu0 %4211, %v2337
      %v4213 = vpop.permute.xlu0 %4212
      %4216 = vset.pattern.permute.xlu0 0
      %4217 = vperm.xlu0 %4216, %v2339
      %v4218 = vpop.permute.xlu0 %4217
      %4221 = vset.pattern.permute.xlu0 0
      %4222 = vperm.xlu0 %4221, %v2341
      %v4223 = vpop.permute.xlu0 %4222
      %4226 = vset.pattern.permute.xlu0 0
      %4227 = vperm.xlu0 %4226, %v2343
      %v4228 = vpop.permute.xlu0 %4227
      %4231 = vset.pattern.permute.xlu0 0
      %4232 = vperm.xlu0 %4231, %v2345
      %v4233 = vpop.permute.xlu0 %4232
      %4236 = vset.pattern.permute.xlu0 0
      %4237 = vperm.xlu0 %4236, %v2347
      %v4238 = vpop.permute.xlu0 %4237
      %4241 = vset.pattern.permute.xlu0 0
      %4242 = vperm.xlu0 %4241, %v2349
      %v4243 = vpop.permute.xlu0 %4242
      %4246 = vset.pattern.permute.xlu0 0
      %4247 = vperm.xlu0 %4246, %v2351
      %v4248 = vpop.permute.xlu0 %4247
      %4251 = vset.pattern.permute.xlu0 0
      %4252 = vperm.xlu0 %4251, %v2353
      %v4253 = vpop.permute.xlu0 %4252
      %4256 = vset.pattern.permute.xlu0 0
      %4257 = vperm.xlu0 %4256, %v2355
      %v4258 = vpop.permute.xlu0 %4257
      %4261 = vset.pattern.permute.xlu0 0
      %4262 = vperm.xlu0 %4261, %v2357
      %v4263 = vpop.permute.xlu0 %4262
      %4266 = vset.pattern.permute.xlu0 0
      %4267 = vperm.xlu0 %4266, %v2359
      %v4268 = vpop.permute.xlu0 %4267
      %4271 = vset.pattern.permute.xlu0 0
      %4272 = vperm.xlu0 %4271, %v2361
      %v4273 = vpop.permute.xlu0 %4272
      %4276 = vset.pattern.permute.xlu0 0
      %4277 = vperm.xlu0 %4276, %v2363
      %v4278 = vpop.permute.xlu0 %4277
      %4281 = vset.pattern.permute.xlu0 0
      %4282 = vperm.xlu0 %4281, %v2365
      %v4283 = vpop.permute.xlu0 %4282
      %4286 = vset.pattern.permute.xlu0 0
      %4287 = vperm.xlu0 %4286, %v2367
      %v4288 = vpop.permute.xlu0 %4287
      %4291 = vset.pattern.permute.xlu0 0
      %4292 = vperm.xlu0 %4291, %v2369
      %v4293 = vpop.permute.xlu0 %4292
      %v4295 = vmul.f32 %v3978, %v3911
      %v4296 = vmul.f32 %v3983, %v3912
      %v4297 = vmul.f32 %v3988, %v3913
      %v4298 = vmul.f32 %v3993, %v3914
      %v4299 = vmul.f32 %v3998, %v3915
      %v4300 = vmul.f32 %v4003, %v3916
      %v4301 = vmul.f32 %v4008, %v3917
      %v4302 = vmul.f32 %v4013, %v3918
      %v4303 = vmul.f32 %v4018, %v3919
      %v4304 = vmul.f32 %v4023, %v3920
      %v4305 = vmul.f32 %v4028, %v3921
      %v4306 = vmul.f32 %v4033, %v3922
      %v4307 = vmul.f32 %v4038, %v3923
      %v4308 = vmul.f32 %v4043, %v3924
      %v4309 = vmul.f32 %v4048, %v3925
      %v4310 = vmul.f32 %v4053, %v3926
      %v4311 = vmul.f32 %v4058, %v3927
      %v4312 = vmul.f32 %v4063, %v3928
      %v4313 = vmul.f32 %v4068, %v3929
      %v4314 = vmul.f32 %v4073, %v3930
      %v4315 = vmul.f32 %v4078, %v3931
      %v4316 = vmul.f32 %v4083, %v3932
      %v4317 = vmul.f32 %v4088, %v3933
      %v4318 = vmul.f32 %v4093, %v3934
      %v4319 = vmul.f32 %v4098, %v3935
      %v4320 = vmul.f32 %v4103, %v3936
      %v4321 = vmul.f32 %v4108, %v3937
      %v4322 = vmul.f32 %v4113, %v3938
      %v4323 = vmul.f32 %v4118, %v3939
      %v4324 = vmul.f32 %v4123, %v3940
      %v4325 = vmul.f32 %v4128, %v3941
      %v4326 = vmul.f32 %v4133, %v3942
      %v4327 = vmul.f32 %v4138, %v3943
      %v4328 = vmul.f32 %v4143, %v3944
      %v4329 = vmul.f32 %v4148, %v3945
      %v4330 = vmul.f32 %v4153, %v3946
      %v4331 = vmul.f32 %v4158, %v3947
      %v4332 = vmul.f32 %v4163, %v3948
      %v4333 = vmul.f32 %v4168, %v3949
      %v4334 = vmul.f32 %v4173, %v3950
      %v4335 = vmul.f32 %v4178, %v3951
      %v4336 = vmul.f32 %v4183, %v3952
      %v4337 = vmul.f32 %v4188, %v3953
      %v4338 = vmul.f32 %v4193, %v3954
      %v4339 = vmul.f32 %v4198, %v3955
      %v4340 = vmul.f32 %v4203, %v3956
      %v4341 = vmul.f32 %v4208, %v3957
      %v4342 = vmul.f32 %v4213, %v3958
      %v4343 = vmul.f32 %v4218, %v3959
      %v4344 = vmul.f32 %v4223, %v3960
      %v4345 = vmul.f32 %v4228, %v3961
      %v4346 = vmul.f32 %v4233, %v3962
      %v4347 = vmul.f32 %v4238, %v3963
      %v4348 = vmul.f32 %v4243, %v3964
      %v4349 = vmul.f32 %v4248, %v3965
      %v4350 = vmul.f32 %v4253, %v3966
      %v4351 = vmul.f32 %v4258, %v3967
      %v4352 = vmul.f32 %v4263, %v3968
      %v4353 = vmul.f32 %v4268, %v3969
      %v4354 = vmul.f32 %v4273, %v3970
      %v4355 = vmul.f32 %v4278, %v3971
      %v4356 = vmul.f32 %v4283, %v3972
      %v4357 = vmul.f32 %v4288, %v3973
      %v4358 = vmul.f32 %v4293, %v3974
      %v4359 = vadd.f32 %v4295, %v3437
      %v4360 = vadd.f32 %v4296, %v3439
      %v4361 = vadd.f32 %v4297, %v3442
      %v4362 = vadd.f32 %v4298, %v3444
      %v4363 = vadd.f32 %v4299, %v3447
      %v4364 = vadd.f32 %v4300, %v3449
      %v4365 = vadd.f32 %v4301, %v3452
      %v4366 = vadd.f32 %v4302, %v3454
      %v4367 = vadd.f32 %v4303, %v3457
      %v4368 = vadd.f32 %v4304, %v3459
      %v4369 = vadd.f32 %v4305, %v3462
      %v4370 = vadd.f32 %v4306, %v3464
      %v4371 = vadd.f32 %v4307, %v3467
      %v4372 = vadd.f32 %v4308, %v3469
      %v4373 = vadd.f32 %v4309, %v3472
      %v4374 = vadd.f32 %v4310, %v3474
      %v4375 = vadd.f32 %v4311, %v3582
      %v4376 = vadd.f32 %v4312, %v3584
      %v4377 = vadd.f32 %v4313, %v3587
      %v4378 = vadd.f32 %v4314, %v3589
      %v4379 = vadd.f32 %v4315, %v3592
      %v4380 = vadd.f32 %v4316, %v3594
      %v4381 = vadd.f32 %v4317, %v3597
      %v4382 = vadd.f32 %v4318, %v3599
      %v4383 = vadd.f32 %v4319, %v3602
      %v4384 = vadd.f32 %v4320, %v3604
      %v4385 = vadd.f32 %v4321, %v3607
      %v4386 = vadd.f32 %v4322, %v3609
      %v4387 = vadd.f32 %v4323, %v3612
      %v4388 = vadd.f32 %v4324, %v3614
      %v4389 = vadd.f32 %v4325, %v3617
      %v4390 = vadd.f32 %v4326, %v3619
      %v4391 = vadd.f32 %v4327, %v3727
      %v4392 = vadd.f32 %v4328, %v3729
      %v4393 = vadd.f32 %v4329, %v3732
      %v4394 = vadd.f32 %v4330, %v3734
      %v4395 = vadd.f32 %v4331, %v3737
      %v4396 = vadd.f32 %v4332, %v3739
      %v4397 = vadd.f32 %v4333, %v3742
      %v4398 = vadd.f32 %v4334, %v3744
      %v4399 = vadd.f32 %v4335, %v3747
      %v4400 = vadd.f32 %v4336, %v3749
      %v4401 = vadd.f32 %v4337, %v3752
      %v4402 = vadd.f32 %v4338, %v3754
      %v4403 = vadd.f32 %v4339, %v3757
      %v4404 = vadd.f32 %v4340, %v3759
      %v4405 = vadd.f32 %v4341, %v3762
      %v4406 = vadd.f32 %v4342, %v3764
      %v4407 = vadd.f32 %v4343, %v3872
      %v4408 = vadd.f32 %v4344, %v3874
      %v4409 = vadd.f32 %v4345, %v3877
      %v4410 = vadd.f32 %v4346, %v3879
      %v4411 = vadd.f32 %v4347, %v3882
      %v4412 = vadd.f32 %v4348, %v3884
      %v4413 = vadd.f32 %v4349, %v3887
      %v4414 = vadd.f32 %v4350, %v3889
      %v4415 = vadd.f32 %v4351, %v3892
      %v4416 = vadd.f32 %v4352, %v3894
      %v4417 = vadd.f32 %v4353, %v3897
      %v4418 = vadd.f32 %v4354, %v3899
      %v4419 = vadd.f32 %v4355, %v3902
      %v4420 = vadd.f32 %v4356, %v3904
      %v4421 = vadd.f32 %v4357, %v3907
      %v4422 = vadd.f32 %v4358, %v3909
      %4423 = vst.msk [vmem:[#allocation5] sm:$0xff] %vm1221, %v4359
      %4424 = vst.msk [vmem:[#allocation5 + $0x8] sm:$0xff] %vm1221, %v4360
      %4425 = vst.msk [vmem:[#allocation5 + $0x10] sm:$0xff] %vm1221, %v4361
      %4426 = vst.msk [vmem:[#allocation5 + $0x18] sm:$0xff] %vm1221, %v4362
      %4427 = vst.msk [vmem:[#allocation5 + $0x20] sm:$0xff] %vm1221, %v4363
      %4428 = vst.msk [vmem:[#allocation5 + $0x28] sm:$0xff] %vm1221, %v4364
      %4429 = vst.msk [vmem:[#allocation5 + $0x30] sm:$0xff] %vm1221, %v4365
      %4430 = vst.msk [vmem:[#allocation5 + $0x38] sm:$0xff] %vm1221, %v4366
      %4431 = vst.msk [vmem:[#allocation5 + $0x40] sm:$0xff] %vm1221, %v4367
      %4432 = vst.msk [vmem:[#allocation5 + $0x48] sm:$0xff] %vm1221, %v4368
      %4433 = vst.msk [vmem:[#allocation5 + $0x50] sm:$0xff] %vm1221, %v4369
      %4434 = vst.msk [vmem:[#allocation5 + $0x58] sm:$0xff] %vm1221, %v4370
      %4435 = vst.msk [vmem:[#allocation5 + $0x60] sm:$0xff] %vm1221, %v4371
      %4436 = vst.msk [vmem:[#allocation5 + $0x68] sm:$0xff] %vm1221, %v4372
      %4437 = vst.msk [vmem:[#allocation5 + $0x70] sm:$0xff] %vm1221, %v4373
      %4438 = vst.msk [vmem:[#allocation5 + $0x78] sm:$0xff] %vm1221, %v4374
      %4439 = vst.msk [vmem:[#allocation5 + $0x80] sm:$0xff] %vm1221, %v4375
      %4440 = vst.msk [vmem:[#allocation5 + $0x88] sm:$0xff] %vm1221, %v4376
      %4441 = vst.msk [vmem:[#allocation5 + $0x90] sm:$0xff] %vm1221, %v4377
      %4442 = vst.msk [vmem:[#allocation5 + $0x98] sm:$0xff] %vm1221, %v4378
      %4443 = vst.msk [vmem:[#allocation5 + $0xa0] sm:$0xff] %vm1221, %v4379
      %4444 = vst.msk [vmem:[#allocation5 + $0xa8] sm:$0xff] %vm1221, %v4380
      %4445 = vst.msk [vmem:[#allocation5 + $0xb0] sm:$0xff] %vm1221, %v4381
      %4446 = vst.msk [vmem:[#allocation5 + $0xb8] sm:$0xff] %vm1221, %v4382
      %4447 = vst.msk [vmem:[#allocation5 + $0xc0] sm:$0xff] %vm1221, %v4383
      %4448 = vst.msk [vmem:[#allocation5 + $0xc8] sm:$0xff] %vm1221, %v4384
      %4449 = vst.msk [vmem:[#allocation5 + $0xd0] sm:$0xff] %vm1221, %v4385
      %4450 = vst.msk [vmem:[#allocation5 + $0xd8] sm:$0xff] %vm1221, %v4386
      %4451 = vst.msk [vmem:[#allocation5 + $0xe0] sm:$0xff] %vm1221, %v4387
      %4452 = vst.msk [vmem:[#allocation5 + $0xe8] sm:$0xff] %vm1221, %v4388
      %4453 = vst.msk [vmem:[#allocation5 + $0xf0] sm:$0xff] %vm1221, %v4389
      %4454 = vst.msk [vmem:[#allocation5 + $0xf8] sm:$0xff] %vm1221, %v4390
      %4455 = vst.msk [vmem:[#allocation5 + $0x100] sm:$0xff] %vm1221, %v4391
      %4456 = vst.msk [vmem:[#allocation5 + $0x108] sm:$0xff] %vm1221, %v4392
      %4457 = vst.msk [vmem:[#allocation5 + $0x110] sm:$0xff] %vm1221, %v4393
      %4458 = vst.msk [vmem:[#allocation5 + $0x118] sm:$0xff] %vm1221, %v4394
      %4459 = vst.msk [vmem:[#allocation5 + $0x120] sm:$0xff] %vm1221, %v4395
      %4460 = vst.msk [vmem:[#allocation5 + $0x128] sm:$0xff] %vm1221, %v4396
      %4461 = vst.msk [vmem:[#allocation5 + $0x130] sm:$0xff] %vm1221, %v4397
      %4462 = vst.msk [vmem:[#allocation5 + $0x138] sm:$0xff] %vm1221, %v4398
      %4463 = vst.msk [vmem:[#allocation5 + $0x140] sm:$0xff] %vm1221, %v4399
      %4464 = vst.msk [vmem:[#allocation5 + $0x148] sm:$0xff] %vm1221, %v4400
      %4465 = vst.msk [vmem:[#allocation5 + $0x150] sm:$0xff] %vm1221, %v4401
      %4466 = vst.msk [vmem:[#allocation5 + $0x158] sm:$0xff] %vm1221, %v4402
      %4467 = vst.msk [vmem:[#allocation5 + $0x160] sm:$0xff] %vm1221, %v4403
      %4468 = vst.msk [vmem:[#allocation5 + $0x168] sm:$0xff] %vm1221, %v4404
      %4469 = vst.msk [vmem:[#allocation5 + $0x170] sm:$0xff] %vm1221, %v4405
      %4470 = vst.msk [vmem:[#allocation5 + $0x178] sm:$0xff] %vm1221, %v4406
      %4471 = vst.msk [vmem:[#allocation5 + $0x180] sm:$0xff] %vm1221, %v4407
      %4472 = vst.msk [vmem:[#allocation5 + $0x188] sm:$0xff] %vm1221, %v4408
      %4473 = vst.msk [vmem:[#allocation5 + $0x190] sm:$0xff] %vm1221, %v4409
      %4474 = vst.msk [vmem:[#allocation5 + $0x198] sm:$0xff] %vm1221, %v4410
      %4475 = vst.msk [vmem:[#allocation5 + $0x1a0] sm:$0xff] %vm1221, %v4411
      %4476 = vst.msk [vmem:[#allocation5 + $0x1a8] sm:$0xff] %vm1221, %v4412
      %4477 = vst.msk [vmem:[#allocation5 + $0x1b0] sm:$0xff] %vm1221, %v4413
      %4478 = vst.msk [vmem:[#allocation5 + $0x1b8] sm:$0xff] %vm1221, %v4414
      %4479 = vst.msk [vmem:[#allocation5 + $0x1c0] sm:$0xff] %vm1221, %v4415
      %4480 = vst.msk [vmem:[#allocation5 + $0x1c8] sm:$0xff] %vm1221, %v4416
      %4481 = vst.msk [vmem:[#allocation5 + $0x1d0] sm:$0xff] %vm1221, %v4417
      %4482 = vst.msk [vmem:[#allocation5 + $0x1d8] sm:$0xff] %vm1221, %v4418
      %4483 = vst.msk [vmem:[#allocation5 + $0x1e0] sm:$0xff] %vm1221, %v4419
      %4484 = vst.msk [vmem:[#allocation5 + $0x1e8] sm:$0xff] %vm1221, %v4420
      %4485 = vst.msk [vmem:[#allocation5 + $0x1f0] sm:$0xff] %vm1221, %v4421
      %4486 = vst.msk [vmem:[#allocation5 + $0x1f8] sm:$0xff] %vm1221, %v4422
      %4487 = vst.msk [vmem:[#allocation3] sm:$0xff] %vm3202, %v2114
      %4488 = vst.msk [vmem:[#allocation3 + $0x8] sm:$0xff] %vm3202, %v2115
      %4489 = vst.msk [vmem:[#allocation3 + $0x10] sm:$0xff] %vm3202, %v2116
      %4490 = vst.msk [vmem:[#allocation3 + $0x18] sm:$0xff] %vm3202, %v2117
      %4491 = vst.msk [vmem:[#allocation3 + $0x20] sm:$0xff] %vm3202, %v2118
      %4492 = vst.msk [vmem:[#allocation3 + $0x28] sm:$0xff] %vm3202, %v2119
      %4493 = vst.msk [vmem:[#allocation3 + $0x30] sm:$0xff] %vm3202, %v2120
      %4494 = vst.msk [vmem:[#allocation3 + $0x38] sm:$0xff] %vm3202, %v2121
      %4495 = vst.msk [vmem:[#allocation3 + $0x40] sm:$0xff] %vm3202, %v2122
      %4496 = vst.msk [vmem:[#allocation3 + $0x48] sm:$0xff] %vm3202, %v2123
      %4497 = vst.msk [vmem:[#allocation3 + $0x50] sm:$0xff] %vm3202, %v2124
      %4498 = vst.msk [vmem:[#allocation3 + $0x58] sm:$0xff] %vm3202, %v2125
      %4499 = vst.msk [vmem:[#allocation3 + $0x60] sm:$0xff] %vm3202, %v2126
      %4500 = vst.msk [vmem:[#allocation3 + $0x68] sm:$0xff] %vm3202, %v2127
      %4501 = vst.msk [vmem:[#allocation3 + $0x70] sm:$0xff] %vm3202, %v2128
      %4502 = vst.msk [vmem:[#allocation3 + $0x78] sm:$0xff] %vm3202, %v2129
      %4503 = vst.msk [vmem:[#allocation3 + $0x80] sm:$0xff] %vm3202, %v2130
      %4504 = vst.msk [vmem:[#allocation3 + $0x88] sm:$0xff] %vm3202, %v2131
      %4505 = vst.msk [vmem:[#allocation3 + $0x90] sm:$0xff] %vm3202, %v2132
      %4506 = vst.msk [vmem:[#allocation3 + $0x98] sm:$0xff] %vm3202, %v2133
      %4507 = vst.msk [vmem:[#allocation3 + $0xa0] sm:$0xff] %vm3202, %v2134
      %4508 = vst.msk [vmem:[#allocation3 + $0xa8] sm:$0xff] %vm3202, %v2135
      %4509 = vst.msk [vmem:[#allocation3 + $0xb0] sm:$0xff] %vm3202, %v2136
      %4510 = vst.msk [vmem:[#allocation3 + $0xb8] sm:$0xff] %vm3202, %v2137
      %4511 = vst.msk [vmem:[#allocation3 + $0xc0] sm:$0xff] %vm3202, %v2138
      %4512 = vst.msk [vmem:[#allocation3 + $0xc8] sm:$0xff] %vm3202, %v2139
      %4513 = vst.msk [vmem:[#allocation3 + $0xd0] sm:$0xff] %vm3202, %v2140
      %4514 = vst.msk [vmem:[#allocation3 + $0xd8] sm:$0xff] %vm3202, %v2141
      %4515 = vst.msk [vmem:[#allocation3 + $0xe0] sm:$0xff] %vm3202, %v2142
      %4516 = vst.msk [vmem:[#allocation3 + $0xe8] sm:$0xff] %vm3202, %v2143
      %4517 = vst.msk [vmem:[#allocation3 + $0xf0] sm:$0xff] %vm3202, %v2144
      %4518 = vst.msk [vmem:[#allocation3 + $0xf8] sm:$0xff] %vm3202, %v2145
      %4519 = vst.msk [vmem:[#allocation3 + $0x100] sm:$0xff] %vm3202, %v2146
      %4520 = vst.msk [vmem:[#allocation3 + $0x108] sm:$0xff] %vm3202, %v2147
      %4521 = vst.msk [vmem:[#allocation3 + $0x110] sm:$0xff] %vm3202, %v2148
      %4522 = vst.msk [vmem:[#allocation3 + $0x118] sm:$0xff] %vm3202, %v2149
      %4523 = vst.msk [vmem:[#allocation3 + $0x120] sm:$0xff] %vm3202, %v2150
      %4524 = vst.msk [vmem:[#allocation3 + $0x128] sm:$0xff] %vm3202, %v2151
      %4525 = vst.msk [vmem:[#allocation3 + $0x130] sm:$0xff] %vm3202, %v2152
      %4526 = vst.msk [vmem:[#allocation3 + $0x138] sm:$0xff] %vm3202, %v2153
      %4527 = vst.msk [vmem:[#allocation3 + $0x140] sm:$0xff] %vm3202, %v2154
      %4528 = vst.msk [vmem:[#allocation3 + $0x148] sm:$0xff] %vm3202, %v2155
      %4529 = vst.msk [vmem:[#allocation3 + $0x150] sm:$0xff] %vm3202, %v2156
      %4530 = vst.msk [vmem:[#allocation3 + $0x158] sm:$0xff] %vm3202, %v2157
      %4531 = vst.msk [vmem:[#allocation3 + $0x160] sm:$0xff] %vm3202, %v2158
      %4532 = vst.msk [vmem:[#allocation3 + $0x168] sm:$0xff] %vm3202, %v2159
      %4533 = vst.msk [vmem:[#allocation3 + $0x170] sm:$0xff] %vm3202, %v2160
      %4534 = vst.msk [vmem:[#allocation3 + $0x178] sm:$0xff] %vm3202, %v2161
      %4535 = vst.msk [vmem:[#allocation3 + $0x180] sm:$0xff] %vm3202, %v2162
      %4536 = vst.msk [vmem:[#allocation3 + $0x188] sm:$0xff] %vm3202, %v2163
      %4537 = vst.msk [vmem:[#allocation3 + $0x190] sm:$0xff] %vm3202, %v2164
      %4538 = vst.msk [vmem:[#allocation3 + $0x198] sm:$0xff] %vm3202, %v2165
      %4539 = vst.msk [vmem:[#allocation3 + $0x1a0] sm:$0xff] %vm3202, %v2166
      %4540 = vst.msk [vmem:[#allocation3 + $0x1a8] sm:$0xff] %vm3202, %v2167
      %4541 = vst.msk [vmem:[#allocation3 + $0x1b0] sm:$0xff] %vm3202, %v2168
      %4542 = vst.msk [vmem:[#allocation3 + $0x1b8] sm:$0xff] %vm3202, %v2169
      %4543 = vst.msk [vmem:[#allocation3 + $0x1c0] sm:$0xff] %vm3202, %v2170
      %4544 = vst.msk [vmem:[#allocation3 + $0x1c8] sm:$0xff] %vm3202, %v2171
      %4545 = vst.msk [vmem:[#allocation3 + $0x1d0] sm:$0xff] %vm3202, %v2172
      %4546 = vst.msk [vmem:[#allocation3 + $0x1d8] sm:$0xff] %vm3202, %v2173
      %4547 = vst.msk [vmem:[#allocation3 + $0x1e0] sm:$0xff] %vm3202, %v2174
      %4548 = vst.msk [vmem:[#allocation3 + $0x1e8] sm:$0xff] %vm3202, %v2175
      %4549 = vst.msk [vmem:[#allocation3 + $0x1f0] sm:$0xff] %vm3202, %v2176
      %4550 = vst.msk [vmem:[#allocation3 + $0x1f8] sm:$0xff] %vm3202, %v2177
      // Predicated region
      $region37: #{tpu_custom_call.1} parent=31 // pred_check
        %p4551 = pneg %p366
      $region38: #{tpu_custom_call.1} parent=31 // pred_check_branch
        %4553 = sbr.rel (%p4551) target = $region40
      $region39: #{tpu_custom_call.1} parent=31 // pred_region
        %v4554 = vld [vmem:[#allocation4] sm:$0xff]
        %v4555 = vld [vmem:[#allocation4 + $0x8] sm:$0xff]
        %v4556 = vld [vmem:[#allocation4 + $0x10] sm:$0xff]
        %v4557 = vld [vmem:[#allocation4 + $0x18] sm:$0xff]
        %v4558 = vld [vmem:[#allocation4 + $0x20] sm:$0xff]
        %v4559 = vld [vmem:[#allocation4 + $0x28] sm:$0xff]
        %v4560 = vld [vmem:[#allocation4 + $0x30] sm:$0xff]
        %v4561 = vld [vmem:[#allocation4 + $0x38] sm:$0xff]
        %v4562 = vld [vmem:[#allocation4 + $0x40] sm:$0xff]
        %v4563 = vld [vmem:[#allocation4 + $0x48] sm:$0xff]
        %v4564 = vld [vmem:[#allocation4 + $0x50] sm:$0xff]
        %v4565 = vld [vmem:[#allocation4 + $0x58] sm:$0xff]
        %v4566 = vld [vmem:[#allocation4 + $0x60] sm:$0xff]
        %v4567 = vld [vmem:[#allocation4 + $0x68] sm:$0xff]
        %v4568 = vld [vmem:[#allocation4 + $0x70] sm:$0xff]
        %v4569 = vld [vmem:[#allocation4 + $0x78] sm:$0xff]
        %v4570 = vld [vmem:[#allocation4 + $0x80] sm:$0xff]
        %v4571 = vld [vmem:[#allocation4 + $0x88] sm:$0xff]
        %v4572 = vld [vmem:[#allocation4 + $0x90] sm:$0xff]
        %v4573 = vld [vmem:[#allocation4 + $0x98] sm:$0xff]
        %v4574 = vld [vmem:[#allocation4 + $0xa0] sm:$0xff]
        %v4575 = vld [vmem:[#allocation4 + $0xa8] sm:$0xff]
        %v4576 = vld [vmem:[#allocation4 + $0xb0] sm:$0xff]
        %v4577 = vld [vmem:[#allocation4 + $0xb8] sm:$0xff]
        %v4578 = vld [vmem:[#allocation4 + $0xc0] sm:$0xff]
        %v4579 = vld [vmem:[#allocation4 + $0xc8] sm:$0xff]
        %v4580 = vld [vmem:[#allocation4 + $0xd0] sm:$0xff]
        %v4581 = vld [vmem:[#allocation4 + $0xd8] sm:$0xff]
        %v4582 = vld [vmem:[#allocation4 + $0xe0] sm:$0xff]
        %v4583 = vld [vmem:[#allocation4 + $0xe8] sm:$0xff]
        %v4584 = vld [vmem:[#allocation4 + $0xf0] sm:$0xff]
        %v4585 = vld [vmem:[#allocation4 + $0xf8] sm:$0xff]
        %v4586 = vld [vmem:[#allocation4 + $0x100] sm:$0xff]
        %v4587 = vld [vmem:[#allocation4 + $0x108] sm:$0xff]
        %v4588 = vld [vmem:[#allocation4 + $0x110] sm:$0xff]
        %v4589 = vld [vmem:[#allocation4 + $0x118] sm:$0xff]
        %v4590 = vld [vmem:[#allocation4 + $0x120] sm:$0xff]
        %v4591 = vld [vmem:[#allocation4 + $0x128] sm:$0xff]
        %v4592 = vld [vmem:[#allocation4 + $0x130] sm:$0xff]
        %v4593 = vld [vmem:[#allocation4 + $0x138] sm:$0xff]
        %v4594 = vld [vmem:[#allocation4 + $0x140] sm:$0xff]
        %v4595 = vld [vmem:[#allocation4 + $0x148] sm:$0xff]
        %v4596 = vld [vmem:[#allocation4 + $0x150] sm:$0xff]
        %v4597 = vld [vmem:[#allocation4 + $0x158] sm:$0xff]
        %v4598 = vld [vmem:[#allocation4 + $0x160] sm:$0xff]
        %v4599 = vld [vmem:[#allocation4 + $0x168] sm:$0xff]
        %v4600 = vld [vmem:[#allocation4 + $0x170] sm:$0xff]
        %v4601 = vld [vmem:[#allocation4 + $0x178] sm:$0xff]
        %v4602 = vld [vmem:[#allocation4 + $0x180] sm:$0xff]
        %v4603 = vld [vmem:[#allocation4 + $0x188] sm:$0xff]
        %v4604 = vld [vmem:[#allocation4 + $0x190] sm:$0xff]
        %v4605 = vld [vmem:[#allocation4 + $0x198] sm:$0xff]
        %v4606 = vld [vmem:[#allocation4 + $0x1a0] sm:$0xff]
        %v4607 = vld [vmem:[#allocation4 + $0x1a8] sm:$0xff]
        %v4608 = vld [vmem:[#allocation4 + $0x1b0] sm:$0xff]
        %v4609 = vld [vmem:[#allocation4 + $0x1b8] sm:$0xff]
        %v4610 = vld [vmem:[#allocation4 + $0x1c0] sm:$0xff]
        %v4611 = vld [vmem:[#allocation4 + $0x1c8] sm:$0xff]
        %v4612 = vld [vmem:[#allocation4 + $0x1d0] sm:$0xff]
        %v4613 = vld [vmem:[#allocation4 + $0x1d8] sm:$0xff]
        %v4614 = vld [vmem:[#allocation4 + $0x1e0] sm:$0xff]
        %v4615 = vld [vmem:[#allocation4 + $0x1e8] sm:$0xff]
        %v4616 = vld [vmem:[#allocation4 + $0x1f0] sm:$0xff]
        %v4617 = vld [vmem:[#allocation4 + $0x1f8] sm:$0xff]
        %v4618 = vrcp.pop %v4554
        %v4619 = vrcp.pop %v4555
        %v4620 = vrcp.pop %v4556
        %v4621 = vrcp.pop %v4557
        %v4622 = vrcp.pop %v4558
        %v4623 = vrcp.pop %v4559
        %v4624 = vrcp.pop %v4560
        %v4625 = vrcp.pop %v4561
        %v4626 = vrcp.pop %v4562
        %v4627 = vrcp.pop %v4563
        %v4628 = vrcp.pop %v4564
        %v4629 = vrcp.pop %v4565
        %v4630 = vrcp.pop %v4566
        %v4631 = vrcp.pop %v4567
        %v4632 = vrcp.pop %v4568
        %v4633 = vrcp.pop %v4569
        %v4634 = vrcp.pop %v4570
        %v4635 = vrcp.pop %v4571
        %v4636 = vrcp.pop %v4572
        %v4637 = vrcp.pop %v4573
        %v4638 = vrcp.pop %v4574
        %v4639 = vrcp.pop %v4575
        %v4640 = vrcp.pop %v4576
        %v4641 = vrcp.pop %v4577
        %v4642 = vrcp.pop %v4578
        %v4643 = vrcp.pop %v4579
        %v4644 = vrcp.pop %v4580
        %v4645 = vrcp.pop %v4581
        %v4646 = vrcp.pop %v4582
        %v4647 = vrcp.pop %v4583
        %v4648 = vrcp.pop %v4584
        %v4649 = vrcp.pop %v4585
        %v4650 = vrcp.pop %v4586
        %v4651 = vrcp.pop %v4587
        %v4652 = vrcp.pop %v4588
        %v4653 = vrcp.pop %v4589
        %v4654 = vrcp.pop %v4590
        %v4655 = vrcp.pop %v4591
        %v4656 = vrcp.pop %v4592
        %v4657 = vrcp.pop %v4593
        %v4658 = vrcp.pop %v4594
        %v4659 = vrcp.pop %v4595
        %v4660 = vrcp.pop %v4596
        %v4661 = vrcp.pop %v4597
        %v4662 = vrcp.pop %v4598
        %v4663 = vrcp.pop %v4599
        %v4664 = vrcp.pop %v4600
        %v4665 = vrcp.pop %v4601
        %v4666 = vrcp.pop %v4602
        %v4667 = vrcp.pop %v4603
        %v4668 = vrcp.pop %v4604
        %v4669 = vrcp.pop %v4605
        %v4670 = vrcp.pop %v4606
        %v4671 = vrcp.pop %v4607
        %v4672 = vrcp.pop %v4608
        %v4673 = vrcp.pop %v4609
        %v4674 = vrcp.pop %v4610
        %v4675 = vrcp.pop %v4611
        %v4676 = vrcp.pop %v4612
        %v4677 = vrcp.pop %v4613
        %v4678 = vrcp.pop %v4614
        %v4679 = vrcp.pop %v4615
        %v4680 = vrcp.pop %v4616
        %v4681 = vrcp.pop %v4617
        %v4682 = vld [vmem:[#allocation5] sm:$0xff]
        %v4683 = vld [vmem:[#allocation5 + $0x8] sm:$0xff]
        %v4684 = vld [vmem:[#allocation5 + $0x10] sm:$0xff]
        %v4685 = vld [vmem:[#allocation5 + $0x18] sm:$0xff]
        %v4686 = vld [vmem:[#allocation5 + $0x20] sm:$0xff]
        %v4687 = vld [vmem:[#allocation5 + $0x28] sm:$0xff]
        %v4688 = vld [vmem:[#allocation5 + $0x30] sm:$0xff]
        %v4689 = vld [vmem:[#allocation5 + $0x38] sm:$0xff]
        %v4690 = vld [vmem:[#allocation5 + $0x40] sm:$0xff]
        %v4691 = vld [vmem:[#allocation5 + $0x48] sm:$0xff]
        %v4692 = vld [vmem:[#allocation5 + $0x50] sm:$0xff]
        %v4693 = vld [vmem:[#allocation5 + $0x58] sm:$0xff]
        %v4694 = vld [vmem:[#allocation5 + $0x60] sm:$0xff]
        %v4695 = vld [vmem:[#allocation5 + $0x68] sm:$0xff]
        %v4696 = vld [vmem:[#allocation5 + $0x70] sm:$0xff]
        %v4697 = vld [vmem:[#allocation5 + $0x78] sm:$0xff]
        %v4698 = vld [vmem:[#allocation5 + $0x80] sm:$0xff]
        %v4699 = vld [vmem:[#allocation5 + $0x88] sm:$0xff]
        %v4700 = vld [vmem:[#allocation5 + $0x90] sm:$0xff]
        %v4701 = vld [vmem:[#allocation5 + $0x98] sm:$0xff]
        %v4702 = vld [vmem:[#allocation5 + $0xa0] sm:$0xff]
        %v4703 = vld [vmem:[#allocation5 + $0xa8] sm:$0xff]
        %v4704 = vld [vmem:[#allocation5 + $0xb0] sm:$0xff]
        %v4705 = vld [vmem:[#allocation5 + $0xb8] sm:$0xff]
        %v4706 = vld [vmem:[#allocation5 + $0xc0] sm:$0xff]
        %v4707 = vld [vmem:[#allocation5 + $0xc8] sm:$0xff]
        %v4708 = vld [vmem:[#allocation5 + $0xd0] sm:$0xff]
        %v4709 = vld [vmem:[#allocation5 + $0xd8] sm:$0xff]
        %v4710 = vld [vmem:[#allocation5 + $0xe0] sm:$0xff]
        %v4711 = vld [vmem:[#allocation5 + $0xe8] sm:$0xff]
        %v4712 = vld [vmem:[#allocation5 + $0xf0] sm:$0xff]
        %v4713 = vld [vmem:[#allocation5 + $0xf8] sm:$0xff]
        %v4714 = vld [vmem:[#allocation5 + $0x100] sm:$0xff]
        %v4715 = vld [vmem:[#allocation5 + $0x108] sm:$0xff]
        %v4716 = vld [vmem:[#allocation5 + $0x110] sm:$0xff]
        %v4717 = vld [vmem:[#allocation5 + $0x118] sm:$0xff]
        %v4718 = vld [vmem:[#allocation5 + $0x120] sm:$0xff]
        %v4719 = vld [vmem:[#allocation5 + $0x128] sm:$0xff]
        %v4720 = vld [vmem:[#allocation5 + $0x130] sm:$0xff]
        %v4721 = vld [vmem:[#allocation5 + $0x138] sm:$0xff]
        %v4722 = vld [vmem:[#allocation5 + $0x140] sm:$0xff]
        %v4723 = vld [vmem:[#allocation5 + $0x148] sm:$0xff]
        %v4724 = vld [vmem:[#allocation5 + $0x150] sm:$0xff]
        %v4725 = vld [vmem:[#allocation5 + $0x158] sm:$0xff]
        %v4726 = vld [vmem:[#allocation5 + $0x160] sm:$0xff]
        %v4727 = vld [vmem:[#allocation5 + $0x168] sm:$0xff]
        %v4728 = vld [vmem:[#allocation5 + $0x170] sm:$0xff]
        %v4729 = vld [vmem:[#allocation5 + $0x178] sm:$0xff]
        %v4730 = vld [vmem:[#allocation5 + $0x180] sm:$0xff]
        %v4731 = vld [vmem:[#allocation5 + $0x188] sm:$0xff]
        %v4732 = vld [vmem:[#allocation5 + $0x190] sm:$0xff]
        %v4733 = vld [vmem:[#allocation5 + $0x198] sm:$0xff]
        %v4734 = vld [vmem:[#allocation5 + $0x1a0] sm:$0xff]
        %v4735 = vld [vmem:[#allocation5 + $0x1a8] sm:$0xff]
        %v4736 = vld [vmem:[#allocation5 + $0x1b0] sm:$0xff]
        %v4737 = vld [vmem:[#allocation5 + $0x1b8] sm:$0xff]
        %v4738 = vld [vmem:[#allocation5 + $0x1c0] sm:$0xff]
        %v4739 = vld [vmem:[#allocation5 + $0x1c8] sm:$0xff]
        %v4740 = vld [vmem:[#allocation5 + $0x1d0] sm:$0xff]
        %v4741 = vld [vmem:[#allocation5 + $0x1d8] sm:$0xff]
        %v4742 = vld [vmem:[#allocation5 + $0x1e0] sm:$0xff]
        %v4743 = vld [vmem:[#allocation5 + $0x1e8] sm:$0xff]
        %v4744 = vld [vmem:[#allocation5 + $0x1f0] sm:$0xff]
        %v4745 = vld [vmem:[#allocation5 + $0x1f8] sm:$0xff]
        %4747 = vset.pattern.permute.xlu0 0
        %4748 = vperm.xlu0 %4747, %v4618
        %v4749 = vpop.permute.xlu0 %4748
        %4752 = vset.pattern.permute.xlu0 0
        %4753 = vperm.xlu0 %4752, %v4619
        %v4754 = vpop.permute.xlu0 %4753
        %4757 = vset.pattern.permute.xlu0 0
        %4758 = vperm.xlu0 %4757, %v4620
        %v4759 = vpop.permute.xlu0 %4758
        %4762 = vset.pattern.permute.xlu0 0
        %4763 = vperm.xlu0 %4762, %v4621
        %v4764 = vpop.permute.xlu0 %4763
        %4767 = vset.pattern.permute.xlu0 0
        %4768 = vperm.xlu0 %4767, %v4622
        %v4769 = vpop.permute.xlu0 %4768
        %4772 = vset.pattern.permute.xlu0 0
        %4773 = vperm.xlu0 %4772, %v4623
        %v4774 = vpop.permute.xlu0 %4773
        %4777 = vset.pattern.permute.xlu0 0
        %4778 = vperm.xlu0 %4777, %v4624
        %v4779 = vpop.permute.xlu0 %4778
        %4782 = vset.pattern.permute.xlu0 0
        %4783 = vperm.xlu0 %4782, %v4625
        %v4784 = vpop.permute.xlu0 %4783
        %4787 = vset.pattern.permute.xlu0 0
        %4788 = vperm.xlu0 %4787, %v4626
        %v4789 = vpop.permute.xlu0 %4788
        %4792 = vset.pattern.permute.xlu0 0
        %4793 = vperm.xlu0 %4792, %v4627
        %v4794 = vpop.permute.xlu0 %4793
        %4797 = vset.pattern.permute.xlu0 0
        %4798 = vperm.xlu0 %4797, %v4628
        %v4799 = vpop.permute.xlu0 %4798
        %4802 = vset.pattern.permute.xlu0 0
        %4803 = vperm.xlu0 %4802, %v4629
        %v4804 = vpop.permute.xlu0 %4803
        %4807 = vset.pattern.permute.xlu0 0
        %4808 = vperm.xlu0 %4807, %v4630
        %v4809 = vpop.permute.xlu0 %4808
        %4812 = vset.pattern.permute.xlu0 0
        %4813 = vperm.xlu0 %4812, %v4631
        %v4814 = vpop.permute.xlu0 %4813
        %4817 = vset.pattern.permute.xlu0 0
        %4818 = vperm.xlu0 %4817, %v4632
        %v4819 = vpop.permute.xlu0 %4818
        %4822 = vset.pattern.permute.xlu0 0
        %4823 = vperm.xlu0 %4822, %v4633
        %v4824 = vpop.permute.xlu0 %4823
        %4827 = vset.pattern.permute.xlu0 0
        %4828 = vperm.xlu0 %4827, %v4634
        %v4829 = vpop.permute.xlu0 %4828
        %4832 = vset.pattern.permute.xlu0 0
        %4833 = vperm.xlu0 %4832, %v4635
        %v4834 = vpop.permute.xlu0 %4833
        %4837 = vset.pattern.permute.xlu0 0
        %4838 = vperm.xlu0 %4837, %v4636
        %v4839 = vpop.permute.xlu0 %4838
        %4842 = vset.pattern.permute.xlu0 0
        %4843 = vperm.xlu0 %4842, %v4637
        %v4844 = vpop.permute.xlu0 %4843
        %4847 = vset.pattern.permute.xlu0 0
        %4848 = vperm.xlu0 %4847, %v4638
        %v4849 = vpop.permute.xlu0 %4848
        %4852 = vset.pattern.permute.xlu0 0
        %4853 = vperm.xlu0 %4852, %v4639
        %v4854 = vpop.permute.xlu0 %4853
        %4857 = vset.pattern.permute.xlu0 0
        %4858 = vperm.xlu0 %4857, %v4640
        %v4859 = vpop.permute.xlu0 %4858
        %4862 = vset.pattern.permute.xlu0 0
        %4863 = vperm.xlu0 %4862, %v4641
        %v4864 = vpop.permute.xlu0 %4863
        %4867 = vset.pattern.permute.xlu0 0
        %4868 = vperm.xlu0 %4867, %v4642
        %v4869 = vpop.permute.xlu0 %4868
        %4872 = vset.pattern.permute.xlu0 0
        %4873 = vperm.xlu0 %4872, %v4643
        %v4874 = vpop.permute.xlu0 %4873
        %4877 = vset.pattern.permute.xlu0 0
        %4878 = vperm.xlu0 %4877, %v4644
        %v4879 = vpop.permute.xlu0 %4878
        %4882 = vset.pattern.permute.xlu0 0
        %4883 = vperm.xlu0 %4882, %v4645
        %v4884 = vpop.permute.xlu0 %4883
        %4887 = vset.pattern.permute.xlu0 0
        %4888 = vperm.xlu0 %4887, %v4646
        %v4889 = vpop.permute.xlu0 %4888
        %4892 = vset.pattern.permute.xlu0 0
        %4893 = vperm.xlu0 %4892, %v4647
        %v4894 = vpop.permute.xlu0 %4893
        %4897 = vset.pattern.permute.xlu0 0
        %4898 = vperm.xlu0 %4897, %v4648
        %v4899 = vpop.permute.xlu0 %4898
        %4902 = vset.pattern.permute.xlu0 0
        %4903 = vperm.xlu0 %4902, %v4649
        %v4904 = vpop.permute.xlu0 %4903
        %4907 = vset.pattern.permute.xlu0 0
        %4908 = vperm.xlu0 %4907, %v4650
        %v4909 = vpop.permute.xlu0 %4908
        %4912 = vset.pattern.permute.xlu0 0
        %4913 = vperm.xlu0 %4912, %v4651
        %v4914 = vpop.permute.xlu0 %4913
        %4917 = vset.pattern.permute.xlu0 0
        %4918 = vperm.xlu0 %4917, %v4652
        %v4919 = vpop.permute.xlu0 %4918
        %4922 = vset.pattern.permute.xlu0 0
        %4923 = vperm.xlu0 %4922, %v4653
        %v4924 = vpop.permute.xlu0 %4923
        %4927 = vset.pattern.permute.xlu0 0
        %4928 = vperm.xlu0 %4927, %v4654
        %v4929 = vpop.permute.xlu0 %4928
        %4932 = vset.pattern.permute.xlu0 0
        %4933 = vperm.xlu0 %4932, %v4655
        %v4934 = vpop.permute.xlu0 %4933
        %4937 = vset.pattern.permute.xlu0 0
        %4938 = vperm.xlu0 %4937, %v4656
        %v4939 = vpop.permute.xlu0 %4938
        %4942 = vset.pattern.permute.xlu0 0
        %4943 = vperm.xlu0 %4942, %v4657
        %v4944 = vpop.permute.xlu0 %4943
        %4947 = vset.pattern.permute.xlu0 0
        %4948 = vperm.xlu0 %4947, %v4658
        %v4949 = vpop.permute.xlu0 %4948
        %4952 = vset.pattern.permute.xlu0 0
        %4953 = vperm.xlu0 %4952, %v4659
        %v4954 = vpop.permute.xlu0 %4953
        %4957 = vset.pattern.permute.xlu0 0
        %4958 = vperm.xlu0 %4957, %v4660
        %v4959 = vpop.permute.xlu0 %4958
        %4962 = vset.pattern.permute.xlu0 0
        %4963 = vperm.xlu0 %4962, %v4661
        %v4964 = vpop.permute.xlu0 %4963
        %4967 = vset.pattern.permute.xlu0 0
        %4968 = vperm.xlu0 %4967, %v4662
        %v4969 = vpop.permute.xlu0 %4968
        %4972 = vset.pattern.permute.xlu0 0
        %4973 = vperm.xlu0 %4972, %v4663
        %v4974 = vpop.permute.xlu0 %4973
        %4977 = vset.pattern.permute.xlu0 0
        %4978 = vperm.xlu0 %4977, %v4664
        %v4979 = vpop.permute.xlu0 %4978
        %4982 = vset.pattern.permute.xlu0 0
        %4983 = vperm.xlu0 %4982, %v4665
        %v4984 = vpop.permute.xlu0 %4983
        %4987 = vset.pattern.permute.xlu0 0
        %4988 = vperm.xlu0 %4987, %v4666
        %v4989 = vpop.permute.xlu0 %4988
        %4992 = vset.pattern.permute.xlu0 0
        %4993 = vperm.xlu0 %4992, %v4667
        %v4994 = vpop.permute.xlu0 %4993
        %4997 = vset.pattern.permute.xlu0 0
        %4998 = vperm.xlu0 %4997, %v4668
        %v4999 = vpop.permute.xlu0 %4998
        %5002 = vset.pattern.permute.xlu0 0
        %5003 = vperm.xlu0 %5002, %v4669
        %v5004 = vpop.permute.xlu0 %5003
        %5007 = vset.pattern.permute.xlu0 0
        %5008 = vperm.xlu0 %5007, %v4670
        %v5009 = vpop.permute.xlu0 %5008
        %5012 = vset.pattern.permute.xlu0 0
        %5013 = vperm.xlu0 %5012, %v4671
        %v5014 = vpop.permute.xlu0 %5013
        %5017 = vset.pattern.permute.xlu0 0
        %5018 = vperm.xlu0 %5017, %v4672
        %v5019 = vpop.permute.xlu0 %5018
        %5022 = vset.pattern.permute.xlu0 0
        %5023 = vperm.xlu0 %5022, %v4673
        %v5024 = vpop.permute.xlu0 %5023
        %5027 = vset.pattern.permute.xlu0 0
        %5028 = vperm.xlu0 %5027, %v4674
        %v5029 = vpop.permute.xlu0 %5028
        %5032 = vset.pattern.permute.xlu0 0
        %5033 = vperm.xlu0 %5032, %v4675
        %v5034 = vpop.permute.xlu0 %5033
        %5037 = vset.pattern.permute.xlu0 0
        %5038 = vperm.xlu0 %5037, %v4676
        %v5039 = vpop.permute.xlu0 %5038
        %5042 = vset.pattern.permute.xlu0 0
        %5043 = vperm.xlu0 %5042, %v4677
        %v5044 = vpop.permute.xlu0 %5043
        %5047 = vset.pattern.permute.xlu0 0
        %5048 = vperm.xlu0 %5047, %v4678
        %v5049 = vpop.permute.xlu0 %5048
        %5052 = vset.pattern.permute.xlu0 0
        %5053 = vperm.xlu0 %5052, %v4679
        %v5054 = vpop.permute.xlu0 %5053
        %5057 = vset.pattern.permute.xlu0 0
        %5058 = vperm.xlu0 %5057, %v4680
        %v5059 = vpop.permute.xlu0 %5058
        %5062 = vset.pattern.permute.xlu0 0
        %5063 = vperm.xlu0 %5062, %v4681
        %v5064 = vpop.permute.xlu0 %5063
        %v5066 = vmul.f32 %v4682, %v4749
        %v5067 = vmul.f32 %v4683, %v4754
        %v5068 = vmul.f32 %v4684, %v4759
        %v5069 = vmul.f32 %v4685, %v4764
        %v5070 = vmul.f32 %v4686, %v4769
        %v5071 = vmul.f32 %v4687, %v4774
        %v5072 = vmul.f32 %v4688, %v4779
        %v5073 = vmul.f32 %v4689, %v4784
        %v5074 = vmul.f32 %v4690, %v4789
        %v5075 = vmul.f32 %v4691, %v4794
        %v5076 = vmul.f32 %v4692, %v4799
        %v5077 = vmul.f32 %v4693, %v4804
        %v5078 = vmul.f32 %v4694, %v4809
        %v5079 = vmul.f32 %v4695, %v4814
        %v5080 = vmul.f32 %v4696, %v4819
        %v5081 = vmul.f32 %v4697, %v4824
        %v5082 = vmul.f32 %v4698, %v4829
        %v5083 = vmul.f32 %v4699, %v4834
        %v5084 = vmul.f32 %v4700, %v4839
        %v5085 = vmul.f32 %v4701, %v4844
        %v5086 = vmul.f32 %v4702, %v4849
        %v5087 = vmul.f32 %v4703, %v4854
        %v5088 = vmul.f32 %v4704, %v4859
        %v5089 = vmul.f32 %v4705, %v4864
        %v5090 = vmul.f32 %v4706, %v4869
        %v5091 = vmul.f32 %v4707, %v4874
        %v5092 = vmul.f32 %v4708, %v4879
        %v5093 = vmul.f32 %v4709, %v4884
        %v5094 = vmul.f32 %v4710, %v4889
        %v5095 = vmul.f32 %v4711, %v4894
        %v5096 = vmul.f32 %v4712, %v4899
        %v5097 = vmul.f32 %v4713, %v4904
        %v5098 = vmul.f32 %v4714, %v4909
        %v5099 = vmul.f32 %v4715, %v4914
        %v5100 = vmul.f32 %v4716, %v4919
        %v5101 = vmul.f32 %v4717, %v4924
        %v5102 = vmul.f32 %v4718, %v4929
        %v5103 = vmul.f32 %v4719, %v4934
        %v5104 = vmul.f32 %v4720, %v4939
        %v5105 = vmul.f32 %v4721, %v4944
        %v5106 = vmul.f32 %v4722, %v4949
        %v5107 = vmul.f32 %v4723, %v4954
        %v5108 = vmul.f32 %v4724, %v4959
        %v5109 = vmul.f32 %v4725, %v4964
        %v5110 = vmul.f32 %v4726, %v4969
        %v5111 = vmul.f32 %v4727, %v4974
        %v5112 = vmul.f32 %v4728, %v4979
        %v5113 = vmul.f32 %v4729, %v4984
        %v5114 = vmul.f32 %v4730, %v4989
        %v5115 = vmul.f32 %v4731, %v4994
        %v5116 = vmul.f32 %v4732, %v4999
        %v5117 = vmul.f32 %v4733, %v5004
        %v5118 = vmul.f32 %v4734, %v5009
        %v5119 = vmul.f32 %v4735, %v5014
        %v5120 = vmul.f32 %v4736, %v5019
        %v5121 = vmul.f32 %v4737, %v5024
        %v5122 = vmul.f32 %v4738, %v5029
        %v5123 = vmul.f32 %v4739, %v5034
        %v5124 = vmul.f32 %v4740, %v5039
        %v5125 = vmul.f32 %v4741, %v5044
        %v5126 = vmul.f32 %v4742, %v5049
        %v5127 = vmul.f32 %v4743, %v5054
        %v5128 = vmul.f32 %v4744, %v5059
        %v5129 = vmul.f32 %v4745, %v5064
        %5130 = vst.msk [vmem:[%s363] sm:$0xff] %vm1221, %v5066
        %5131 = vst.msk [vmem:[%s363 + $0x8] sm:$0xff] %vm1221, %v5067
        %5132 = vst.msk [vmem:[%s363 + $0x10] sm:$0xff] %vm1221, %v5068
        %5133 = vst.msk [vmem:[%s363 + $0x18] sm:$0xff] %vm1221, %v5069
        %5134 = vst.msk [vmem:[%s363 + $0x20] sm:$0xff] %vm1221, %v5070
        %5135 = vst.msk [vmem:[%s363 + $0x28] sm:$0xff] %vm1221, %v5071
        %5136 = vst.msk [vmem:[%s363 + $0x30] sm:$0xff] %vm1221, %v5072
        %5137 = vst.msk [vmem:[%s363 + $0x38] sm:$0xff] %vm1221, %v5073
        %5138 = vst.msk [vmem:[%s363 + $0x40] sm:$0xff] %vm1221, %v5074
        %5139 = vst.msk [vmem:[%s363 + $0x48] sm:$0xff] %vm1221, %v5075
        %5140 = vst.msk [vmem:[%s363 + $0x50] sm:$0xff] %vm1221, %v5076
        %5141 = vst.msk [vmem:[%s363 + $0x58] sm:$0xff] %vm1221, %v5077
        %5142 = vst.msk [vmem:[%s363 + $0x60] sm:$0xff] %vm1221, %v5078
        %5143 = vst.msk [vmem:[%s363 + $0x68] sm:$0xff] %vm1221, %v5079
        %5144 = vst.msk [vmem:[%s363 + $0x70] sm:$0xff] %vm1221, %v5080
        %5145 = vst.msk [vmem:[%s363 + $0x78] sm:$0xff] %vm1221, %v5081
        %5146 = vst.msk [vmem:[%s363 + $0x80] sm:$0xff] %vm1221, %v5082
        %5147 = vst.msk [vmem:[%s363 + $0x88] sm:$0xff] %vm1221, %v5083
        %5148 = vst.msk [vmem:[%s363 + $0x90] sm:$0xff] %vm1221, %v5084
        %5149 = vst.msk [vmem:[%s363 + $0x98] sm:$0xff] %vm1221, %v5085
        %5150 = vst.msk [vmem:[%s363 + $0xa0] sm:$0xff] %vm1221, %v5086
        %5151 = vst.msk [vmem:[%s363 + $0xa8] sm:$0xff] %vm1221, %v5087
        %5152 = vst.msk [vmem:[%s363 + $0xb0] sm:$0xff] %vm1221, %v5088
        %5153 = vst.msk [vmem:[%s363 + $0xb8] sm:$0xff] %vm1221, %v5089
        %5154 = vst.msk [vmem:[%s363 + $0xc0] sm:$0xff] %vm1221, %v5090
        %5155 = vst.msk [vmem:[%s363 + $0xc8] sm:$0xff] %vm1221, %v5091
        %5156 = vst.msk [vmem:[%s363 + $0xd0] sm:$0xff] %vm1221, %v5092
        %5157 = vst.msk [vmem:[%s363 + $0xd8] sm:$0xff] %vm1221, %v5093
        %5158 = vst.msk [vmem:[%s363 + $0xe0] sm:$0xff] %vm1221, %v5094
        %5159 = vst.msk [vmem:[%s363 + $0xe8] sm:$0xff] %vm1221, %v5095
        %5160 = vst.msk [vmem:[%s363 + $0xf0] sm:$0xff] %vm1221, %v5096
        %5161 = vst.msk [vmem:[%s363 + $0xf8] sm:$0xff] %vm1221, %v5097
        %5162 = vst.msk [vmem:[%s363 + $0x100] sm:$0xff] %vm1221, %v5098
        %5163 = vst.msk [vmem:[%s363 + $0x108] sm:$0xff] %vm1221, %v5099
        %5164 = vst.msk [vmem:[%s363 + $0x110] sm:$0xff] %vm1221, %v5100
        %5165 = vst.msk [vmem:[%s363 + $0x118] sm:$0xff] %vm1221, %v5101
        %5166 = vst.msk [vmem:[%s363 + $0x120] sm:$0xff] %vm1221, %v5102
        %5167 = vst.msk [vmem:[%s363 + $0x128] sm:$0xff] %vm1221, %v5103
        %5168 = vst.msk [vmem:[%s363 + $0x130] sm:$0xff] %vm1221, %v5104
        %5169 = vst.msk [vmem:[%s363 + $0x138] sm:$0xff] %vm1221, %v5105
        %5170 = vst.msk [vmem:[%s363 + $0x140] sm:$0xff] %vm1221, %v5106
        %5171 = vst.msk [vmem:[%s363 + $0x148] sm:$0xff] %vm1221, %v5107
        %5172 = vst.msk [vmem:[%s363 + $0x150] sm:$0xff] %vm1221, %v5108
        %5173 = vst.msk [vmem:[%s363 + $0x158] sm:$0xff] %vm1221, %v5109
        %5174 = vst.msk [vmem:[%s363 + $0x160] sm:$0xff] %vm1221, %v5110
        %5175 = vst.msk [vmem:[%s363 + $0x168] sm:$0xff] %vm1221, %v5111
        %5176 = vst.msk [vmem:[%s363 + $0x170] sm:$0xff] %vm1221, %v5112
        %5177 = vst.msk [vmem:[%s363 + $0x178] sm:$0xff] %vm1221, %v5113
        %5178 = vst.msk [vmem:[%s363 + $0x180] sm:$0xff] %vm1221, %v5114
        %5179 = vst.msk [vmem:[%s363 + $0x188] sm:$0xff] %vm1221, %v5115
        %5180 = vst.msk [vmem:[%s363 + $0x190] sm:$0xff] %vm1221, %v5116
        %5181 = vst.msk [vmem:[%s363 + $0x198] sm:$0xff] %vm1221, %v5117
        %5182 = vst.msk [vmem:[%s363 + $0x1a0] sm:$0xff] %vm1221, %v5118
        %5183 = vst.msk [vmem:[%s363 + $0x1a8] sm:$0xff] %vm1221, %v5119
        %5184 = vst.msk [vmem:[%s363 + $0x1b0] sm:$0xff] %vm1221, %v5120
        %5185 = vst.msk [vmem:[%s363 + $0x1b8] sm:$0xff] %vm1221, %v5121
        %5186 = vst.msk [vmem:[%s363 + $0x1c0] sm:$0xff] %vm1221, %v5122
        %5187 = vst.msk [vmem:[%s363 + $0x1c8] sm:$0xff] %vm1221, %v5123
        %5188 = vst.msk [vmem:[%s363 + $0x1d0] sm:$0xff] %vm1221, %v5124
        %5189 = vst.msk [vmem:[%s363 + $0x1d8] sm:$0xff] %vm1221, %v5125
        %5190 = vst.msk [vmem:[%s363 + $0x1e0] sm:$0xff] %vm1221, %v5126
        %5191 = vst.msk [vmem:[%s363 + $0x1e8] sm:$0xff] %vm1221, %v5127
        %5192 = vst.msk [vmem:[%s363 + $0x1f0] sm:$0xff] %vm1221, %v5128
        %5193 = vst.msk [vmem:[%s363 + $0x1f8] sm:$0xff] %vm1221, %v5129
      $region40: #{tpu_custom_call.1} parent=31 // pred_fallthru
        _
      %s5194 = smul.u32 4, %s21
      %s5195 = smul.u32 16, %s22
      %p5196 = scmp.lt.s32.totalorder %s20, 1
      %s5197 = scalar_select %p5196, %s20, 1
      %p5198 = scmp.lt.s32.totalorder %s5194, 3
      %s5199 = scalar_select %p5198, %s5194, 3
      %p5200 = scmp.lt.s32.totalorder %s5195, 15
      %s5201 = scalar_select %p5200, %s5195, 15
      %s5202 = smul.addr %s5199, 16
      %s5203 = sadd.s32 %s5201, %s5202
      %s5204 = smul.addr %s5197, 64
      %s5205 = sadd.s32 %s5203, %s5204
      %s5206 = smul.addr %s5205, 8
      %s5207 = scalar_lea.vmem %s3, %s5206
      // Predicated region
      $region41: #{tpu_custom_call.1} parent=31 // pred_check
        %p5208 = pneg %p152
      $region42: #{tpu_custom_call.1} parent=31 // pred_check_branch
        %5210 = sbr.rel (%p5208) target = $region44
      $region43: #{tpu_custom_call.1} parent=31 // pred_region
        %s5211 = smul.u32 4, %s21
        %s5212 = smul.u32 16, %s22
      $region44: #{tpu_custom_call.1} parent=31 // pred_fallthru
        _
    $region32: #{tpu_custom_call.1} parent=5 // pred_fallthru
      _
    %p5213 = scmp.le.s32.totalorder 2, %s9
    // Predicated region
    $region45: #{tpu_custom_call.1} parent=5 // pred_check
      %p5214 = pneg %p5213
    $region46: #{tpu_custom_call.1} parent=5 // pred_check_branch
      %5216 = sbr.rel (%p5214) target = $region48
    $region47: #{tpu_custom_call.1} parent=5 // pred_region
      %s5217 = ssub.s32 %s9, 2
      // Predicated region
      $region49: #{tpu_custom_call.1} parent=47 // pred_check
        %p5218 = pneg %p158
      $region50: #{tpu_custom_call.1} parent=47 // pred_check_branch
        %5220 = sbr.rel (%p5218) target = $region52
      $region51: #{tpu_custom_call.1} parent=47 // pred_region
        %s5221 = smul.u32 4, %s25
        %s5222 = smul.u32 16, %s26
        %p5223 = scmp.lt.s32.totalorder %s24, 1
        %s5224 = scalar_select %p5223, %s24, 1
        %p5225 = scmp.lt.s32.totalorder %s5221, 3
        %s5226 = scalar_select %p5225, %s5221, 3
        %p5227 = scmp.lt.s32.totalorder %s5222, 15
        %s5228 = scalar_select %p5227, %s5222, 15
        %s5229 = smul.addr %s5226, 16
        %s5230 = sadd.s32 %s5228, %s5229
        %s5231 = smul.addr %s5224, 64
        %s5232 = sadd.s32 %s5230, %s5231
        %s5233 = smul.addr %s5232, 8
        %s5234 = scalar_lea.vmem %s3, %s5233
      $region52: #{tpu_custom_call.1} parent=47 // pred_fallthru
        _
    $region48: #{tpu_custom_call.1} parent=5 // pred_fallthru
      _
  $region6: #{tpu_custom_call.1} parent=0 // loop_footer
    %s13 = sadd.s32 1, %s9
  $region7: #{tpu_custom_call.1} parent=0 // loop_footer_branch
    %8 = sbr.rel target = $region3
  $region8: #{tpu_custom_call.1} parent=0 // loop_exit
    _

</llo_original>
